<compile_context>
chip_gen: v5e
topology: v5e:2x2
jax: 0.10.0
libtpu: 0.0.40
codegen_flags: <defaults>
</compile_context>

<pallas_src>
import functools

import numpy as np
import jax
import jax.numpy as jnp
from jax import lax
from jax.experimental import pallas as pl
from jax.experimental.pallas import tpu as pltpu


# ----------------------------------------------------------------------------
# Fused kernel: all convs (+bias, +ReLU) and optional bilinear upsample for
# `group` images folded onto the lane axis.  Activations stay channel-major
# (C, group*H*W), lane-dense, entirely in vregs/VMEM.
# ----------------------------------------------------------------------------
def _fused_block_kernel(x_ref, masks_ref, *args, n_layers, relu_flags,
                        upsample, group, hw, spatial_w, kh, kw, compute_dtype):
    # args layout: (w_0, b_0, ..., w_{L-1}, b_{L-1}, [b_mat], o_ref)
    wb_refs = args[:2 * n_layers]
    rest = args[2 * n_layers:]
    if upsample:
        b_mat_ref, o_ref = rest
    else:
        (o_ref,) = rest

    # Fold the per-step images onto the lane axis:
    #   (group, C0, H*W) -> (C0, group*H*W).
    # Each piece starts at a multiple of H*W (=256) lanes, so this is plain
    # vreg placement (no lane shifts).
    x = x_ref[...]
    if group == 1:
        act = x[0].astype(jnp.float32)
    else:
        act = jnp.concatenate([x[g] for g in range(group)],
                              axis=1).astype(jnp.float32)

    lanes = group * hw
    ph, pw = (kh - 1) // 2, (kw - 1) // 2
    # One (1, lanes) validity row per kernel tap; loaded once, reused by all
    # layers (zeroes conv-padding reads AND cross-image / wrap-around lanes).
    mask_rows = [masks_ref[k:k + 1, :] for k in range(kh * kw)]

    for layer in range(n_layers):
        w_ref = wb_refs[2 * layer]                 # (kh*kw, Cout, Cin)
        b = wb_refs[2 * layer + 1][...]            # (Cout, 1), f32
        cout = w_ref.shape[1]
        a_c = act.astype(compute_dtype)
        acc = jnp.zeros((cout, lanes), jnp.float32)
        for k in range(kh * kw):
            dh, dw = divmod(k, kw)
            s = (dh - ph) * spatial_w + (dw - pw)  # static lane shift
            if s == 0:
                shifted = a_c
            else:
                # In-register lane rotation (XLU); wrapped lanes are masked.
                shifted = pltpu.roll(a_c, (-s) % lanes, 1)
            patch = shifted * mask_rows[k].astype(compute_dtype)
            acc = acc + jnp.dot(w_ref[k].astype(compute_dtype), patch,
                                preferred_element_type=jnp.float32)
        out = acc + b
        if relu_flags[layer]:
            out = jnp.maximum(out, 0.0)
        act = out

    # Write each image back as its own (C, out_cols) slab so the host-side
    # reshape to NCHW is a free row-major reshape.
    for g in range(group):
        img = act[:, g * hw:(g + 1) * hw]          # 256-lane-aligned slice
        if upsample:
            # (C, H*W) @ kron(Ah, Aw)^T -> (C, Ho*Wo): one MXU matmul.
            img = jnp.dot(img.astype(compute_dtype), b_mat_ref[...],
                          preferred_element_type=jnp.float32)
        o_ref[g] = img.astype(o_ref.dtype)


# ----------------------------------------------------------------------------
# Host-side constant builders
# ----------------------------------------------------------------------------
def _shift_masks(h, w, kh, kw):
    """(kh*kw, H*W) 0/1 masks: valid source pixel for each kernel offset."""
    ph, pw = (kh - 1) // 2, (kw - 1) // 2
    hh = np.arange(h)[:, None]
    ww = np.arange(w)[None, :]
    masks = np.zeros((kh * kw, h * w), np.float32)
    for k in range(kh * kw):
        dh, dw = divmod(k, kw)
        valid = ((hh + dh - ph >= 0) & (hh + dh - ph < h) &
                 (ww + dw - pw >= 0) & (ww + dw - pw < w))
        masks[k] = valid.reshape(-1).astype(np.float32)
    return masks


def _bilinear_matrix(out_size, in_size):
    """PyTorch nn.Upsample(mode='bilinear', align_corners=False) weights."""
    A = np.zeros((out_size, in_size), np.float32)
    scale = in_size / out_size
    for o in range(out_size):
        src = max((o + 0.5) * scale - 0.5, 0.0)
        i0 = min(int(np.floor(src)), in_size - 1)
        frac = src - i0
        i1 = min(i0 + 1, in_size - 1)
        A[o, i0] += 1.0 - frac
        A[o, i1] += frac
    return A


def _choose_num_steps(n):
    """v7x has 2 TensorCores/chip -> keep a 2-wide parallel grid there;
    single-TC chips (v5e/v6e) fold the whole batch into one grid step."""
    try:
        kind = jax.devices()[0].device_kind.lower()
    except Exception:
        kind = ""
    if "v7" in kind and n >= 2 and n % 2 == 0:
        return 2
    return 1


# ----------------------------------------------------------------------------
# Module forward (NCHW in -> NCHW out), single pallas_call
# ----------------------------------------------------------------------------
def conv_block_msnnet_forward(x_nchw, params, out_size, block_type,
                              compute_dtype=jnp.float32, num_steps=None):
    n, c0, h, w = x_nchw.shape
    hw = h * w
    n_layers = len(params)
    kh, kw = params[0][0].shape[2], params[0][0].shape[3]
    assert kh == kw and kh % 2 == 1, "odd square kernels only"
    relu_flags = tuple(not (i == n_layers - 1 and block_type == 'out')
                       for i in range(n_layers))
    upsample = (block_type == 'middle')

    if num_steps is None:
        num_steps = _choose_num_steps(n)
    assert n % num_steps == 0, (n, num_steps)
    group = n // num_steps

    # NCHW -> (steps, group, C, H*W): free row-major reshape, no transpose.
    x_folded = x_nchw.reshape(num_steps, group, c0, hw)

    # Validity masks, tiled across the folded images (constant-folded under jit).
    masks = jnp.asarray(np.tile(_shift_masks(h, w, kh, kw), (1, group)))

    inputs = [x_folded, masks]
    in_specs = [
        pl.BlockSpec((None, group, c0, hw), lambda i: (i, 0, 0, 0)),
        pl.BlockSpec(masks.shape, lambda i: (0, 0)),
    ]
    for wgt, bias in params:
        cout, cin = wgt.shape[0], wgt.shape[1]
        # (Cout, Cin, kh, kw) -> (kh*kw, Cout, Cin): one small slab per tap,
        # avoiding any in-kernel sublane concatenation.
        w_t = jnp.transpose(wgt, (2, 3, 0, 1)).reshape(kh * kw, cout, cin)
        inputs.append(w_t.astype(compute_dtype))
        inputs.append(bias.reshape(cout, 1).astype(jnp.float32))
        in_specs.append(pl.BlockSpec((kh * kw, cout, cin), lambda i: (0, 0, 0)))
        in_specs.append(pl.BlockSpec((cout, 1), lambda i: (0, 0)))

    c_last = params[-1][0].shape[0]
    if upsample:
        ho, wo = out_size
        a_h = _bilinear_matrix(ho, h)
        a_w = _bilinear_matrix(wo, w)
        # B[h*W+w, o*Wo+p] = Ah[o,h]*Aw[p,w]  ==  kron(Ah, Aw).T
        b_mat = jnp.asarray(np.kron(a_h, a_w).T).astype(compute_dtype)
        inputs.append(b_mat)
        in_specs.append(pl.BlockSpec((hw, ho * wo), lambda i: (0, 0)))
        out_cols = ho * wo
    else:
        out_cols = hw

    kernel = functools.partial(
        _fused_block_kernel, n_layers=n_layers, relu_flags=relu_flags,
        upsample=upsample, group=group, hw=hw, spatial_w=w, kh=kh, kw=kw,
        compute_dtype=compute_dtype)

    out = pl.pallas_call(
        kernel,
        out_shape=jax.ShapeDtypeStruct((num_steps, group, c_last, out_cols),
                                       x_nchw.dtype),
        grid=(num_steps,),
        in_specs=in_specs,
        out_specs=pl.BlockSpec((None, group, c_last, out_cols),
                               lambda i: (i, 0, 0, 0)),
        compiler_params=pltpu.CompilerParams(
            dimension_semantics=("parallel",)),
    )(*inputs)

    # (steps, group, C, cols) -> NCHW: free row-major reshape.
    if upsample:
        return out.reshape(n, c_last, out_size[0], out_size[1])
    return out.reshape(n, c_last, h, w)


# ----------------------------------------------------------------------------
# Pure-JAX reference (same math, f32) for a sanity check
# ----------------------------------------------------------------------------
def _reference_forward(x_nchw, params, out_size, block_type):
    x = jnp.transpose(x_nchw, (0, 2, 3, 1))
    n_layers = len(params)
    for i, (wgt, bias) in enumerate(params):
        y = lax.conv_general_dilated(
            x, jnp.transpose(wgt, (2, 3, 1, 0)),  # OIHW -> HWIO
            window_strides=(1, 1), padding='SAME',
            dimension_numbers=('NHWC', 'HWIO', 'NHWC'))
        y = y + bias.reshape(1, 1, 1, -1)
        if not (i == n_layers - 1 and block_type == 'out'):
            y = jnp.maximum(y, 0.0)
        x = y
    if block_type == 'middle':
        a_h = jnp.asarray(_bilinear_matrix(out_size[0], x.shape[1]))
        a_w = jnp.asarray(_bilinear_matrix(out_size[1], x.shape[2]))
        x = jnp.einsum('oh,pw,nhwc->nopc', a_h, a_w, x)
    return jnp.transpose(x, (0, 3, 1, 2))


# ----------------------------------------------------------------------------
if __name__ == "__main__":
    # Module config: fmaps=[4,8,8], 3x3 kernels, 'middle' block -> upsample
    fmaps = [4, 8, 8]
    kernel_size = (3, 3)
    block_type = 'middle'
    out_size = (24, 24)

    key = jax.random.PRNGKey(0)
    keys = jax.random.split(key, 2 * (len(fmaps) - 1) + 1)

    # Deterministic synthetic parameters (PyTorch Conv2d weight layout OIHW)
    params = []
    for i in range(len(fmaps) - 1):
        wgt = 0.1 * jax.random.normal(
            keys[2 * i], (fmaps[i + 1], fmaps[i], *kernel_size), jnp.float32)
        bias = 0.05 * jax.random.normal(
            keys[2 * i + 1], (fmaps[i + 1],), jnp.float32)
        params.append((wgt, bias))

    # Input, NCHW like PyTorch
    x = jax.random.normal(keys[-1], (2, fmaps[0], 16, 16), jnp.float32)

    # jit so the host-side constant building / weight repacking constant-folds.
    fwd = jax.jit(functools.partial(conv_block_msnnet_forward,
                                    out_size=out_size, block_type=block_type))
    out = jax.block_until_ready(fwd(x, params))

    ref = jax.block_until_ready(
        _reference_forward(x, params, out_size, block_type))

    assert out.shape == (2, fmaps[-1], *out_size), out.shape
    assert jnp.allclose(out, ref, atol=1e-2, rtol=1e-2), \
        float(jnp.max(jnp.abs(out - ref)))

    print("KERNEL_OK")
</pallas_src>

<mosaic_0001>
module attributes {stable_mosaic.version = 11 : i64} {
  func.func @_fused_block_kernel(%arg0: i32, %arg1: memref<1x2x4x256xf32, #tpu.memory_space<vmem>>, %arg2: memref<9x512xf32, #tpu.memory_space<vmem>>, %arg3: memref<9x8x4xf32, #tpu.memory_space<vmem>>, %arg4: memref<8x1xf32, #tpu.memory_space<vmem>>, %arg5: memref<9x8x8xf32, #tpu.memory_space<vmem>>, %arg6: memref<8x1xf32, #tpu.memory_space<vmem>>, %arg7: memref<256x576xf32, #tpu.memory_space<vmem>>, %arg8: memref<1x2x8x576xf32, #tpu.memory_space<vmem>>) attributes {dimension_semantics = [#tpu.dimension_semantics<parallel>], iteration_bounds = array<i64: 1>, scalar_prefetch = 0 : i64, scratch_operands = 0 : i64, tpu.core_type = #tpu.core_type<tc>, window_params = [{transform_indices = @transform_0, window_bounds = array<i64: 1, 2, 4, 256>}, {pipeline_mode = #tpu.pipeline_mode<synchronous>, transform_indices = @transform_1, window_bounds = array<i64: 9, 512>}, {pipeline_mode = #tpu.pipeline_mode<synchronous>, transform_indices = @transform_2, window_bounds = array<i64: 9, 8, 4>}, {pipeline_mode = #tpu.pipeline_mode<synchronous>, transform_indices = @transform_3, window_bounds = array<i64: 8, 1>}, {pipeline_mode = #tpu.pipeline_mode<synchronous>, transform_indices = @transform_4, window_bounds = array<i64: 9, 8, 8>}, {pipeline_mode = #tpu.pipeline_mode<synchronous>, transform_indices = @transform_5, window_bounds = array<i64: 8, 1>}, {pipeline_mode = #tpu.pipeline_mode<synchronous>, transform_indices = @transform_6, window_bounds = array<i64: 256, 576>}, {transform_indices = @transform_7, window_bounds = array<i64: 1, 2, 8, 576>}]} {
    %c0 = arith.constant 0 : index
    %c0_0 = arith.constant 0 : index
    %c0_1 = arith.constant 0 : index
    %c0_2 = arith.constant 0 : index
    %0 = vector.load %arg1[%c0, %c0_0, %c0_1, %c0_2] : memref<1x2x4x256xf32, #tpu.memory_space<vmem>>, vector<1x2x4x256xf32>
    %1 = vector.shape_cast %0 : vector<1x2x4x256xf32> to vector<2x4x256xf32>
    %2 = vector.extract_strided_slice %1 {offsets = [0, 0, 0], sizes = [1, 4, 256], strides = [1, 1, 1]} : vector<2x4x256xf32> to vector<1x4x256xf32>
    %3 = vector.shape_cast %2 : vector<1x4x256xf32> to vector<4x256xf32>
    %4 = vector.extract_strided_slice %1 {offsets = [1, 0, 0], sizes = [1, 4, 256], strides = [1, 1, 1]} : vector<2x4x256xf32> to vector<1x4x256xf32>
    %5 = vector.shape_cast %4 : vector<1x4x256xf32> to vector<4x256xf32>
    %6 = tpu.concatenate %3, %5 in 1 : vector<4x256xf32>, vector<4x256xf32> -> vector<4x512xf32>
    %c0_3 = arith.constant 0 : index
    %c0_4 = arith.constant 0 : index
    %7 = vector.load %arg2[%c0_3, %c0_4] : memref<9x512xf32, #tpu.memory_space<vmem>>, vector<1x512xf32>
    %c1 = arith.constant 1 : index
    %c0_5 = arith.constant 0 : index
    %8 = vector.load %arg2[%c1, %c0_5] : memref<9x512xf32, #tpu.memory_space<vmem>>, vector<1x512xf32>
    %c2 = arith.constant 2 : index
    %c0_6 = arith.constant 0 : index
    %9 = vector.load %arg2[%c2, %c0_6] : memref<9x512xf32, #tpu.memory_space<vmem>>, vector<1x512xf32>
    %c3 = arith.constant 3 : index
    %c0_7 = arith.constant 0 : index
    %10 = vector.load %arg2[%c3, %c0_7] : memref<9x512xf32, #tpu.memory_space<vmem>>, vector<1x512xf32>
    %c4 = arith.constant 4 : index
    %c0_8 = arith.constant 0 : index
    %11 = vector.load %arg2[%c4, %c0_8] : memref<9x512xf32, #tpu.memory_space<vmem>>, vector<1x512xf32>
    %c5 = arith.constant 5 : index
    %c0_9 = arith.constant 0 : index
    %12 = vector.load %arg2[%c5, %c0_9] : memref<9x512xf32, #tpu.memory_space<vmem>>, vector<1x512xf32>
    %c6 = arith.constant 6 : index
    %c0_10 = arith.constant 0 : index
    %13 = vector.load %arg2[%c6, %c0_10] : memref<9x512xf32, #tpu.memory_space<vmem>>, vector<1x512xf32>
    %c7 = arith.constant 7 : index
    %c0_11 = arith.constant 0 : index
    %14 = vector.load %arg2[%c7, %c0_11] : memref<9x512xf32, #tpu.memory_space<vmem>>, vector<1x512xf32>
    %c8 = arith.constant 8 : index
    %c0_12 = arith.constant 0 : index
    %15 = vector.load %arg2[%c8, %c0_12] : memref<9x512xf32, #tpu.memory_space<vmem>>, vector<1x512xf32>
    %c0_13 = arith.constant 0 : index
    %c0_14 = arith.constant 0 : index
    %16 = vector.load %arg4[%c0_13, %c0_14] : memref<8x1xf32, #tpu.memory_space<vmem>>, vector<8x1xf32>
    %cst = arith.constant 0.000000e+00 : f32
    %17 = vector.broadcast %cst : f32 to vector<8x512xf32>
    %c17_i32 = arith.constant 17 : i32
    %18 = tpu.dynamic_rotate %6 by %c17_i32 dim 1 : vector<4x512xf32>, i32 -> vector<4x512xf32>
    %19 = vector.broadcast %7 : vector<1x512xf32> to vector<4x512xf32>
    %20 = arith.mulf %18, %19 : vector<4x512xf32>
    %c0_15 = arith.constant 0 : index
    %c0_16 = arith.constant 0 : index
    %c0_17 = arith.constant 0 : index
    %21 = vector.load %arg3[%c0_15, %c0_16, %c0_17] : memref<9x8x4xf32, #tpu.memory_space<vmem>>, vector<1x8x4xf32>
    %22 = vector.shape_cast %21 : vector<1x8x4xf32> to vector<8x4xf32>
    %cst_18 = arith.constant dense<0.000000e+00> : vector<8x512xf32>
    %23 = tpu.matmul %22, %20, %cst_18 {dimension_numbers = #tpu.dot_dimension_numbers<[1], [0], [0], [1], [0, 0, 1, 1], [], []>} : vector<8x4xf32>, vector<4x512xf32>, vector<8x512xf32> -> vector<8x512xf32>
    %24 = arith.addf %17, %23 : vector<8x512xf32>
    %c16_i32 = arith.constant 16 : i32
    %25 = tpu.dynamic_rotate %6 by %c16_i32 dim 1 : vector<4x512xf32>, i32 -> vector<4x512xf32>
    %26 = vector.broadcast %8 : vector<1x512xf32> to vector<4x512xf32>
    %27 = arith.mulf %25, %26 : vector<4x512xf32>
    %c1_19 = arith.constant 1 : index
    %c0_20 = arith.constant 0 : index
    %c0_21 = arith.constant 0 : index
    %28 = vector.load %arg3[%c1_19, %c0_20, %c0_21] : memref<9x8x4xf32, #tpu.memory_space<vmem>>, vector<1x8x4xf32>
    %29 = vector.shape_cast %28 : vector<1x8x4xf32> to vector<8x4xf32>
    %cst_22 = arith.constant dense<0.000000e+00> : vector<8x512xf32>
    %30 = tpu.matmul %29, %27, %cst_22 {dimension_numbers = #tpu.dot_dimension_numbers<[1], [0], [0], [1], [0, 0, 1, 1], [], []>} : vector<8x4xf32>, vector<4x512xf32>, vector<8x512xf32> -> vector<8x512xf32>
    %31 = arith.addf %24, %30 : vector<8x512xf32>
    %c15_i32 = arith.constant 15 : i32
    %32 = tpu.dynamic_rotate %6 by %c15_i32 dim 1 : vector<4x512xf32>, i32 -> vector<4x512xf32>
    %33 = vector.broadcast %9 : vector<1x512xf32> to vector<4x512xf32>
    %34 = arith.mulf %32, %33 : vector<4x512xf32>
    %c2_23 = arith.constant 2 : index
    %c0_24 = arith.constant 0 : index
    %c0_25 = arith.constant 0 : index
    %35 = vector.load %arg3[%c2_23, %c0_24, %c0_25] : memref<9x8x4xf32, #tpu.memory_space<vmem>>, vector<1x8x4xf32>
    %36 = vector.shape_cast %35 : vector<1x8x4xf32> to vector<8x4xf32>
    %cst_26 = arith.constant dense<0.000000e+00> : vector<8x512xf32>
    %37 = tpu.matmul %36, %34, %cst_26 {dimension_numbers = #tpu.dot_dimension_numbers<[1], [0], [0], [1], [0, 0, 1, 1], [], []>} : vector<8x4xf32>, vector<4x512xf32>, vector<8x512xf32> -> vector<8x512xf32>
    %38 = arith.addf %31, %37 : vector<8x512xf32>
    %c1_i32 = arith.constant 1 : i32
    %39 = tpu.dynamic_rotate %6 by %c1_i32 dim 1 : vector<4x512xf32>, i32 -> vector<4x512xf32>
    %40 = vector.broadcast %10 : vector<1x512xf32> to vector<4x512xf32>
    %41 = arith.mulf %39, %40 : vector<4x512xf32>
    %c3_27 = arith.constant 3 : index
    %c0_28 = arith.constant 0 : index
    %c0_29 = arith.constant 0 : index
    %42 = vector.load %arg3[%c3_27, %c0_28, %c0_29] : memref<9x8x4xf32, #tpu.memory_space<vmem>>, vector<1x8x4xf32>
    %43 = vector.shape_cast %42 : vector<1x8x4xf32> to vector<8x4xf32>
    %cst_30 = arith.constant dense<0.000000e+00> : vector<8x512xf32>
    %44 = tpu.matmul %43, %41, %cst_30 {dimension_numbers = #tpu.dot_dimension_numbers<[1], [0], [0], [1], [0, 0, 1, 1], [], []>} : vector<8x4xf32>, vector<4x512xf32>, vector<8x512xf32> -> vector<8x512xf32>
    %45 = arith.addf %38, %44 : vector<8x512xf32>
    %46 = vector.broadcast %11 : vector<1x512xf32> to vector<4x512xf32>
    %47 = arith.mulf %6, %46 : vector<4x512xf32>
    %c4_31 = arith.constant 4 : index
    %c0_32 = arith.constant 0 : index
    %c0_33 = arith.constant 0 : index
    %48 = vector.load %arg3[%c4_31, %c0_32, %c0_33] : memref<9x8x4xf32, #tpu.memory_space<vmem>>, vector<1x8x4xf32>
    %49 = vector.shape_cast %48 : vector<1x8x4xf32> to vector<8x4xf32>
    %cst_34 = arith.constant dense<0.000000e+00> : vector<8x512xf32>
    %50 = tpu.matmul %49, %47, %cst_34 {dimension_numbers = #tpu.dot_dimension_numbers<[1], [0], [0], [1], [0, 0, 1, 1], [], []>} : vector<8x4xf32>, vector<4x512xf32>, vector<8x512xf32> -> vector<8x512xf32>
    %51 = arith.addf %45, %50 : vector<8x512xf32>
    %c511_i32 = arith.constant 511 : i32
    %52 = tpu.dynamic_rotate %6 by %c511_i32 dim 1 : vector<4x512xf32>, i32 -> vector<4x512xf32>
    %53 = vector.broadcast %12 : vector<1x512xf32> to vector<4x512xf32>
    %54 = arith.mulf %52, %53 : vector<4x512xf32>
    %c5_35 = arith.constant 5 : index
    %c0_36 = arith.constant 0 : index
    %c0_37 = arith.constant 0 : index
    %55 = vector.load %arg3[%c5_35, %c0_36, %c0_37] : memref<9x8x4xf32, #tpu.memory_space<vmem>>, vector<1x8x4xf32>
    %56 = vector.shape_cast %55 : vector<1x8x4xf32> to vector<8x4xf32>
    %cst_38 = arith.constant dense<0.000000e+00> : vector<8x512xf32>
    %57 = tpu.matmul %56, %54, %cst_38 {dimension_numbers = #tpu.dot_dimension_numbers<[1], [0], [0], [1], [0, 0, 1, 1], [], []>} : vector<8x4xf32>, vector<4x512xf32>, vector<8x512xf32> -> vector<8x512xf32>
    %58 = arith.addf %51, %57 : vector<8x512xf32>
    %c497_i32 = arith.constant 497 : i32
    %59 = tpu.dynamic_rotate %6 by %c497_i32 dim 1 : vector<4x512xf32>, i32 -> vector<4x512xf32>
    %60 = vector.broadcast %13 : vector<1x512xf32> to vector<4x512xf32>
    %61 = arith.mulf %59, %60 : vector<4x512xf32>
    %c6_39 = arith.constant 6 : index
    %c0_40 = arith.constant 0 : index
    %c0_41 = arith.constant 0 : index
    %62 = vector.load %arg3[%c6_39, %c0_40, %c0_41] : memref<9x8x4xf32, #tpu.memory_space<vmem>>, vector<1x8x4xf32>
    %63 = vector.shape_cast %62 : vector<1x8x4xf32> to vector<8x4xf32>
    %cst_42 = arith.constant dense<0.000000e+00> : vector<8x512xf32>
    %64 = tpu.matmul %63, %61, %cst_42 {dimension_numbers = #tpu.dot_dimension_numbers<[1], [0], [0], [1], [0, 0, 1, 1], [], []>} : vector<8x4xf32>, vector<4x512xf32>, vector<8x512xf32> -> vector<8x512xf32>
    %65 = arith.addf %58, %64 : vector<8x512xf32>
    %c496_i32 = arith.constant 496 : i32
    %66 = tpu.dynamic_rotate %6 by %c496_i32 dim 1 : vector<4x512xf32>, i32 -> vector<4x512xf32>
    %67 = vector.broadcast %14 : vector<1x512xf32> to vector<4x512xf32>
    %68 = arith.mulf %66, %67 : vector<4x512xf32>
    %c7_43 = arith.constant 7 : index
    %c0_44 = arith.constant 0 : index
    %c0_45 = arith.constant 0 : index
    %69 = vector.load %arg3[%c7_43, %c0_44, %c0_45] : memref<9x8x4xf32, #tpu.memory_space<vmem>>, vector<1x8x4xf32>
    %70 = vector.shape_cast %69 : vector<1x8x4xf32> to vector<8x4xf32>
    %cst_46 = arith.constant dense<0.000000e+00> : vector<8x512xf32>
    %71 = tpu.matmul %70, %68, %cst_46 {dimension_numbers = #tpu.dot_dimension_numbers<[1], [0], [0], [1], [0, 0, 1, 1], [], []>} : vector<8x4xf32>, vector<4x512xf32>, vector<8x512xf32> -> vector<8x512xf32>
    %72 = arith.addf %65, %71 : vector<8x512xf32>
    %c495_i32 = arith.constant 495 : i32
    %73 = tpu.dynamic_rotate %6 by %c495_i32 dim 1 : vector<4x512xf32>, i32 -> vector<4x512xf32>
    %74 = vector.broadcast %15 : vector<1x512xf32> to vector<4x512xf32>
    %75 = arith.mulf %73, %74 : vector<4x512xf32>
    %c8_47 = arith.constant 8 : index
    %c0_48 = arith.constant 0 : index
    %c0_49 = arith.constant 0 : index
    %76 = vector.load %arg3[%c8_47, %c0_48, %c0_49] : memref<9x8x4xf32, #tpu.memory_space<vmem>>, vector<1x8x4xf32>
    %77 = vector.shape_cast %76 : vector<1x8x4xf32> to vector<8x4xf32>
    %cst_50 = arith.constant dense<0.000000e+00> : vector<8x512xf32>
    %78 = tpu.matmul %77, %75, %cst_50 {dimension_numbers = #tpu.dot_dimension_numbers<[1], [0], [0], [1], [0, 0, 1, 1], [], []>} : vector<8x4xf32>, vector<4x512xf32>, vector<8x512xf32> -> vector<8x512xf32>
    %79 = arith.addf %72, %78 : vector<8x512xf32>
    %80 = vector.broadcast %16 : vector<8x1xf32> to vector<8x512xf32>
    %81 = arith.addf %79, %80 : vector<8x512xf32>
    %cst_51 = arith.constant 0.000000e+00 : f32
    %82 = vector.broadcast %cst_51 : f32 to vector<8x512xf32>
    %83 = arith.maximumf %81, %82 : vector<8x512xf32>
    %c0_52 = arith.constant 0 : index
    %c0_53 = arith.constant 0 : index
    %84 = vector.load %arg6[%c0_52, %c0_53] : memref<8x1xf32, #tpu.memory_space<vmem>>, vector<8x1xf32>
    %cst_54 = arith.constant 0.000000e+00 : f32
    %85 = vector.broadcast %cst_54 : f32 to vector<8x512xf32>
    %c17_i32_55 = arith.constant 17 : i32
    %86 = tpu.dynamic_rotate %83 by %c17_i32_55 dim 1 : vector<8x512xf32>, i32 -> vector<8x512xf32>
    %87 = vector.broadcast %7 : vector<1x512xf32> to vector<8x512xf32>
    %88 = arith.mulf %86, %87 : vector<8x512xf32>
    %c0_56 = arith.constant 0 : index
    %c0_57 = arith.constant 0 : index
    %c0_58 = arith.constant 0 : index
    %89 = vector.load %arg5[%c0_56, %c0_57, %c0_58] : memref<9x8x8xf32, #tpu.memory_space<vmem>>, vector<1x8x8xf32>
    %90 = vector.shape_cast %89 : vector<1x8x8xf32> to vector<8x8xf32>
    %cst_59 = arith.constant dense<0.000000e+00> : vector<8x512xf32>
    %91 = tpu.matmul %90, %88, %cst_59 {dimension_numbers = #tpu.dot_dimension_numbers<[1], [0], [0], [1], [0, 0, 1, 1], [], []>} : vector<8x8xf32>, vector<8x512xf32>, vector<8x512xf32> -> vector<8x512xf32>
    %92 = arith.addf %85, %91 : vector<8x512xf32>
    %c16_i32_60 = arith.constant 16 : i32
    %93 = tpu.dynamic_rotate %83 by %c16_i32_60 dim 1 : vector<8x512xf32>, i32 -> vector<8x512xf32>
    %94 = vector.broadcast %8 : vector<1x512xf32> to vector<8x512xf32>
    %95 = arith.mulf %93, %94 : vector<8x512xf32>
    %c1_61 = arith.constant 1 : index
    %c0_62 = arith.constant 0 : index
    %c0_63 = arith.constant 0 : index
    %96 = vector.load %arg5[%c1_61, %c0_62, %c0_63] : memref<9x8x8xf32, #tpu.memory_space<vmem>>, vector<1x8x8xf32>
    %97 = vector.shape_cast %96 : vector<1x8x8xf32> to vector<8x8xf32>
    %cst_64 = arith.constant dense<0.000000e+00> : vector<8x512xf32>
    %98 = tpu.matmul %97, %95, %cst_64 {dimension_numbers = #tpu.dot_dimension_numbers<[1], [0], [0], [1], [0, 0, 1, 1], [], []>} : vector<8x8xf32>, vector<8x512xf32>, vector<8x512xf32> -> vector<8x512xf32>
    %99 = arith.addf %92, %98 : vector<8x512xf32>
    %c15_i32_65 = arith.constant 15 : i32
    %100 = tpu.dynamic_rotate %83 by %c15_i32_65 dim 1 : vector<8x512xf32>, i32 -> vector<8x512xf32>
    %101 = vector.broadcast %9 : vector<1x512xf32> to vector<8x512xf32>
    %102 = arith.mulf %100, %101 : vector<8x512xf32>
    %c2_66 = arith.constant 2 : index
    %c0_67 = arith.constant 0 : index
    %c0_68 = arith.constant 0 : index
    %103 = vector.load %arg5[%c2_66, %c0_67, %c0_68] : memref<9x8x8xf32, #tpu.memory_space<vmem>>, vector<1x8x8xf32>
    %104 = vector.shape_cast %103 : vector<1x8x8xf32> to vector<8x8xf32>
    %cst_69 = arith.constant dense<0.000000e+00> : vector<8x512xf32>
    %105 = tpu.matmul %104, %102, %cst_69 {dimension_numbers = #tpu.dot_dimension_numbers<[1], [0], [0], [1], [0, 0, 1, 1], [], []>} : vector<8x8xf32>, vector<8x512xf32>, vector<8x512xf32> -> vector<8x512xf32>
    %106 = arith.addf %99, %105 : vector<8x512xf32>
    %c1_i32_70 = arith.constant 1 : i32
    %107 = tpu.dynamic_rotate %83 by %c1_i32_70 dim 1 : vector<8x512xf32>, i32 -> vector<8x512xf32>
    %108 = vector.broadcast %10 : vector<1x512xf32> to vector<8x512xf32>
    %109 = arith.mulf %107, %108 : vector<8x512xf32>
    %c3_71 = arith.constant 3 : index
    %c0_72 = arith.constant 0 : index
    %c0_73 = arith.constant 0 : index
    %110 = vector.load %arg5[%c3_71, %c0_72, %c0_73] : memref<9x8x8xf32, #tpu.memory_space<vmem>>, vector<1x8x8xf32>
    %111 = vector.shape_cast %110 : vector<1x8x8xf32> to vector<8x8xf32>
    %cst_74 = arith.constant dense<0.000000e+00> : vector<8x512xf32>
    %112 = tpu.matmul %111, %109, %cst_74 {dimension_numbers = #tpu.dot_dimension_numbers<[1], [0], [0], [1], [0, 0, 1, 1], [], []>} : vector<8x8xf32>, vector<8x512xf32>, vector<8x512xf32> -> vector<8x512xf32>
    %113 = arith.addf %106, %112 : vector<8x512xf32>
    %114 = vector.broadcast %11 : vector<1x512xf32> to vector<8x512xf32>
    %115 = arith.mulf %83, %114 : vector<8x512xf32>
    %c4_75 = arith.constant 4 : index
    %c0_76 = arith.constant 0 : index
    %c0_77 = arith.constant 0 : index
    %116 = vector.load %arg5[%c4_75, %c0_76, %c0_77] : memref<9x8x8xf32, #tpu.memory_space<vmem>>, vector<1x8x8xf32>
    %117 = vector.shape_cast %116 : vector<1x8x8xf32> to vector<8x8xf32>
    %cst_78 = arith.constant dense<0.000000e+00> : vector<8x512xf32>
    %118 = tpu.matmul %117, %115, %cst_78 {dimension_numbers = #tpu.dot_dimension_numbers<[1], [0], [0], [1], [0, 0, 1, 1], [], []>} : vector<8x8xf32>, vector<8x512xf32>, vector<8x512xf32> -> vector<8x512xf32>
    %119 = arith.addf %113, %118 : vector<8x512xf32>
    %c511_i32_79 = arith.constant 511 : i32
    %120 = tpu.dynamic_rotate %83 by %c511_i32_79 dim 1 : vector<8x512xf32>, i32 -> vector<8x512xf32>
    %121 = vector.broadcast %12 : vector<1x512xf32> to vector<8x512xf32>
    %122 = arith.mulf %120, %121 : vector<8x512xf32>
    %c5_80 = arith.constant 5 : index
    %c0_81 = arith.constant 0 : index
    %c0_82 = arith.constant 0 : index
    %123 = vector.load %arg5[%c5_80, %c0_81, %c0_82] : memref<9x8x8xf32, #tpu.memory_space<vmem>>, vector<1x8x8xf32>
    %124 = vector.shape_cast %123 : vector<1x8x8xf32> to vector<8x8xf32>
    %cst_83 = arith.constant dense<0.000000e+00> : vector<8x512xf32>
    %125 = tpu.matmul %124, %122, %cst_83 {dimension_numbers = #tpu.dot_dimension_numbers<[1], [0], [0], [1], [0, 0, 1, 1], [], []>} : vector<8x8xf32>, vector<8x512xf32>, vector<8x512xf32> -> vector<8x512xf32>
    %126 = arith.addf %119, %125 : vector<8x512xf32>
    %c497_i32_84 = arith.constant 497 : i32
    %127 = tpu.dynamic_rotate %83 by %c497_i32_84 dim 1 : vector<8x512xf32>, i32 -> vector<8x512xf32>
    %128 = vector.broadcast %13 : vector<1x512xf32> to vector<8x512xf32>
    %129 = arith.mulf %127, %128 : vector<8x512xf32>
    %c6_85 = arith.constant 6 : index
    %c0_86 = arith.constant 0 : index
    %c0_87 = arith.constant 0 : index
    %130 = vector.load %arg5[%c6_85, %c0_86, %c0_87] : memref<9x8x8xf32, #tpu.memory_space<vmem>>, vector<1x8x8xf32>
    %131 = vector.shape_cast %130 : vector<1x8x8xf32> to vector<8x8xf32>
    %cst_88 = arith.constant dense<0.000000e+00> : vector<8x512xf32>
    %132 = tpu.matmul %131, %129, %cst_88 {dimension_numbers = #tpu.dot_dimension_numbers<[1], [0], [0], [1], [0, 0, 1, 1], [], []>} : vector<8x8xf32>, vector<8x512xf32>, vector<8x512xf32> -> vector<8x512xf32>
    %133 = arith.addf %126, %132 : vector<8x512xf32>
    %c496_i32_89 = arith.constant 496 : i32
    %134 = tpu.dynamic_rotate %83 by %c496_i32_89 dim 1 : vector<8x512xf32>, i32 -> vector<8x512xf32>
    %135 = vector.broadcast %14 : vector<1x512xf32> to vector<8x512xf32>
    %136 = arith.mulf %134, %135 : vector<8x512xf32>
    %c7_90 = arith.constant 7 : index
    %c0_91 = arith.constant 0 : index
    %c0_92 = arith.constant 0 : index
    %137 = vector.load %arg5[%c7_90, %c0_91, %c0_92] : memref<9x8x8xf32, #tpu.memory_space<vmem>>, vector<1x8x8xf32>
    %138 = vector.shape_cast %137 : vector<1x8x8xf32> to vector<8x8xf32>
    %cst_93 = arith.constant dense<0.000000e+00> : vector<8x512xf32>
    %139 = tpu.matmul %138, %136, %cst_93 {dimension_numbers = #tpu.dot_dimension_numbers<[1], [0], [0], [1], [0, 0, 1, 1], [], []>} : vector<8x8xf32>, vector<8x512xf32>, vector<8x512xf32> -> vector<8x512xf32>
    %140 = arith.addf %133, %139 : vector<8x512xf32>
    %c495_i32_94 = arith.constant 495 : i32
    %141 = tpu.dynamic_rotate %83 by %c495_i32_94 dim 1 : vector<8x512xf32>, i32 -> vector<8x512xf32>
    %142 = vector.broadcast %15 : vector<1x512xf32> to vector<8x512xf32>
    %143 = arith.mulf %141, %142 : vector<8x512xf32>
    %c8_95 = arith.constant 8 : index
    %c0_96 = arith.constant 0 : index
    %c0_97 = arith.constant 0 : index
    %144 = vector.load %arg5[%c8_95, %c0_96, %c0_97] : memref<9x8x8xf32, #tpu.memory_space<vmem>>, vector<1x8x8xf32>
    %145 = vector.shape_cast %144 : vector<1x8x8xf32> to vector<8x8xf32>
    %cst_98 = arith.constant dense<0.000000e+00> : vector<8x512xf32>
    %146 = tpu.matmul %145, %143, %cst_98 {dimension_numbers = #tpu.dot_dimension_numbers<[1], [0], [0], [1], [0, 0, 1, 1], [], []>} : vector<8x8xf32>, vector<8x512xf32>, vector<8x512xf32> -> vector<8x512xf32>
    %147 = arith.addf %140, %146 : vector<8x512xf32>
    %148 = vector.broadcast %84 : vector<8x1xf32> to vector<8x512xf32>
    %149 = arith.addf %147, %148 : vector<8x512xf32>
    %cst_99 = arith.constant 0.000000e+00 : f32
    %150 = vector.broadcast %cst_99 : f32 to vector<8x512xf32>
    %151 = arith.maximumf %149, %150 : vector<8x512xf32>
    %152 = vector.extract_strided_slice %151 {offsets = [0, 0], sizes = [8, 256], strides = [1, 1]} : vector<8x512xf32> to vector<8x256xf32>
    %c0_100 = arith.constant 0 : index
    %c0_101 = arith.constant 0 : index
    %153 = vector.load %arg7[%c0_100, %c0_101] : memref<256x576xf32, #tpu.memory_space<vmem>>, vector<256x576xf32>
    %cst_102 = arith.constant dense<0.000000e+00> : vector<8x576xf32>
    %154 = tpu.matmul %152, %153, %cst_102 {dimension_numbers = #tpu.dot_dimension_numbers<[1], [0], [0], [1], [0, 0, 1, 1], [], []>} : vector<8x256xf32>, vector<256x576xf32>, vector<8x576xf32> -> vector<8x576xf32>
    %c0_103 = arith.constant 0 : index
    %c0_104 = arith.constant 0 : index
    %c0_105 = arith.constant 0 : index
    %c0_106 = arith.constant 0 : index
    %155 = vector.load %arg8[%c0_103, %c0_104, %c0_105, %c0_106] : memref<1x2x8x576xf32, #tpu.memory_space<vmem>>, vector<1x1x8x576xf32>
    %156 = vector.shape_cast %155 : vector<1x1x8x576xf32> to vector<8x576xf32>
    %157 = vector.shape_cast %154 : vector<8x576xf32> to vector<1x1x8x576xf32>
    tpu.vector_store %arg8[%c0_103, %c0_104, %c0_105, %c0_106], %157 {strides = array<i32>} : memref<1x2x8x576xf32, #tpu.memory_space<vmem>>, vector<1x1x8x576xf32>,
    %158 = vector.extract_strided_slice %151 {offsets = [0, 256], sizes = [8, 256], strides = [1, 1]} : vector<8x512xf32> to vector<8x256xf32>
    %c0_107 = arith.constant 0 : index
    %c0_108 = arith.constant 0 : index
    %159 = vector.load %arg7[%c0_107, %c0_108] : memref<256x576xf32, #tpu.memory_space<vmem>>, vector<256x576xf32>
    %cst_109 = arith.constant dense<0.000000e+00> : vector<8x576xf32>
    %160 = tpu.matmul %158, %159, %cst_109 {dimension_numbers = #tpu.dot_dimension_numbers<[1], [0], [0], [1], [0, 0, 1, 1], [], []>} : vector<8x256xf32>, vector<256x576xf32>, vector<8x576xf32> -> vector<8x576xf32>
    %c0_110 = arith.constant 0 : index
    %c1_111 = arith.constant 1 : index
    %c0_112 = arith.constant 0 : index
    %c0_113 = arith.constant 0 : index
    %161 = vector.load %arg8[%c0_110, %c1_111, %c0_112, %c0_113] : memref<1x2x8x576xf32, #tpu.memory_space<vmem>>, vector<1x1x8x576xf32>
    %162 = vector.shape_cast %161 : vector<1x1x8x576xf32> to vector<8x576xf32>
    %163 = vector.shape_cast %160 : vector<8x576xf32> to vector<1x1x8x576xf32>
    tpu.vector_store %arg8[%c0_110, %c1_111, %c0_112, %c0_113], %163 {strides = array<i32>} : memref<1x2x8x576xf32, #tpu.memory_space<vmem>>, vector<1x1x8x576xf32>,
    return
  }
  func.func @transform_0(%arg0: i32) -> (i32, i32, i32, i32) {
    %c0_i32 = arith.constant 0 : i32
    %c0_i32_0 = arith.constant 0 : i32
    %c0_i32_1 = arith.constant 0 : i32
    %c0_i32_2 = arith.constant 0 : i32
    return %arg0, %c0_i32, %c0_i32_0, %c0_i32_1 : i32, i32, i32, i32
  }
  func.func @transform_1(%arg0: i32) -> (i32, i32) {
    %c0_i32 = arith.constant 0 : i32
    %c0_i32_0 = arith.constant 0 : i32
    %c0_i32_1 = arith.constant 0 : i32
    return %c0_i32, %c0_i32_0 : i32, i32
  }
  func.func @transform_2(%arg0: i32) -> (i32, i32, i32) {
    %c0_i32 = arith.constant 0 : i32
    %c0_i32_0 = arith.constant 0 : i32
    %c0_i32_1 = arith.constant 0 : i32
    %c0_i32_2 = arith.constant 0 : i32
    return %c0_i32, %c0_i32_0, %c0_i32_1 : i32, i32, i32
  }
  func.func @transform_3(%arg0: i32) -> (i32, i32) {
    %c0_i32 = arith.constant 0 : i32
    %c0_i32_0 = arith.constant 0 : i32
    %c0_i32_1 = arith.constant 0 : i32
    return %c0_i32, %c0_i32_0 : i32, i32
  }
  func.func @transform_4(%arg0: i32) -> (i32, i32, i32) {
    %c0_i32 = arith.constant 0 : i32
    %c0_i32_0 = arith.constant 0 : i32
    %c0_i32_1 = arith.constant 0 : i32
    %c0_i32_2 = arith.constant 0 : i32
    return %c0_i32, %c0_i32_0, %c0_i32_1 : i32, i32, i32
  }
  func.func @transform_5(%arg0: i32) -> (i32, i32) {
    %c0_i32 = arith.constant 0 : i32
    %c0_i32_0 = arith.constant 0 : i32
    %c0_i32_1 = arith.constant 0 : i32
    return %c0_i32, %c0_i32_0 : i32, i32
  }
  func.func @transform_6(%arg0: i32) -> (i32, i32) {
    %c0_i32 = arith.constant 0 : i32
    %c0_i32_0 = arith.constant 0 : i32
    %c0_i32_1 = arith.constant 0 : i32
    return %c0_i32, %c0_i32_0 : i32, i32
  }
  func.func @transform_7(%arg0: i32) -> (i32, i32, i32, i32) {
    %c0_i32 = arith.constant 0 : i32
    %c0_i32_0 = arith.constant 0 : i32
    %c0_i32_1 = arith.constant 0 : i32
    %c0_i32_2 = arith.constant 0 : i32
    return %arg0, %c0_i32, %c0_i32_0, %c0_i32_1 : i32, i32, i32, i32
  }
}

</mosaic_0001>

<llo_original>
// kernel: conv_block_msnnet_forward.1
$region0: #{conv_block_msnnet_forward.1}
  #allocation0 [shape = 'u32[]', space=smem, size = 0x4, offset = 0x4, fixed_abs, tag = 'smem constant byte address 0x4 - core index']
  #allocation1 [shape = 'u32[72,128]{1,0:T(1,128)}', space=vmem, size = 0x9000, scoped, tag = 'internal scratch']
  %s0 = inlined_call_operand.vmem [shape: f32[1,2,4,256], index: 0, kind: input, shape index: {}]
  %s1 = inlined_call_operand.vmem [shape: f32[9,512], index: 1, kind: input, shape index: {}]
  %s2 = inlined_call_operand.vmem [shape: f32[9,8,4], index: 2, kind: input, shape index: {}]
  %s3 = inlined_call_operand.vmem [shape: f32[8,1], index: 3, kind: input, shape index: {}]
  %s4 = inlined_call_operand.vmem [shape: f32[9,8,8], index: 4, kind: input, shape index: {}]
  %s5 = inlined_call_operand.vmem [shape: f32[8,1], index: 5, kind: input, shape index: {}]
  %s6 = inlined_call_operand.hbm [shape: f32[256,576], index: 6, kind: input, shape index: {}]
  %s7 = inlined_call_operand.vmem [shape: f32[1,2,8,576], index: 7, kind: output, shape index: {}]
  %s8 = sld [smem:[#allocation0]]
  $region42: #{conv_block_msnnet_forward.1} parent=0
    _
  %s10 = ssub.s32 1, %s8
  %s11 = scalar_select 0, %s10, %s8
  $region1: #{conv_block_msnnet_forward.1} parent=0
    #allocation2 [shape = 'u8[655360]{0}', space=vmem, size = 0xa0000, scoped, tag = 'input window, operand 6, single buffered']
    #allocation3 [shape = 's32[1]{0}', space=sflag, size = 0x4, scoped, tag = 'scoped memory for conv_block_msnnet_forward.1']
    %12 = vsyncpa [#allocation3], 0
    // Predicated region
    $region2: #{conv_block_msnnet_forward.1} parent=1 // pred_check
      _
    $region3: #{conv_block_msnnet_forward.1} parent=1 // pred_check_branch
      %14 = sbr.rel (0) target = $region5
    $region4: #{conv_block_msnnet_forward.1} parent=1 // pred_region
      _
    $region5: #{conv_block_msnnet_forward.1} parent=1 // pred_fallthru
      _
    // Predicated region
    $region6: #{conv_block_msnnet_forward.1} parent=1 // pred_check
      _
    $region7: #{conv_block_msnnet_forward.1} parent=1 // pred_check_branch
      %16 = sbr.rel (0) target = $region9
    $region8: #{conv_block_msnnet_forward.1} parent=1 // pred_region
      _
    $region9: #{conv_block_msnnet_forward.1} parent=1 // pred_fallthru
      _
    // Predicated region
    $region10: #{conv_block_msnnet_forward.1} parent=1 // pred_check
      _
    $region11: #{conv_block_msnnet_forward.1} parent=1 // pred_check_branch
      %18 = sbr.rel (0) target = $region13
    $region12: #{conv_block_msnnet_forward.1} parent=1 // pred_region
      _
    $region13: #{conv_block_msnnet_forward.1} parent=1 // pred_fallthru
      _
    // Predicated region
    $region14: #{conv_block_msnnet_forward.1} parent=1 // pred_check
      _
    $region15: #{conv_block_msnnet_forward.1} parent=1 // pred_check_branch
      %20 = sbr.rel (0) target = $region17
    $region16: #{conv_block_msnnet_forward.1} parent=1 // pred_region
      _
    $region17: #{conv_block_msnnet_forward.1} parent=1 // pred_fallthru
      _
    // Predicated region
    $region18: #{conv_block_msnnet_forward.1} parent=1 // pred_check
      _
    $region19: #{conv_block_msnnet_forward.1} parent=1 // pred_check_branch
      %22 = sbr.rel (0) target = $region21
    $region20: #{conv_block_msnnet_forward.1} parent=1 // pred_region
      _
    $region21: #{conv_block_msnnet_forward.1} parent=1 // pred_fallthru
      _
    // Predicated region
    $region22: #{conv_block_msnnet_forward.1} parent=1 // pred_check
      _
    $region23: #{conv_block_msnnet_forward.1} parent=1 // pred_check_branch
      %24 = sbr.rel (0) target = $region25
    $region24: #{conv_block_msnnet_forward.1} parent=1 // pred_region
      _
    $region25: #{conv_block_msnnet_forward.1} parent=1 // pred_fallthru
      _
    // Predicated region
    $region26: #{conv_block_msnnet_forward.1} parent=1 // pred_check
      _
    $region27: #{conv_block_msnnet_forward.1} parent=1 // pred_check_branch
      %26 = sbr.rel (0) target = $region29
    $region28: #{conv_block_msnnet_forward.1} parent=1 // pred_region
      %28 = vsyncadd [#allocation3], 0
      %s29 = sshll.u32 %s6, 4
      %s30 = int_to_ptr.hbm [resolvable:$true] %s29
      %s31 = sshll.u32 [#allocation2], 4
      %s32 = int_to_ptr.vmem [resolvable:$true] %s31
      %37 = dma.hbm_to_vmem [thread:$0]  %s30, 20480, %s32, [#allocation3], 640, 640, 40
    $region29: #{conv_block_msnnet_forward.1} parent=1 // pred_fallthru
      _
    // Predicated region
    $region30: #{conv_block_msnnet_forward.1} parent=1 // pred_check
      _
    $region31: #{conv_block_msnnet_forward.1} parent=1 // pred_check_branch
      %39 = sbr.rel (0) target = $region33
    $region32: #{conv_block_msnnet_forward.1} parent=1 // pred_region
      %41 = dma.done [#allocation3], 20480
    $region33: #{conv_block_msnnet_forward.1} parent=1 // pred_fallthru
      _
    %v42 = vld [vmem:[%s0] sm:$0xff]
    %v43 = vld [vmem:[%s0 + $0x8] sm:$0xff]
    %45 = vst [vmem:[#allocation1] ss:$2 sm:$0xff] %v42
    %v46 = vld.sshfl [vmem:[#allocation1] sm:$0xff pattern:$0x75316420]
    %v47 = vld.sshfl [vmem:[#allocation1 + $0x8] sm:$0xff pattern:$0x75316420]
    %51 = vst [vmem:[#allocation1] ss:$2 sm:$0xff] %v43
    %v52 = vld.sshfl [vmem:[#allocation1] sm:$0xff pattern:$0x75316420]
    %v53 = vld.sshfl [vmem:[#allocation1 + $0x8] sm:$0xff pattern:$0x75316420]
    %v56 = vld [vmem:[%s1] ss:$8 sm:$0xf]
    %s57 = scalar_lea.vmem %s1, 1
    %v58 = vld [vmem:[%s57] ss:$8 sm:$0xf]
    %s59 = scalar_lea.vmem %s1, 2
    %v60 = vld [vmem:[%s59] ss:$8 sm:$0xf]
    %s61 = scalar_lea.vmem %s1, 3
    %v62 = vld [vmem:[%s61] ss:$8 sm:$0xf]
    %s63 = scalar_lea.vmem %s1, 4
    %v64 = vld [vmem:[%s63] ss:$8 sm:$0xf]
    %s65 = scalar_lea.vmem %s1, 5
    %v66 = vld [vmem:[%s65] ss:$8 sm:$0xf]
    %s67 = scalar_lea.vmem %s1, 6
    %v68 = vld [vmem:[%s67] ss:$8 sm:$0xf]
    %s69 = scalar_lea.vmem %s1, 7
    %v70 = vld [vmem:[%s69] ss:$8 sm:$0xf]
    %s71 = scalar_lea.vmem %s1, 32
    %v72 = vld [vmem:[%s71] ss:$8 sm:$0xf]
    %v73 = vld [vmem:[%s3] sm:$0xff]
    %74 = vrot.lane.b32.xlu0 %v46, 17
    %v75 = vpop.permute.xlu0 %74
    %76 = vrot.lane.b32.xlu0 %v47, 17
    %v77 = vpop.permute.xlu0 %76
    %78 = vrot.lane.b32.xlu0 %v52, 17
    %v79 = vpop.permute.xlu0 %78
    %80 = vrot.lane.b32.xlu0 %v53, 17
    %v81 = vpop.permute.xlu0 %80
    %v82 = vlaneseq
    %v83 = vand.u32 %v82, 127
    %vm84 = vcmp.lt.s32.totalorder %v83, 17
    %v85 = vsel %vm84, %v79, %v81
    %v86 = vsel %vm84, %v77, %v79
    %v87 = vsel %vm84, %v75, %v77
    %v88 = vsel %vm84, %v81, %v75
    %v90 = vperm.slane %v56, 0
    %v91 = vperm.slane %v56, 1
    %v92 = vperm.slane %v56, 2
    %v93 = vperm.slane %v56, 3
    %v98 = vmul.f32 %v88, %v90
    %v99 = vmul.f32 %v87, %v91
    %v100 = vmul.f32 %v86, %v92
    %v101 = vmul.f32 %v85, %v93
    %v102 = vld [vmem:[%s2] sm:$0xff]
    %103 = vrot.lane.b32.xlu0 %v46, 16
    %v104 = vpop.permute.xlu0 %103
    %105 = vrot.lane.b32.xlu0 %v47, 16
    %v106 = vpop.permute.xlu0 %105
    %107 = vrot.lane.b32.xlu0 %v52, 16
    %v108 = vpop.permute.xlu0 %107
    %109 = vrot.lane.b32.xlu0 %v53, 16
    %v110 = vpop.permute.xlu0 %109
    %vm111 = vcmp.lt.s32.totalorder %v83, 16
    %v112 = vsel %vm111, %v108, %v110
    %v113 = vsel %vm111, %v106, %v108
    %v114 = vsel %vm111, %v104, %v106
    %v115 = vsel %vm111, %v110, %v104
    %v117 = vperm.slane %v58, 0
    %v118 = vperm.slane %v58, 1
    %v119 = vperm.slane %v58, 2
    %v120 = vperm.slane %v58, 3
    %v125 = vmul.f32 %v115, %v117
    %v126 = vmul.f32 %v114, %v118
    %v127 = vmul.f32 %v113, %v119
    %v128 = vmul.f32 %v112, %v120
    %s129 = scalar_lea.vmem %s2, 8
    %v130 = vld [vmem:[%s129] sm:$0xff]
    %vm131 = vcmask 31744
    %v133 = vsel %vm131, %v130, 0
    %vm135 = vcmask 1043456
    %v137 = vsel %vm135, %v125, 0
    %v140 = vsel %vm135, %v126, 0
    %v143 = vsel %vm135, %v127, 0
    %v146 = vsel %vm135, %v128, 0
    %148 = vmatpush.msra.mxu0 0.0
    %149 = vmatpush.msra.mxu0 0.0
    %150 = vmatpush.msra.mxu0 0.0
    %151 = vmatpush.msra.mxu0 0.0
    %152 = vmatpush.msra.mxu0 0.0
    %153 = vmatpush.msra.mxu0 0.0
    %154 = vmatpush.msra.mxu0 0.0
    %155 = vmatpush.msra.mxu0 0.0
    %156 = vmatpush.msra.mxu0 0.0
    %157 = vmatpush.msra.mxu0 0.0
    %158 = vmatpush.msra.mxu0 0.0
    %159 = vmatpush.msra.mxu0 0.0
    %160 = vmatpush.msra.mxu0 0.0
    %161 = vmatpush.msra.mxu0 0.0
    %162 = vmatpush.msra.mxu0 0.0
    %163 = vmatpush.msra.mxu0 %v137
    %164 = vmatmul.f32.gmra.mxu0 %v133
    %v165 = vpop.f32.mrf.mxu0
    %v166 = vadd.f32 0.0, %v165
    %167 = vdwg.mxu0
    %168 = vmatpush.msra.mxu0 0.0
    %169 = vmatpush.msra.mxu0 0.0
    %170 = vmatpush.msra.mxu0 0.0
    %171 = vmatpush.msra.mxu0 0.0
    %172 = vmatpush.msra.mxu0 0.0
    %173 = vmatpush.msra.mxu0 0.0
    %174 = vmatpush.msra.mxu0 0.0
    %175 = vmatpush.msra.mxu0 0.0
    %176 = vmatpush.msra.mxu0 0.0
    %177 = vmatpush.msra.mxu0 0.0
    %178 = vmatpush.msra.mxu0 0.0
    %179 = vmatpush.msra.mxu0 0.0
    %180 = vmatpush.msra.mxu0 0.0
    %181 = vmatpush.msra.mxu0 0.0
    %182 = vmatpush.msra.mxu0 0.0
    %183 = vmatpush.msra.mxu0 %v140
    %184 = vmatmul.f32.gmra.mxu0 %v133
    %v185 = vpop.f32.mrf.mxu0
    %v186 = vadd.f32 0.0, %v185
    %187 = vdwg.mxu0
    %188 = vmatpush.msra.mxu0 0.0
    %189 = vmatpush.msra.mxu0 0.0
    %190 = vmatpush.msra.mxu0 0.0
    %191 = vmatpush.msra.mxu0 0.0
    %192 = vmatpush.msra.mxu0 0.0
    %193 = vmatpush.msra.mxu0 0.0
    %194 = vmatpush.msra.mxu0 0.0
    %195 = vmatpush.msra.mxu0 0.0
    %196 = vmatpush.msra.mxu0 0.0
    %197 = vmatpush.msra.mxu0 0.0
    %198 = vmatpush.msra.mxu0 0.0
    %199 = vmatpush.msra.mxu0 0.0
    %200 = vmatpush.msra.mxu0 0.0
    %201 = vmatpush.msra.mxu0 0.0
    %202 = vmatpush.msra.mxu0 0.0
    %203 = vmatpush.msra.mxu0 %v143
    %204 = vmatmul.f32.gmra.mxu0 %v133
    %v205 = vpop.f32.mrf.mxu0
    %v206 = vadd.f32 0.0, %v205
    %207 = vdwg.mxu0
    %208 = vmatpush.msra.mxu0 0.0
    %209 = vmatpush.msra.mxu0 0.0
    %210 = vmatpush.msra.mxu0 0.0
    %211 = vmatpush.msra.mxu0 0.0
    %212 = vmatpush.msra.mxu0 0.0
    %213 = vmatpush.msra.mxu0 0.0
    %214 = vmatpush.msra.mxu0 0.0
    %215 = vmatpush.msra.mxu0 0.0
    %216 = vmatpush.msra.mxu0 0.0
    %217 = vmatpush.msra.mxu0 0.0
    %218 = vmatpush.msra.mxu0 0.0
    %219 = vmatpush.msra.mxu0 0.0
    %220 = vmatpush.msra.mxu0 0.0
    %221 = vmatpush.msra.mxu0 0.0
    %222 = vmatpush.msra.mxu0 0.0
    %223 = vmatpush.msra.mxu0 %v146
    %224 = vmatmul.f32.gmra.mxu0 %v133
    %v225 = vpop.f32.mrf.mxu0
    %v226 = vadd.f32 0.0, %v225
    %227 = vdwg.mxu0
    %v229 = vsel %vm131, %v102, 0
    %v232 = vsel %vm135, %v98, 0
    %v235 = vsel %vm135, %v99, 0
    %v238 = vsel %vm135, %v100, 0
    %v241 = vsel %vm135, %v101, 0
    %243 = vmatpush.msra.mxu0 0.0
    %244 = vmatpush.msra.mxu0 0.0
    %245 = vmatpush.msra.mxu0 0.0
    %246 = vmatpush.msra.mxu0 0.0
    %247 = vmatpush.msra.mxu0 0.0
    %248 = vmatpush.msra.mxu0 0.0
    %249 = vmatpush.msra.mxu0 0.0
    %250 = vmatpush.msra.mxu0 0.0
    %251 = vmatpush.msra.mxu0 0.0
    %252 = vmatpush.msra.mxu0 0.0
    %253 = vmatpush.msra.mxu0 0.0
    %254 = vmatpush.msra.mxu0 0.0
    %255 = vmatpush.msra.mxu0 0.0
    %256 = vmatpush.msra.mxu0 0.0
    %257 = vmatpush.msra.mxu0 0.0
    %258 = vmatpush.msra.mxu0 %v232
    %259 = vmatmul.f32.gmra.mxu0 %v229
    %v260 = vpop.f32.mrf.mxu0
    %v261 = vadd.f32 %v166, %v260
    %262 = vdwg.mxu0
    %263 = vmatpush.msra.mxu0 0.0
    %264 = vmatpush.msra.mxu0 0.0
    %265 = vmatpush.msra.mxu0 0.0
    %266 = vmatpush.msra.mxu0 0.0
    %267 = vmatpush.msra.mxu0 0.0
    %268 = vmatpush.msra.mxu0 0.0
    %269 = vmatpush.msra.mxu0 0.0
    %270 = vmatpush.msra.mxu0 0.0
    %271 = vmatpush.msra.mxu0 0.0
    %272 = vmatpush.msra.mxu0 0.0
    %273 = vmatpush.msra.mxu0 0.0
    %274 = vmatpush.msra.mxu0 0.0
    %275 = vmatpush.msra.mxu0 0.0
    %276 = vmatpush.msra.mxu0 0.0
    %277 = vmatpush.msra.mxu0 0.0
    %278 = vmatpush.msra.mxu0 %v235
    %279 = vmatmul.f32.gmra.mxu0 %v229
    %v280 = vpop.f32.mrf.mxu0
    %v281 = vadd.f32 %v186, %v280
    %282 = vdwg.mxu0
    %283 = vmatpush.msra.mxu0 0.0
    %284 = vmatpush.msra.mxu0 0.0
    %285 = vmatpush.msra.mxu0 0.0
    %286 = vmatpush.msra.mxu0 0.0
    %287 = vmatpush.msra.mxu0 0.0
    %288 = vmatpush.msra.mxu0 0.0
    %289 = vmatpush.msra.mxu0 0.0
    %290 = vmatpush.msra.mxu0 0.0
    %291 = vmatpush.msra.mxu0 0.0
    %292 = vmatpush.msra.mxu0 0.0
    %293 = vmatpush.msra.mxu0 0.0
    %294 = vmatpush.msra.mxu0 0.0
    %295 = vmatpush.msra.mxu0 0.0
    %296 = vmatpush.msra.mxu0 0.0
    %297 = vmatpush.msra.mxu0 0.0
    %298 = vmatpush.msra.mxu0 %v238
    %299 = vmatmul.f32.gmra.mxu0 %v229
    %v300 = vpop.f32.mrf.mxu0
    %v301 = vadd.f32 %v206, %v300
    %302 = vdwg.mxu0
    %303 = vmatpush.msra.mxu0 0.0
    %304 = vmatpush.msra.mxu0 0.0
    %305 = vmatpush.msra.mxu0 0.0
    %306 = vmatpush.msra.mxu0 0.0
    %307 = vmatpush.msra.mxu0 0.0
    %308 = vmatpush.msra.mxu0 0.0
    %309 = vmatpush.msra.mxu0 0.0
    %310 = vmatpush.msra.mxu0 0.0
    %311 = vmatpush.msra.mxu0 0.0
    %312 = vmatpush.msra.mxu0 0.0
    %313 = vmatpush.msra.mxu0 0.0
    %314 = vmatpush.msra.mxu0 0.0
    %315 = vmatpush.msra.mxu0 0.0
    %316 = vmatpush.msra.mxu0 0.0
    %317 = vmatpush.msra.mxu0 0.0
    %318 = vmatpush.msra.mxu0 %v241
    %319 = vmatmul.f32.gmra.mxu0 %v229
    %v320 = vpop.f32.mrf.mxu0
    %v321 = vadd.f32 %v226, %v320
    %322 = vdwg.mxu0
    %323 = vrot.lane.b32.xlu0 %v46, 15
    %v324 = vpop.permute.xlu0 %323
    %325 = vrot.lane.b32.xlu0 %v47, 15
    %v326 = vpop.permute.xlu0 %325
    %327 = vrot.lane.b32.xlu0 %v52, 15
    %v328 = vpop.permute.xlu0 %327
    %329 = vrot.lane.b32.xlu0 %v53, 15
    %v330 = vpop.permute.xlu0 %329
    %vm331 = vcmp.lt.s32.totalorder %v83, 15
    %v332 = vsel %vm331, %v328, %v330
    %v333 = vsel %vm331, %v326, %v328
    %v334 = vsel %vm331, %v324, %v326
    %v335 = vsel %vm331, %v330, %v324
    %v337 = vperm.slane %v60, 0
    %v338 = vperm.slane %v60, 1
    %v339 = vperm.slane %v60, 2
    %v340 = vperm.slane %v60, 3
    %v345 = vmul.f32 %v335, %v337
    %v346 = vmul.f32 %v334, %v338
    %v347 = vmul.f32 %v333, %v339
    %v348 = vmul.f32 %v332, %v340
    %s349 = scalar_lea.vmem %s2, 16
    %v350 = vld [vmem:[%s349] sm:$0xff]
    %v352 = vsel %vm131, %v350, 0
    %v355 = vsel %vm135, %v345, 0
    %v358 = vsel %vm135, %v346, 0
    %v361 = vsel %vm135, %v347, 0
    %v364 = vsel %vm135, %v348, 0
    %366 = vmatpush.msra.mxu0 0.0
    %367 = vmatpush.msra.mxu0 0.0
    %368 = vmatpush.msra.mxu0 0.0
    %369 = vmatpush.msra.mxu0 0.0
    %370 = vmatpush.msra.mxu0 0.0
    %371 = vmatpush.msra.mxu0 0.0
    %372 = vmatpush.msra.mxu0 0.0
    %373 = vmatpush.msra.mxu0 0.0
    %374 = vmatpush.msra.mxu0 0.0
    %375 = vmatpush.msra.mxu0 0.0
    %376 = vmatpush.msra.mxu0 0.0
    %377 = vmatpush.msra.mxu0 0.0
    %378 = vmatpush.msra.mxu0 0.0
    %379 = vmatpush.msra.mxu0 0.0
    %380 = vmatpush.msra.mxu0 0.0
    %381 = vmatpush.msra.mxu0 %v355
    %382 = vmatmul.f32.gmra.mxu0 %v352
    %v383 = vpop.f32.mrf.mxu0
    %v384 = vadd.f32 0.0, %v383
    %385 = vdwg.mxu0
    %386 = vmatpush.msra.mxu0 0.0
    %387 = vmatpush.msra.mxu0 0.0
    %388 = vmatpush.msra.mxu0 0.0
    %389 = vmatpush.msra.mxu0 0.0
    %390 = vmatpush.msra.mxu0 0.0
    %391 = vmatpush.msra.mxu0 0.0
    %392 = vmatpush.msra.mxu0 0.0
    %393 = vmatpush.msra.mxu0 0.0
    %394 = vmatpush.msra.mxu0 0.0
    %395 = vmatpush.msra.mxu0 0.0
    %396 = vmatpush.msra.mxu0 0.0
    %397 = vmatpush.msra.mxu0 0.0
    %398 = vmatpush.msra.mxu0 0.0
    %399 = vmatpush.msra.mxu0 0.0
    %400 = vmatpush.msra.mxu0 0.0
    %401 = vmatpush.msra.mxu0 %v358
    %402 = vmatmul.f32.gmra.mxu0 %v352
    %v403 = vpop.f32.mrf.mxu0
    %v404 = vadd.f32 0.0, %v403
    %405 = vdwg.mxu0
    %406 = vmatpush.msra.mxu0 0.0
    %407 = vmatpush.msra.mxu0 0.0
    %408 = vmatpush.msra.mxu0 0.0
    %409 = vmatpush.msra.mxu0 0.0
    %410 = vmatpush.msra.mxu0 0.0
    %411 = vmatpush.msra.mxu0 0.0
    %412 = vmatpush.msra.mxu0 0.0
    %413 = vmatpush.msra.mxu0 0.0
    %414 = vmatpush.msra.mxu0 0.0
    %415 = vmatpush.msra.mxu0 0.0
    %416 = vmatpush.msra.mxu0 0.0
    %417 = vmatpush.msra.mxu0 0.0
    %418 = vmatpush.msra.mxu0 0.0
    %419 = vmatpush.msra.mxu0 0.0
    %420 = vmatpush.msra.mxu0 0.0
    %421 = vmatpush.msra.mxu0 %v361
    %422 = vmatmul.f32.gmra.mxu0 %v352
    %v423 = vpop.f32.mrf.mxu0
    %v424 = vadd.f32 0.0, %v423
    %425 = vdwg.mxu0
    %426 = vmatpush.msra.mxu0 0.0
    %427 = vmatpush.msra.mxu0 0.0
    %428 = vmatpush.msra.mxu0 0.0
    %429 = vmatpush.msra.mxu0 0.0
    %430 = vmatpush.msra.mxu0 0.0
    %431 = vmatpush.msra.mxu0 0.0
    %432 = vmatpush.msra.mxu0 0.0
    %433 = vmatpush.msra.mxu0 0.0
    %434 = vmatpush.msra.mxu0 0.0
    %435 = vmatpush.msra.mxu0 0.0
    %436 = vmatpush.msra.mxu0 0.0
    %437 = vmatpush.msra.mxu0 0.0
    %438 = vmatpush.msra.mxu0 0.0
    %439 = vmatpush.msra.mxu0 0.0
    %440 = vmatpush.msra.mxu0 0.0
    %441 = vmatpush.msra.mxu0 %v364
    %442 = vmatmul.f32.gmra.mxu0 %v352
    %v443 = vpop.f32.mrf.mxu0
    %v444 = vadd.f32 0.0, %v443
    %445 = vdwg.mxu0
    %v446 = vadd.f32 %v261, %v384
    %v447 = vadd.f32 %v281, %v404
    %v448 = vadd.f32 %v301, %v424
    %v449 = vadd.f32 %v321, %v444
    %450 = vrot.lane.b32.xlu0 %v46, 1
    %v451 = vpop.permute.xlu0 %450
    %452 = vrot.lane.b32.xlu0 %v47, 1
    %v453 = vpop.permute.xlu0 %452
    %454 = vrot.lane.b32.xlu0 %v52, 1
    %v455 = vpop.permute.xlu0 %454
    %456 = vrot.lane.b32.xlu0 %v53, 1
    %v457 = vpop.permute.xlu0 %456
    %vm458 = vcmp.lt.s32.totalorder %v83, 1
    %v459 = vsel %vm458, %v455, %v457
    %v460 = vsel %vm458, %v453, %v455
    %v461 = vsel %vm458, %v451, %v453
    %v462 = vsel %vm458, %v457, %v451
    %v464 = vperm.slane %v62, 0
    %v465 = vperm.slane %v62, 1
    %v466 = vperm.slane %v62, 2
    %v467 = vperm.slane %v62, 3
    %v472 = vmul.f32 %v462, %v464
    %v473 = vmul.f32 %v461, %v465
    %v474 = vmul.f32 %v460, %v466
    %v475 = vmul.f32 %v459, %v467
    %s476 = scalar_lea.vmem %s2, 24
    %v477 = vld [vmem:[%s476] sm:$0xff]
    %v479 = vsel %vm131, %v477, 0
    %v482 = vsel %vm135, %v472, 0
    %v485 = vsel %vm135, %v473, 0
    %v488 = vsel %vm135, %v474, 0
    %v491 = vsel %vm135, %v475, 0
    %493 = vmatpush.msra.mxu0 0.0
    %494 = vmatpush.msra.mxu0 0.0
    %495 = vmatpush.msra.mxu0 0.0
    %496 = vmatpush.msra.mxu0 0.0
    %497 = vmatpush.msra.mxu0 0.0
    %498 = vmatpush.msra.mxu0 0.0
    %499 = vmatpush.msra.mxu0 0.0
    %500 = vmatpush.msra.mxu0 0.0
    %501 = vmatpush.msra.mxu0 0.0
    %502 = vmatpush.msra.mxu0 0.0
    %503 = vmatpush.msra.mxu0 0.0
    %504 = vmatpush.msra.mxu0 0.0
    %505 = vmatpush.msra.mxu0 0.0
    %506 = vmatpush.msra.mxu0 0.0
    %507 = vmatpush.msra.mxu0 0.0
    %508 = vmatpush.msra.mxu0 %v482
    %509 = vmatmul.f32.gmra.mxu0 %v479
    %v510 = vpop.f32.mrf.mxu0
    %v511 = vadd.f32 0.0, %v510
    %512 = vdwg.mxu0
    %513 = vmatpush.msra.mxu0 0.0
    %514 = vmatpush.msra.mxu0 0.0
    %515 = vmatpush.msra.mxu0 0.0
    %516 = vmatpush.msra.mxu0 0.0
    %517 = vmatpush.msra.mxu0 0.0
    %518 = vmatpush.msra.mxu0 0.0
    %519 = vmatpush.msra.mxu0 0.0
    %520 = vmatpush.msra.mxu0 0.0
    %521 = vmatpush.msra.mxu0 0.0
    %522 = vmatpush.msra.mxu0 0.0
    %523 = vmatpush.msra.mxu0 0.0
    %524 = vmatpush.msra.mxu0 0.0
    %525 = vmatpush.msra.mxu0 0.0
    %526 = vmatpush.msra.mxu0 0.0
    %527 = vmatpush.msra.mxu0 0.0
    %528 = vmatpush.msra.mxu0 %v485
    %529 = vmatmul.f32.gmra.mxu0 %v479
    %v530 = vpop.f32.mrf.mxu0
    %v531 = vadd.f32 0.0, %v530
    %532 = vdwg.mxu0
    %533 = vmatpush.msra.mxu0 0.0
    %534 = vmatpush.msra.mxu0 0.0
    %535 = vmatpush.msra.mxu0 0.0
    %536 = vmatpush.msra.mxu0 0.0
    %537 = vmatpush.msra.mxu0 0.0
    %538 = vmatpush.msra.mxu0 0.0
    %539 = vmatpush.msra.mxu0 0.0
    %540 = vmatpush.msra.mxu0 0.0
    %541 = vmatpush.msra.mxu0 0.0
    %542 = vmatpush.msra.mxu0 0.0
    %543 = vmatpush.msra.mxu0 0.0
    %544 = vmatpush.msra.mxu0 0.0
    %545 = vmatpush.msra.mxu0 0.0
    %546 = vmatpush.msra.mxu0 0.0
    %547 = vmatpush.msra.mxu0 0.0
    %548 = vmatpush.msra.mxu0 %v488
    %549 = vmatmul.f32.gmra.mxu0 %v479
    %v550 = vpop.f32.mrf.mxu0
    %v551 = vadd.f32 0.0, %v550
    %552 = vdwg.mxu0
    %553 = vmatpush.msra.mxu0 0.0
    %554 = vmatpush.msra.mxu0 0.0
    %555 = vmatpush.msra.mxu0 0.0
    %556 = vmatpush.msra.mxu0 0.0
    %557 = vmatpush.msra.mxu0 0.0
    %558 = vmatpush.msra.mxu0 0.0
    %559 = vmatpush.msra.mxu0 0.0
    %560 = vmatpush.msra.mxu0 0.0
    %561 = vmatpush.msra.mxu0 0.0
    %562 = vmatpush.msra.mxu0 0.0
    %563 = vmatpush.msra.mxu0 0.0
    %564 = vmatpush.msra.mxu0 0.0
    %565 = vmatpush.msra.mxu0 0.0
    %566 = vmatpush.msra.mxu0 0.0
    %567 = vmatpush.msra.mxu0 0.0
    %568 = vmatpush.msra.mxu0 %v491
    %569 = vmatmul.f32.gmra.mxu0 %v479
    %v570 = vpop.f32.mrf.mxu0
    %v571 = vadd.f32 0.0, %v570
    %572 = vdwg.mxu0
    %v573 = vadd.f32 %v446, %v511
    %v574 = vadd.f32 %v447, %v531
    %v575 = vadd.f32 %v448, %v551
    %v576 = vadd.f32 %v449, %v571
    %v578 = vperm.slane %v64, 0
    %v579 = vperm.slane %v64, 1
    %v580 = vperm.slane %v64, 2
    %v581 = vperm.slane %v64, 3
    %v586 = vmul.f32 %v46, %v578
    %v587 = vmul.f32 %v47, %v579
    %v588 = vmul.f32 %v52, %v580
    %v589 = vmul.f32 %v53, %v581
    %s590 = scalar_lea.vmem %s2, 32
    %v591 = vld [vmem:[%s590] sm:$0xff]
    %v593 = vsel %vm131, %v591, 0
    %v596 = vsel %vm135, %v586, 0
    %v599 = vsel %vm135, %v587, 0
    %v602 = vsel %vm135, %v588, 0
    %v605 = vsel %vm135, %v589, 0
    %607 = vmatpush.msra.mxu0 0.0
    %608 = vmatpush.msra.mxu0 0.0
    %609 = vmatpush.msra.mxu0 0.0
    %610 = vmatpush.msra.mxu0 0.0
    %611 = vmatpush.msra.mxu0 0.0
    %612 = vmatpush.msra.mxu0 0.0
    %613 = vmatpush.msra.mxu0 0.0
    %614 = vmatpush.msra.mxu0 0.0
    %615 = vmatpush.msra.mxu0 0.0
    %616 = vmatpush.msra.mxu0 0.0
    %617 = vmatpush.msra.mxu0 0.0
    %618 = vmatpush.msra.mxu0 0.0
    %619 = vmatpush.msra.mxu0 0.0
    %620 = vmatpush.msra.mxu0 0.0
    %621 = vmatpush.msra.mxu0 0.0
    %622 = vmatpush.msra.mxu0 %v596
    %623 = vmatmul.f32.gmra.mxu0 %v593
    %v624 = vpop.f32.mrf.mxu0
    %v625 = vadd.f32 0.0, %v624
    %626 = vdwg.mxu0
    %627 = vmatpush.msra.mxu0 0.0
    %628 = vmatpush.msra.mxu0 0.0
    %629 = vmatpush.msra.mxu0 0.0
    %630 = vmatpush.msra.mxu0 0.0
    %631 = vmatpush.msra.mxu0 0.0
    %632 = vmatpush.msra.mxu0 0.0
    %633 = vmatpush.msra.mxu0 0.0
    %634 = vmatpush.msra.mxu0 0.0
    %635 = vmatpush.msra.mxu0 0.0
    %636 = vmatpush.msra.mxu0 0.0
    %637 = vmatpush.msra.mxu0 0.0
    %638 = vmatpush.msra.mxu0 0.0
    %639 = vmatpush.msra.mxu0 0.0
    %640 = vmatpush.msra.mxu0 0.0
    %641 = vmatpush.msra.mxu0 0.0
    %642 = vmatpush.msra.mxu0 %v599
    %643 = vmatmul.f32.gmra.mxu0 %v593
    %v644 = vpop.f32.mrf.mxu0
    %v645 = vadd.f32 0.0, %v644
    %646 = vdwg.mxu0
    %647 = vmatpush.msra.mxu0 0.0
    %648 = vmatpush.msra.mxu0 0.0
    %649 = vmatpush.msra.mxu0 0.0
    %650 = vmatpush.msra.mxu0 0.0
    %651 = vmatpush.msra.mxu0 0.0
    %652 = vmatpush.msra.mxu0 0.0
    %653 = vmatpush.msra.mxu0 0.0
    %654 = vmatpush.msra.mxu0 0.0
    %655 = vmatpush.msra.mxu0 0.0
    %656 = vmatpush.msra.mxu0 0.0
    %657 = vmatpush.msra.mxu0 0.0
    %658 = vmatpush.msra.mxu0 0.0
    %659 = vmatpush.msra.mxu0 0.0
    %660 = vmatpush.msra.mxu0 0.0
    %661 = vmatpush.msra.mxu0 0.0
    %662 = vmatpush.msra.mxu0 %v602
    %663 = vmatmul.f32.gmra.mxu0 %v593
    %v664 = vpop.f32.mrf.mxu0
    %v665 = vadd.f32 0.0, %v664
    %666 = vdwg.mxu0
    %667 = vmatpush.msra.mxu0 0.0
    %668 = vmatpush.msra.mxu0 0.0
    %669 = vmatpush.msra.mxu0 0.0
    %670 = vmatpush.msra.mxu0 0.0
    %671 = vmatpush.msra.mxu0 0.0
    %672 = vmatpush.msra.mxu0 0.0
    %673 = vmatpush.msra.mxu0 0.0
    %674 = vmatpush.msra.mxu0 0.0
    %675 = vmatpush.msra.mxu0 0.0
    %676 = vmatpush.msra.mxu0 0.0
    %677 = vmatpush.msra.mxu0 0.0
    %678 = vmatpush.msra.mxu0 0.0
    %679 = vmatpush.msra.mxu0 0.0
    %680 = vmatpush.msra.mxu0 0.0
    %681 = vmatpush.msra.mxu0 0.0
    %682 = vmatpush.msra.mxu0 %v605
    %683 = vmatmul.f32.gmra.mxu0 %v593
    %v684 = vpop.f32.mrf.mxu0
    %v685 = vadd.f32 0.0, %v684
    %686 = vdwg.mxu0
    %v687 = vadd.f32 %v573, %v625
    %v688 = vadd.f32 %v574, %v645
    %v689 = vadd.f32 %v575, %v665
    %v690 = vadd.f32 %v576, %v685
    %691 = vrot.lane.b32.xlu0 %v46, 127
    %v692 = vpop.permute.xlu0 %691
    %693 = vrot.lane.b32.xlu0 %v47, 127
    %v694 = vpop.permute.xlu0 %693
    %695 = vrot.lane.b32.xlu0 %v52, 127
    %v696 = vpop.permute.xlu0 %695
    %697 = vrot.lane.b32.xlu0 %v53, 127
    %v698 = vpop.permute.xlu0 %697
    %vm699 = vcmp.lt.s32.totalorder %v83, 127
    %v700 = vsel %vm699, %v696, %v698
    %v701 = vsel %vm699, %v694, %v696
    %v702 = vsel %vm699, %v692, %v694
    %v703 = vsel %vm699, %v698, %v692
    %v705 = vperm.slane %v66, 0
    %v706 = vperm.slane %v66, 1
    %v707 = vperm.slane %v66, 2
    %v708 = vperm.slane %v66, 3
    %v713 = vmul.f32 %v702, %v705
    %v714 = vmul.f32 %v701, %v706
    %v715 = vmul.f32 %v700, %v707
    %v716 = vmul.f32 %v703, %v708
    %s717 = scalar_lea.vmem %s2, 40
    %v718 = vld [vmem:[%s717] sm:$0xff]
    %v720 = vsel %vm131, %v718, 0
    %v723 = vsel %vm135, %v713, 0
    %v726 = vsel %vm135, %v714, 0
    %v729 = vsel %vm135, %v715, 0
    %v732 = vsel %vm135, %v716, 0
    %734 = vmatpush.msra.mxu0 0.0
    %735 = vmatpush.msra.mxu0 0.0
    %736 = vmatpush.msra.mxu0 0.0
    %737 = vmatpush.msra.mxu0 0.0
    %738 = vmatpush.msra.mxu0 0.0
    %739 = vmatpush.msra.mxu0 0.0
    %740 = vmatpush.msra.mxu0 0.0
    %741 = vmatpush.msra.mxu0 0.0
    %742 = vmatpush.msra.mxu0 0.0
    %743 = vmatpush.msra.mxu0 0.0
    %744 = vmatpush.msra.mxu0 0.0
    %745 = vmatpush.msra.mxu0 0.0
    %746 = vmatpush.msra.mxu0 0.0
    %747 = vmatpush.msra.mxu0 0.0
    %748 = vmatpush.msra.mxu0 0.0
    %749 = vmatpush.msra.mxu0 %v723
    %750 = vmatmul.f32.gmra.mxu0 %v720
    %v751 = vpop.f32.mrf.mxu0
    %v752 = vadd.f32 0.0, %v751
    %753 = vdwg.mxu0
    %754 = vmatpush.msra.mxu0 0.0
    %755 = vmatpush.msra.mxu0 0.0
    %756 = vmatpush.msra.mxu0 0.0
    %757 = vmatpush.msra.mxu0 0.0
    %758 = vmatpush.msra.mxu0 0.0
    %759 = vmatpush.msra.mxu0 0.0
    %760 = vmatpush.msra.mxu0 0.0
    %761 = vmatpush.msra.mxu0 0.0
    %762 = vmatpush.msra.mxu0 0.0
    %763 = vmatpush.msra.mxu0 0.0
    %764 = vmatpush.msra.mxu0 0.0
    %765 = vmatpush.msra.mxu0 0.0
    %766 = vmatpush.msra.mxu0 0.0
    %767 = vmatpush.msra.mxu0 0.0
    %768 = vmatpush.msra.mxu0 0.0
    %769 = vmatpush.msra.mxu0 %v726
    %770 = vmatmul.f32.gmra.mxu0 %v720
    %v771 = vpop.f32.mrf.mxu0
    %v772 = vadd.f32 0.0, %v771
    %773 = vdwg.mxu0
    %774 = vmatpush.msra.mxu0 0.0
    %775 = vmatpush.msra.mxu0 0.0
    %776 = vmatpush.msra.mxu0 0.0
    %777 = vmatpush.msra.mxu0 0.0
    %778 = vmatpush.msra.mxu0 0.0
    %779 = vmatpush.msra.mxu0 0.0
    %780 = vmatpush.msra.mxu0 0.0
    %781 = vmatpush.msra.mxu0 0.0
    %782 = vmatpush.msra.mxu0 0.0
    %783 = vmatpush.msra.mxu0 0.0
    %784 = vmatpush.msra.mxu0 0.0
    %785 = vmatpush.msra.mxu0 0.0
    %786 = vmatpush.msra.mxu0 0.0
    %787 = vmatpush.msra.mxu0 0.0
    %788 = vmatpush.msra.mxu0 0.0
    %789 = vmatpush.msra.mxu0 %v729
    %790 = vmatmul.f32.gmra.mxu0 %v720
    %v791 = vpop.f32.mrf.mxu0
    %v792 = vadd.f32 0.0, %v791
    %793 = vdwg.mxu0
    %794 = vmatpush.msra.mxu0 0.0
    %795 = vmatpush.msra.mxu0 0.0
    %796 = vmatpush.msra.mxu0 0.0
    %797 = vmatpush.msra.mxu0 0.0
    %798 = vmatpush.msra.mxu0 0.0
    %799 = vmatpush.msra.mxu0 0.0
    %800 = vmatpush.msra.mxu0 0.0
    %801 = vmatpush.msra.mxu0 0.0
    %802 = vmatpush.msra.mxu0 0.0
    %803 = vmatpush.msra.mxu0 0.0
    %804 = vmatpush.msra.mxu0 0.0
    %805 = vmatpush.msra.mxu0 0.0
    %806 = vmatpush.msra.mxu0 0.0
    %807 = vmatpush.msra.mxu0 0.0
    %808 = vmatpush.msra.mxu0 0.0
    %809 = vmatpush.msra.mxu0 %v732
    %810 = vmatmul.f32.gmra.mxu0 %v720
    %v811 = vpop.f32.mrf.mxu0
    %v812 = vadd.f32 0.0, %v811
    %813 = vdwg.mxu0
    %v814 = vadd.f32 %v687, %v752
    %v815 = vadd.f32 %v688, %v772
    %v816 = vadd.f32 %v689, %v792
    %v817 = vadd.f32 %v690, %v812
    %818 = vrot.lane.b32.xlu0 %v46, 113
    %v819 = vpop.permute.xlu0 %818
    %820 = vrot.lane.b32.xlu0 %v47, 113
    %v821 = vpop.permute.xlu0 %820
    %822 = vrot.lane.b32.xlu0 %v52, 113
    %v823 = vpop.permute.xlu0 %822
    %824 = vrot.lane.b32.xlu0 %v53, 113
    %v825 = vpop.permute.xlu0 %824
    %vm826 = vcmp.lt.s32.totalorder %v83, 113
    %v827 = vsel %vm826, %v823, %v825
    %v828 = vsel %vm826, %v821, %v823
    %v829 = vsel %vm826, %v819, %v821
    %v830 = vsel %vm826, %v825, %v819
    %v832 = vperm.slane %v68, 0
    %v833 = vperm.slane %v68, 1
    %v834 = vperm.slane %v68, 2
    %v835 = vperm.slane %v68, 3
    %v840 = vmul.f32 %v829, %v832
    %v841 = vmul.f32 %v828, %v833
    %v842 = vmul.f32 %v827, %v834
    %v843 = vmul.f32 %v830, %v835
    %s844 = scalar_lea.vmem %s2, 48
    %v845 = vld [vmem:[%s844] sm:$0xff]
    %v847 = vsel %vm131, %v845, 0
    %v850 = vsel %vm135, %v840, 0
    %v853 = vsel %vm135, %v841, 0
    %v856 = vsel %vm135, %v842, 0
    %v859 = vsel %vm135, %v843, 0
    %861 = vmatpush.msra.mxu0 0.0
    %862 = vmatpush.msra.mxu0 0.0
    %863 = vmatpush.msra.mxu0 0.0
    %864 = vmatpush.msra.mxu0 0.0
    %865 = vmatpush.msra.mxu0 0.0
    %866 = vmatpush.msra.mxu0 0.0
    %867 = vmatpush.msra.mxu0 0.0
    %868 = vmatpush.msra.mxu0 0.0
    %869 = vmatpush.msra.mxu0 0.0
    %870 = vmatpush.msra.mxu0 0.0
    %871 = vmatpush.msra.mxu0 0.0
    %872 = vmatpush.msra.mxu0 0.0
    %873 = vmatpush.msra.mxu0 0.0
    %874 = vmatpush.msra.mxu0 0.0
    %875 = vmatpush.msra.mxu0 0.0
    %876 = vmatpush.msra.mxu0 %v850
    %877 = vmatmul.f32.gmra.mxu0 %v847
    %v878 = vpop.f32.mrf.mxu0
    %v879 = vadd.f32 0.0, %v878
    %880 = vdwg.mxu0
    %881 = vmatpush.msra.mxu0 0.0
    %882 = vmatpush.msra.mxu0 0.0
    %883 = vmatpush.msra.mxu0 0.0
    %884 = vmatpush.msra.mxu0 0.0
    %885 = vmatpush.msra.mxu0 0.0
    %886 = vmatpush.msra.mxu0 0.0
    %887 = vmatpush.msra.mxu0 0.0
    %888 = vmatpush.msra.mxu0 0.0
    %889 = vmatpush.msra.mxu0 0.0
    %890 = vmatpush.msra.mxu0 0.0
    %891 = vmatpush.msra.mxu0 0.0
    %892 = vmatpush.msra.mxu0 0.0
    %893 = vmatpush.msra.mxu0 0.0
    %894 = vmatpush.msra.mxu0 0.0
    %895 = vmatpush.msra.mxu0 0.0
    %896 = vmatpush.msra.mxu0 %v853
    %897 = vmatmul.f32.gmra.mxu0 %v847
    %v898 = vpop.f32.mrf.mxu0
    %v899 = vadd.f32 0.0, %v898
    %900 = vdwg.mxu0
    %901 = vmatpush.msra.mxu0 0.0
    %902 = vmatpush.msra.mxu0 0.0
    %903 = vmatpush.msra.mxu0 0.0
    %904 = vmatpush.msra.mxu0 0.0
    %905 = vmatpush.msra.mxu0 0.0
    %906 = vmatpush.msra.mxu0 0.0
    %907 = vmatpush.msra.mxu0 0.0
    %908 = vmatpush.msra.mxu0 0.0
    %909 = vmatpush.msra.mxu0 0.0
    %910 = vmatpush.msra.mxu0 0.0
    %911 = vmatpush.msra.mxu0 0.0
    %912 = vmatpush.msra.mxu0 0.0
    %913 = vmatpush.msra.mxu0 0.0
    %914 = vmatpush.msra.mxu0 0.0
    %915 = vmatpush.msra.mxu0 0.0
    %916 = vmatpush.msra.mxu0 %v856
    %917 = vmatmul.f32.gmra.mxu0 %v847
    %v918 = vpop.f32.mrf.mxu0
    %v919 = vadd.f32 0.0, %v918
    %920 = vdwg.mxu0
    %921 = vmatpush.msra.mxu0 0.0
    %922 = vmatpush.msra.mxu0 0.0
    %923 = vmatpush.msra.mxu0 0.0
    %924 = vmatpush.msra.mxu0 0.0
    %925 = vmatpush.msra.mxu0 0.0
    %926 = vmatpush.msra.mxu0 0.0
    %927 = vmatpush.msra.mxu0 0.0
    %928 = vmatpush.msra.mxu0 0.0
    %929 = vmatpush.msra.mxu0 0.0
    %930 = vmatpush.msra.mxu0 0.0
    %931 = vmatpush.msra.mxu0 0.0
    %932 = vmatpush.msra.mxu0 0.0
    %933 = vmatpush.msra.mxu0 0.0
    %934 = vmatpush.msra.mxu0 0.0
    %935 = vmatpush.msra.mxu0 0.0
    %936 = vmatpush.msra.mxu0 %v859
    %937 = vmatmul.f32.gmra.mxu0 %v847
    %v938 = vpop.f32.mrf.mxu0
    %v939 = vadd.f32 0.0, %v938
    %940 = vdwg.mxu0
    %v941 = vadd.f32 %v814, %v879
    %v942 = vadd.f32 %v815, %v899
    %v943 = vadd.f32 %v816, %v919
    %v944 = vadd.f32 %v817, %v939
    %945 = vrot.lane.b32.xlu0 %v46, 112
    %v946 = vpop.permute.xlu0 %945
    %947 = vrot.lane.b32.xlu0 %v47, 112
    %v948 = vpop.permute.xlu0 %947
    %949 = vrot.lane.b32.xlu0 %v52, 112
    %v950 = vpop.permute.xlu0 %949
    %951 = vrot.lane.b32.xlu0 %v53, 112
    %v952 = vpop.permute.xlu0 %951
    %vm953 = vcmp.lt.s32.totalorder %v83, 112
    %v954 = vsel %vm953, %v950, %v952
    %v955 = vsel %vm953, %v948, %v950
    %v956 = vsel %vm953, %v946, %v948
    %v957 = vsel %vm953, %v952, %v946
    %v959 = vperm.slane %v70, 0
    %v960 = vperm.slane %v70, 1
    %v961 = vperm.slane %v70, 2
    %v962 = vperm.slane %v70, 3
    %v967 = vmul.f32 %v956, %v959
    %v968 = vmul.f32 %v955, %v960
    %v969 = vmul.f32 %v954, %v961
    %v970 = vmul.f32 %v957, %v962
    %s971 = scalar_lea.vmem %s2, 56
    %v972 = vld [vmem:[%s971] sm:$0xff]
    %v974 = vsel %vm131, %v972, 0
    %v977 = vsel %vm135, %v967, 0
    %v980 = vsel %vm135, %v968, 0
    %v983 = vsel %vm135, %v969, 0
    %v986 = vsel %vm135, %v970, 0
    %988 = vmatpush.msra.mxu0 0.0
    %989 = vmatpush.msra.mxu0 0.0
    %990 = vmatpush.msra.mxu0 0.0
    %991 = vmatpush.msra.mxu0 0.0
    %992 = vmatpush.msra.mxu0 0.0
    %993 = vmatpush.msra.mxu0 0.0
    %994 = vmatpush.msra.mxu0 0.0
    %995 = vmatpush.msra.mxu0 0.0
    %996 = vmatpush.msra.mxu0 0.0
    %997 = vmatpush.msra.mxu0 0.0
    %998 = vmatpush.msra.mxu0 0.0
    %999 = vmatpush.msra.mxu0 0.0
    %1000 = vmatpush.msra.mxu0 0.0
    %1001 = vmatpush.msra.mxu0 0.0
    %1002 = vmatpush.msra.mxu0 0.0
    %1003 = vmatpush.msra.mxu0 %v977
    %1004 = vmatmul.f32.gmra.mxu0 %v974
    %v1005 = vpop.f32.mrf.mxu0
    %v1006 = vadd.f32 0.0, %v1005
    %1007 = vdwg.mxu0
    %1008 = vmatpush.msra.mxu0 0.0
    %1009 = vmatpush.msra.mxu0 0.0
    %1010 = vmatpush.msra.mxu0 0.0
    %1011 = vmatpush.msra.mxu0 0.0
    %1012 = vmatpush.msra.mxu0 0.0
    %1013 = vmatpush.msra.mxu0 0.0
    %1014 = vmatpush.msra.mxu0 0.0
    %1015 = vmatpush.msra.mxu0 0.0
    %1016 = vmatpush.msra.mxu0 0.0
    %1017 = vmatpush.msra.mxu0 0.0
    %1018 = vmatpush.msra.mxu0 0.0
    %1019 = vmatpush.msra.mxu0 0.0
    %1020 = vmatpush.msra.mxu0 0.0
    %1021 = vmatpush.msra.mxu0 0.0
    %1022 = vmatpush.msra.mxu0 0.0
    %1023 = vmatpush.msra.mxu0 %v980
    %1024 = vmatmul.f32.gmra.mxu0 %v974
    %v1025 = vpop.f32.mrf.mxu0
    %v1026 = vadd.f32 0.0, %v1025
    %1027 = vdwg.mxu0
    %1028 = vmatpush.msra.mxu0 0.0
    %1029 = vmatpush.msra.mxu0 0.0
    %1030 = vmatpush.msra.mxu0 0.0
    %1031 = vmatpush.msra.mxu0 0.0
    %1032 = vmatpush.msra.mxu0 0.0
    %1033 = vmatpush.msra.mxu0 0.0
    %1034 = vmatpush.msra.mxu0 0.0
    %1035 = vmatpush.msra.mxu0 0.0
    %1036 = vmatpush.msra.mxu0 0.0
    %1037 = vmatpush.msra.mxu0 0.0
    %1038 = vmatpush.msra.mxu0 0.0
    %1039 = vmatpush.msra.mxu0 0.0
    %1040 = vmatpush.msra.mxu0 0.0
    %1041 = vmatpush.msra.mxu0 0.0
    %1042 = vmatpush.msra.mxu0 0.0
    %1043 = vmatpush.msra.mxu0 %v983
    %1044 = vmatmul.f32.gmra.mxu0 %v974
    %v1045 = vpop.f32.mrf.mxu0
    %v1046 = vadd.f32 0.0, %v1045
    %1047 = vdwg.mxu0
    %1048 = vmatpush.msra.mxu0 0.0
    %1049 = vmatpush.msra.mxu0 0.0
    %1050 = vmatpush.msra.mxu0 0.0
    %1051 = vmatpush.msra.mxu0 0.0
    %1052 = vmatpush.msra.mxu0 0.0
    %1053 = vmatpush.msra.mxu0 0.0
    %1054 = vmatpush.msra.mxu0 0.0
    %1055 = vmatpush.msra.mxu0 0.0
    %1056 = vmatpush.msra.mxu0 0.0
    %1057 = vmatpush.msra.mxu0 0.0
    %1058 = vmatpush.msra.mxu0 0.0
    %1059 = vmatpush.msra.mxu0 0.0
    %1060 = vmatpush.msra.mxu0 0.0
    %1061 = vmatpush.msra.mxu0 0.0
    %1062 = vmatpush.msra.mxu0 0.0
    %1063 = vmatpush.msra.mxu0 %v986
    %1064 = vmatmul.f32.gmra.mxu0 %v974
    %v1065 = vpop.f32.mrf.mxu0
    %v1066 = vadd.f32 0.0, %v1065
    %1067 = vdwg.mxu0
    %v1068 = vadd.f32 %v941, %v1006
    %v1069 = vadd.f32 %v942, %v1026
    %v1070 = vadd.f32 %v943, %v1046
    %v1071 = vadd.f32 %v944, %v1066
    %1072 = vrot.lane.b32.xlu0 %v46, 111
    %v1073 = vpop.permute.xlu0 %1072
    %1074 = vrot.lane.b32.xlu0 %v47, 111
    %v1075 = vpop.permute.xlu0 %1074
    %1076 = vrot.lane.b32.xlu0 %v52, 111
    %v1077 = vpop.permute.xlu0 %1076
    %1078 = vrot.lane.b32.xlu0 %v53, 111
    %v1079 = vpop.permute.xlu0 %1078
    %vm1080 = vcmp.lt.s32.totalorder %v83, 111
    %v1081 = vsel %vm1080, %v1077, %v1079
    %v1082 = vsel %vm1080, %v1075, %v1077
    %v1083 = vsel %vm1080, %v1073, %v1075
    %v1084 = vsel %vm1080, %v1079, %v1073
    %v1086 = vperm.slane %v72, 0
    %v1087 = vperm.slane %v72, 1
    %v1088 = vperm.slane %v72, 2
    %v1089 = vperm.slane %v72, 3
    %v1094 = vmul.f32 %v1083, %v1086
    %v1095 = vmul.f32 %v1082, %v1087
    %v1096 = vmul.f32 %v1081, %v1088
    %v1097 = vmul.f32 %v1084, %v1089
    %s1098 = scalar_lea.vmem %s2, 64
    %v1099 = vld [vmem:[%s1098] sm:$0xff]
    %v1101 = vsel %vm131, %v1099, 0
    %v1104 = vsel %vm135, %v1094, 0
    %v1107 = vsel %vm135, %v1095, 0
    %v1110 = vsel %vm135, %v1096, 0
    %v1113 = vsel %vm135, %v1097, 0
    %1115 = vmatpush.msra.mxu0 0.0
    %1116 = vmatpush.msra.mxu0 0.0
    %1117 = vmatpush.msra.mxu0 0.0
    %1118 = vmatpush.msra.mxu0 0.0
    %1119 = vmatpush.msra.mxu0 0.0
    %1120 = vmatpush.msra.mxu0 0.0
    %1121 = vmatpush.msra.mxu0 0.0
    %1122 = vmatpush.msra.mxu0 0.0
    %1123 = vmatpush.msra.mxu0 0.0
    %1124 = vmatpush.msra.mxu0 0.0
    %1125 = vmatpush.msra.mxu0 0.0
    %1126 = vmatpush.msra.mxu0 0.0
    %1127 = vmatpush.msra.mxu0 0.0
    %1128 = vmatpush.msra.mxu0 0.0
    %1129 = vmatpush.msra.mxu0 0.0
    %1130 = vmatpush.msra.mxu0 %v1104
    %1131 = vmatmul.f32.gmra.mxu0 %v1101
    %v1132 = vpop.f32.mrf.mxu0
    %v1133 = vadd.f32 0.0, %v1132
    %1134 = vdwg.mxu0
    %1135 = vmatpush.msra.mxu0 0.0
    %1136 = vmatpush.msra.mxu0 0.0
    %1137 = vmatpush.msra.mxu0 0.0
    %1138 = vmatpush.msra.mxu0 0.0
    %1139 = vmatpush.msra.mxu0 0.0
    %1140 = vmatpush.msra.mxu0 0.0
    %1141 = vmatpush.msra.mxu0 0.0
    %1142 = vmatpush.msra.mxu0 0.0
    %1143 = vmatpush.msra.mxu0 0.0
    %1144 = vmatpush.msra.mxu0 0.0
    %1145 = vmatpush.msra.mxu0 0.0
    %1146 = vmatpush.msra.mxu0 0.0
    %1147 = vmatpush.msra.mxu0 0.0
    %1148 = vmatpush.msra.mxu0 0.0
    %1149 = vmatpush.msra.mxu0 0.0
    %1150 = vmatpush.msra.mxu0 %v1107
    %1151 = vmatmul.f32.gmra.mxu0 %v1101
    %v1152 = vpop.f32.mrf.mxu0
    %v1153 = vadd.f32 0.0, %v1152
    %1154 = vdwg.mxu0
    %1155 = vmatpush.msra.mxu0 0.0
    %1156 = vmatpush.msra.mxu0 0.0
    %1157 = vmatpush.msra.mxu0 0.0
    %1158 = vmatpush.msra.mxu0 0.0
    %1159 = vmatpush.msra.mxu0 0.0
    %1160 = vmatpush.msra.mxu0 0.0
    %1161 = vmatpush.msra.mxu0 0.0
    %1162 = vmatpush.msra.mxu0 0.0
    %1163 = vmatpush.msra.mxu0 0.0
    %1164 = vmatpush.msra.mxu0 0.0
    %1165 = vmatpush.msra.mxu0 0.0
    %1166 = vmatpush.msra.mxu0 0.0
    %1167 = vmatpush.msra.mxu0 0.0
    %1168 = vmatpush.msra.mxu0 0.0
    %1169 = vmatpush.msra.mxu0 0.0
    %1170 = vmatpush.msra.mxu0 %v1110
    %1171 = vmatmul.f32.gmra.mxu0 %v1101
    %v1172 = vpop.f32.mrf.mxu0
    %v1173 = vadd.f32 0.0, %v1172
    %1174 = vdwg.mxu0
    %1175 = vmatpush.msra.mxu0 0.0
    %1176 = vmatpush.msra.mxu0 0.0
    %1177 = vmatpush.msra.mxu0 0.0
    %1178 = vmatpush.msra.mxu0 0.0
    %1179 = vmatpush.msra.mxu0 0.0
    %1180 = vmatpush.msra.mxu0 0.0
    %1181 = vmatpush.msra.mxu0 0.0
    %1182 = vmatpush.msra.mxu0 0.0
    %1183 = vmatpush.msra.mxu0 0.0
    %1184 = vmatpush.msra.mxu0 0.0
    %1185 = vmatpush.msra.mxu0 0.0
    %1186 = vmatpush.msra.mxu0 0.0
    %1187 = vmatpush.msra.mxu0 0.0
    %1188 = vmatpush.msra.mxu0 0.0
    %1189 = vmatpush.msra.mxu0 0.0
    %1190 = vmatpush.msra.mxu0 %v1113
    %1191 = vmatmul.f32.gmra.mxu0 %v1101
    %v1192 = vpop.f32.mrf.mxu0
    %v1193 = vadd.f32 0.0, %v1192
    %1194 = vdwg.mxu0
    %v1195 = vadd.f32 %v1068, %v1133
    %v1196 = vadd.f32 %v1069, %v1153
    %v1197 = vadd.f32 %v1070, %v1173
    %v1198 = vadd.f32 %v1071, %v1193
    %1200 = vset.pattern.permute.xlu0 0
    %1201 = vperm.xlu0 %1200, %v73
    %v1202 = vpop.permute.xlu0 %1201
    %v1204 = vadd.f32 %v1195, %v1202
    %v1205 = vadd.f32 %v1196, %v1202
    %v1206 = vadd.f32 %v1197, %v1202
    %v1207 = vadd.f32 %v1198, %v1202
    %v1208 = vmax.f32 %v1204, 0.0
    %v1209 = vmax.f32 %v1205, 0.0
    %v1210 = vmax.f32 %v1206, 0.0
    %v1211 = vmax.f32 %v1207, 0.0
    %v1212 = vld [vmem:[%s5] sm:$0xff]
    %1213 = vrot.lane.b32.xlu0 %v1208, 17
    %v1214 = vpop.permute.xlu0 %1213
    %1215 = vrot.lane.b32.xlu0 %v1209, 17
    %v1216 = vpop.permute.xlu0 %1215
    %1217 = vrot.lane.b32.xlu0 %v1210, 17
    %v1218 = vpop.permute.xlu0 %1217
    %1219 = vrot.lane.b32.xlu0 %v1211, 17
    %v1220 = vpop.permute.xlu0 %1219
    %v1221 = vsel %vm84, %v1218, %v1220
    %v1222 = vsel %vm84, %v1216, %v1218
    %v1223 = vsel %vm84, %v1214, %v1216
    %v1224 = vsel %vm84, %v1220, %v1214
    %v1225 = vmul.f32 %v1224, %v90
    %v1226 = vmul.f32 %v1223, %v91
    %v1227 = vmul.f32 %v1222, %v92
    %v1228 = vmul.f32 %v1221, %v93
    %v1229 = vld [vmem:[%s4] sm:$0xff]
    %1230 = vrot.lane.b32.xlu0 %v1208, 16
    %v1231 = vpop.permute.xlu0 %1230
    %1232 = vrot.lane.b32.xlu0 %v1209, 16
    %v1233 = vpop.permute.xlu0 %1232
    %1234 = vrot.lane.b32.xlu0 %v1210, 16
    %v1235 = vpop.permute.xlu0 %1234
    %1236 = vrot.lane.b32.xlu0 %v1211, 16
    %v1237 = vpop.permute.xlu0 %1236
    %v1238 = vsel %vm111, %v1235, %v1237
    %v1239 = vsel %vm111, %v1233, %v1235
    %v1240 = vsel %vm111, %v1231, %v1233
    %v1241 = vsel %vm111, %v1237, %v1231
    %v1242 = vmul.f32 %v1241, %v117
    %v1243 = vmul.f32 %v1240, %v118
    %v1244 = vmul.f32 %v1239, %v119
    %v1245 = vmul.f32 %v1238, %v120
    %s1246 = scalar_lea.vmem %s4, 8
    %v1247 = vld [vmem:[%s1246] sm:$0xff]
    %vm1248 = vcmask 64512
    %v1250 = vsel %vm1248, %v1247, 0
    %1252 = vmatpush.msra.mxu0 0.0
    %1253 = vmatpush.msra.mxu0 0.0
    %1254 = vmatpush.msra.mxu0 0.0
    %1255 = vmatpush.msra.mxu0 0.0
    %1256 = vmatpush.msra.mxu0 0.0
    %1257 = vmatpush.msra.mxu0 0.0
    %1258 = vmatpush.msra.mxu0 0.0
    %1259 = vmatpush.msra.mxu0 0.0
    %1260 = vmatpush.msra.mxu0 0.0
    %1261 = vmatpush.msra.mxu0 0.0
    %1262 = vmatpush.msra.mxu0 0.0
    %1263 = vmatpush.msra.mxu0 0.0
    %1264 = vmatpush.msra.mxu0 0.0
    %1265 = vmatpush.msra.mxu0 0.0
    %1266 = vmatpush.msra.mxu0 0.0
    %1267 = vmatpush.msra.mxu0 %v1242
    %1268 = vmatmul.f32.gmra.mxu0 %v1250
    %v1269 = vpop.f32.mrf.mxu0
    %v1270 = vadd.f32 0.0, %v1269
    %1271 = vdwg.mxu0
    %1272 = vmatpush.msra.mxu0 0.0
    %1273 = vmatpush.msra.mxu0 0.0
    %1274 = vmatpush.msra.mxu0 0.0
    %1275 = vmatpush.msra.mxu0 0.0
    %1276 = vmatpush.msra.mxu0 0.0
    %1277 = vmatpush.msra.mxu0 0.0
    %1278 = vmatpush.msra.mxu0 0.0
    %1279 = vmatpush.msra.mxu0 0.0
    %1280 = vmatpush.msra.mxu0 0.0
    %1281 = vmatpush.msra.mxu0 0.0
    %1282 = vmatpush.msra.mxu0 0.0
    %1283 = vmatpush.msra.mxu0 0.0
    %1284 = vmatpush.msra.mxu0 0.0
    %1285 = vmatpush.msra.mxu0 0.0
    %1286 = vmatpush.msra.mxu0 0.0
    %1287 = vmatpush.msra.mxu0 %v1243
    %1288 = vmatmul.f32.gmra.mxu0 %v1250
    %v1289 = vpop.f32.mrf.mxu0
    %v1290 = vadd.f32 0.0, %v1289
    %1291 = vdwg.mxu0
    %1292 = vmatpush.msra.mxu0 0.0
    %1293 = vmatpush.msra.mxu0 0.0
    %1294 = vmatpush.msra.mxu0 0.0
    %1295 = vmatpush.msra.mxu0 0.0
    %1296 = vmatpush.msra.mxu0 0.0
    %1297 = vmatpush.msra.mxu0 0.0
    %1298 = vmatpush.msra.mxu0 0.0
    %1299 = vmatpush.msra.mxu0 0.0
    %1300 = vmatpush.msra.mxu0 0.0
    %1301 = vmatpush.msra.mxu0 0.0
    %1302 = vmatpush.msra.mxu0 0.0
    %1303 = vmatpush.msra.mxu0 0.0
    %1304 = vmatpush.msra.mxu0 0.0
    %1305 = vmatpush.msra.mxu0 0.0
    %1306 = vmatpush.msra.mxu0 0.0
    %1307 = vmatpush.msra.mxu0 %v1244
    %1308 = vmatmul.f32.gmra.mxu0 %v1250
    %v1309 = vpop.f32.mrf.mxu0
    %v1310 = vadd.f32 0.0, %v1309
    %1311 = vdwg.mxu0
    %1312 = vmatpush.msra.mxu0 0.0
    %1313 = vmatpush.msra.mxu0 0.0
    %1314 = vmatpush.msra.mxu0 0.0
    %1315 = vmatpush.msra.mxu0 0.0
    %1316 = vmatpush.msra.mxu0 0.0
    %1317 = vmatpush.msra.mxu0 0.0
    %1318 = vmatpush.msra.mxu0 0.0
    %1319 = vmatpush.msra.mxu0 0.0
    %1320 = vmatpush.msra.mxu0 0.0
    %1321 = vmatpush.msra.mxu0 0.0
    %1322 = vmatpush.msra.mxu0 0.0
    %1323 = vmatpush.msra.mxu0 0.0
    %1324 = vmatpush.msra.mxu0 0.0
    %1325 = vmatpush.msra.mxu0 0.0
    %1326 = vmatpush.msra.mxu0 0.0
    %1327 = vmatpush.msra.mxu0 %v1245
    %1328 = vmatmul.f32.gmra.mxu0 %v1250
    %v1329 = vpop.f32.mrf.mxu0
    %v1330 = vadd.f32 0.0, %v1329
    %1331 = vdwg.mxu0
    %v1333 = vsel %vm1248, %v1229, 0
    %1335 = vmatpush.msra.mxu0 0.0
    %1336 = vmatpush.msra.mxu0 0.0
    %1337 = vmatpush.msra.mxu0 0.0
    %1338 = vmatpush.msra.mxu0 0.0
    %1339 = vmatpush.msra.mxu0 0.0
    %1340 = vmatpush.msra.mxu0 0.0
    %1341 = vmatpush.msra.mxu0 0.0
    %1342 = vmatpush.msra.mxu0 0.0
    %1343 = vmatpush.msra.mxu0 0.0
    %1344 = vmatpush.msra.mxu0 0.0
    %1345 = vmatpush.msra.mxu0 0.0
    %1346 = vmatpush.msra.mxu0 0.0
    %1347 = vmatpush.msra.mxu0 0.0
    %1348 = vmatpush.msra.mxu0 0.0
    %1349 = vmatpush.msra.mxu0 0.0
    %1350 = vmatpush.msra.mxu0 %v1225
    %1351 = vmatmul.f32.gmra.mxu0 %v1333
    %v1352 = vpop.f32.mrf.mxu0
    %v1353 = vadd.f32 %v1270, %v1352
    %1354 = vdwg.mxu0
    %1355 = vmatpush.msra.mxu0 0.0
    %1356 = vmatpush.msra.mxu0 0.0
    %1357 = vmatpush.msra.mxu0 0.0
    %1358 = vmatpush.msra.mxu0 0.0
    %1359 = vmatpush.msra.mxu0 0.0
    %1360 = vmatpush.msra.mxu0 0.0
    %1361 = vmatpush.msra.mxu0 0.0
    %1362 = vmatpush.msra.mxu0 0.0
    %1363 = vmatpush.msra.mxu0 0.0
    %1364 = vmatpush.msra.mxu0 0.0
    %1365 = vmatpush.msra.mxu0 0.0
    %1366 = vmatpush.msra.mxu0 0.0
    %1367 = vmatpush.msra.mxu0 0.0
    %1368 = vmatpush.msra.mxu0 0.0
    %1369 = vmatpush.msra.mxu0 0.0
    %1370 = vmatpush.msra.mxu0 %v1226
    %1371 = vmatmul.f32.gmra.mxu0 %v1333
    %v1372 = vpop.f32.mrf.mxu0
    %v1373 = vadd.f32 %v1290, %v1372
    %1374 = vdwg.mxu0
    %1375 = vmatpush.msra.mxu0 0.0
    %1376 = vmatpush.msra.mxu0 0.0
    %1377 = vmatpush.msra.mxu0 0.0
    %1378 = vmatpush.msra.mxu0 0.0
    %1379 = vmatpush.msra.mxu0 0.0
    %1380 = vmatpush.msra.mxu0 0.0
    %1381 = vmatpush.msra.mxu0 0.0
    %1382 = vmatpush.msra.mxu0 0.0
    %1383 = vmatpush.msra.mxu0 0.0
    %1384 = vmatpush.msra.mxu0 0.0
    %1385 = vmatpush.msra.mxu0 0.0
    %1386 = vmatpush.msra.mxu0 0.0
    %1387 = vmatpush.msra.mxu0 0.0
    %1388 = vmatpush.msra.mxu0 0.0
    %1389 = vmatpush.msra.mxu0 0.0
    %1390 = vmatpush.msra.mxu0 %v1227
    %1391 = vmatmul.f32.gmra.mxu0 %v1333
    %v1392 = vpop.f32.mrf.mxu0
    %v1393 = vadd.f32 %v1310, %v1392
    %1394 = vdwg.mxu0
    %1395 = vmatpush.msra.mxu0 0.0
    %1396 = vmatpush.msra.mxu0 0.0
    %1397 = vmatpush.msra.mxu0 0.0
    %1398 = vmatpush.msra.mxu0 0.0
    %1399 = vmatpush.msra.mxu0 0.0
    %1400 = vmatpush.msra.mxu0 0.0
    %1401 = vmatpush.msra.mxu0 0.0
    %1402 = vmatpush.msra.mxu0 0.0
    %1403 = vmatpush.msra.mxu0 0.0
    %1404 = vmatpush.msra.mxu0 0.0
    %1405 = vmatpush.msra.mxu0 0.0
    %1406 = vmatpush.msra.mxu0 0.0
    %1407 = vmatpush.msra.mxu0 0.0
    %1408 = vmatpush.msra.mxu0 0.0
    %1409 = vmatpush.msra.mxu0 0.0
    %1410 = vmatpush.msra.mxu0 %v1228
    %1411 = vmatmul.f32.gmra.mxu0 %v1333
    %v1412 = vpop.f32.mrf.mxu0
    %v1413 = vadd.f32 %v1330, %v1412
    %1414 = vdwg.mxu0
    %1415 = vrot.lane.b32.xlu0 %v1208, 15
    %v1416 = vpop.permute.xlu0 %1415
    %1417 = vrot.lane.b32.xlu0 %v1209, 15
    %v1418 = vpop.permute.xlu0 %1417
    %1419 = vrot.lane.b32.xlu0 %v1210, 15
    %v1420 = vpop.permute.xlu0 %1419
    %1421 = vrot.lane.b32.xlu0 %v1211, 15
    %v1422 = vpop.permute.xlu0 %1421
    %v1423 = vsel %vm331, %v1420, %v1422
    %v1424 = vsel %vm331, %v1418, %v1420
    %v1425 = vsel %vm331, %v1416, %v1418
    %v1426 = vsel %vm331, %v1422, %v1416
    %v1427 = vmul.f32 %v1426, %v337
    %v1428 = vmul.f32 %v1425, %v338
    %v1429 = vmul.f32 %v1424, %v339
    %v1430 = vmul.f32 %v1423, %v340
    %s1431 = scalar_lea.vmem %s4, 16
    %v1432 = vld [vmem:[%s1431] sm:$0xff]
    %v1434 = vsel %vm1248, %v1432, 0
    %1436 = vmatpush.msra.mxu0 0.0
    %1437 = vmatpush.msra.mxu0 0.0
    %1438 = vmatpush.msra.mxu0 0.0
    %1439 = vmatpush.msra.mxu0 0.0
    %1440 = vmatpush.msra.mxu0 0.0
    %1441 = vmatpush.msra.mxu0 0.0
    %1442 = vmatpush.msra.mxu0 0.0
    %1443 = vmatpush.msra.mxu0 0.0
    %1444 = vmatpush.msra.mxu0 0.0
    %1445 = vmatpush.msra.mxu0 0.0
    %1446 = vmatpush.msra.mxu0 0.0
    %1447 = vmatpush.msra.mxu0 0.0
    %1448 = vmatpush.msra.mxu0 0.0
    %1449 = vmatpush.msra.mxu0 0.0
    %1450 = vmatpush.msra.mxu0 0.0
    %1451 = vmatpush.msra.mxu0 %v1427
    %1452 = vmatmul.f32.gmra.mxu0 %v1434
    %v1453 = vpop.f32.mrf.mxu0
    %v1454 = vadd.f32 0.0, %v1453
    %1455 = vdwg.mxu0
    %1456 = vmatpush.msra.mxu0 0.0
    %1457 = vmatpush.msra.mxu0 0.0
    %1458 = vmatpush.msra.mxu0 0.0
    %1459 = vmatpush.msra.mxu0 0.0
    %1460 = vmatpush.msra.mxu0 0.0
    %1461 = vmatpush.msra.mxu0 0.0
    %1462 = vmatpush.msra.mxu0 0.0
    %1463 = vmatpush.msra.mxu0 0.0
    %1464 = vmatpush.msra.mxu0 0.0
    %1465 = vmatpush.msra.mxu0 0.0
    %1466 = vmatpush.msra.mxu0 0.0
    %1467 = vmatpush.msra.mxu0 0.0
    %1468 = vmatpush.msra.mxu0 0.0
    %1469 = vmatpush.msra.mxu0 0.0
    %1470 = vmatpush.msra.mxu0 0.0
    %1471 = vmatpush.msra.mxu0 %v1428
    %1472 = vmatmul.f32.gmra.mxu0 %v1434
    %v1473 = vpop.f32.mrf.mxu0
    %v1474 = vadd.f32 0.0, %v1473
    %1475 = vdwg.mxu0
    %1476 = vmatpush.msra.mxu0 0.0
    %1477 = vmatpush.msra.mxu0 0.0
    %1478 = vmatpush.msra.mxu0 0.0
    %1479 = vmatpush.msra.mxu0 0.0
    %1480 = vmatpush.msra.mxu0 0.0
    %1481 = vmatpush.msra.mxu0 0.0
    %1482 = vmatpush.msra.mxu0 0.0
    %1483 = vmatpush.msra.mxu0 0.0
    %1484 = vmatpush.msra.mxu0 0.0
    %1485 = vmatpush.msra.mxu0 0.0
    %1486 = vmatpush.msra.mxu0 0.0
    %1487 = vmatpush.msra.mxu0 0.0
    %1488 = vmatpush.msra.mxu0 0.0
    %1489 = vmatpush.msra.mxu0 0.0
    %1490 = vmatpush.msra.mxu0 0.0
    %1491 = vmatpush.msra.mxu0 %v1429
    %1492 = vmatmul.f32.gmra.mxu0 %v1434
    %v1493 = vpop.f32.mrf.mxu0
    %v1494 = vadd.f32 0.0, %v1493
    %1495 = vdwg.mxu0
    %1496 = vmatpush.msra.mxu0 0.0
    %1497 = vmatpush.msra.mxu0 0.0
    %1498 = vmatpush.msra.mxu0 0.0
    %1499 = vmatpush.msra.mxu0 0.0
    %1500 = vmatpush.msra.mxu0 0.0
    %1501 = vmatpush.msra.mxu0 0.0
    %1502 = vmatpush.msra.mxu0 0.0
    %1503 = vmatpush.msra.mxu0 0.0
    %1504 = vmatpush.msra.mxu0 0.0
    %1505 = vmatpush.msra.mxu0 0.0
    %1506 = vmatpush.msra.mxu0 0.0
    %1507 = vmatpush.msra.mxu0 0.0
    %1508 = vmatpush.msra.mxu0 0.0
    %1509 = vmatpush.msra.mxu0 0.0
    %1510 = vmatpush.msra.mxu0 0.0
    %1511 = vmatpush.msra.mxu0 %v1430
    %1512 = vmatmul.f32.gmra.mxu0 %v1434
    %v1513 = vpop.f32.mrf.mxu0
    %v1514 = vadd.f32 0.0, %v1513
    %1515 = vdwg.mxu0
    %v1516 = vadd.f32 %v1353, %v1454
    %v1517 = vadd.f32 %v1373, %v1474
    %v1518 = vadd.f32 %v1393, %v1494
    %v1519 = vadd.f32 %v1413, %v1514
    %1520 = vrot.lane.b32.xlu0 %v1208, 1
    %v1521 = vpop.permute.xlu0 %1520
    %1522 = vrot.lane.b32.xlu0 %v1209, 1
    %v1523 = vpop.permute.xlu0 %1522
    %1524 = vrot.lane.b32.xlu0 %v1210, 1
    %v1525 = vpop.permute.xlu0 %1524
    %1526 = vrot.lane.b32.xlu0 %v1211, 1
    %v1527 = vpop.permute.xlu0 %1526
    %v1528 = vsel %vm458, %v1525, %v1527
    %v1529 = vsel %vm458, %v1523, %v1525
    %v1530 = vsel %vm458, %v1521, %v1523
    %v1531 = vsel %vm458, %v1527, %v1521
    %v1532 = vmul.f32 %v1531, %v464
    %v1533 = vmul.f32 %v1530, %v465
    %v1534 = vmul.f32 %v1529, %v466
    %v1535 = vmul.f32 %v1528, %v467
    %s1536 = scalar_lea.vmem %s4, 24
    %v1537 = vld [vmem:[%s1536] sm:$0xff]
    %v1539 = vsel %vm1248, %v1537, 0
    %1541 = vmatpush.msra.mxu0 0.0
    %1542 = vmatpush.msra.mxu0 0.0
    %1543 = vmatpush.msra.mxu0 0.0
    %1544 = vmatpush.msra.mxu0 0.0
    %1545 = vmatpush.msra.mxu0 0.0
    %1546 = vmatpush.msra.mxu0 0.0
    %1547 = vmatpush.msra.mxu0 0.0
    %1548 = vmatpush.msra.mxu0 0.0
    %1549 = vmatpush.msra.mxu0 0.0
    %1550 = vmatpush.msra.mxu0 0.0
    %1551 = vmatpush.msra.mxu0 0.0
    %1552 = vmatpush.msra.mxu0 0.0
    %1553 = vmatpush.msra.mxu0 0.0
    %1554 = vmatpush.msra.mxu0 0.0
    %1555 = vmatpush.msra.mxu0 0.0
    %1556 = vmatpush.msra.mxu0 %v1532
    %1557 = vmatmul.f32.gmra.mxu0 %v1539
    %v1558 = vpop.f32.mrf.mxu0
    %v1559 = vadd.f32 0.0, %v1558
    %1560 = vdwg.mxu0
    %1561 = vmatpush.msra.mxu0 0.0
    %1562 = vmatpush.msra.mxu0 0.0
    %1563 = vmatpush.msra.mxu0 0.0
    %1564 = vmatpush.msra.mxu0 0.0
    %1565 = vmatpush.msra.mxu0 0.0
    %1566 = vmatpush.msra.mxu0 0.0
    %1567 = vmatpush.msra.mxu0 0.0
    %1568 = vmatpush.msra.mxu0 0.0
    %1569 = vmatpush.msra.mxu0 0.0
    %1570 = vmatpush.msra.mxu0 0.0
    %1571 = vmatpush.msra.mxu0 0.0
    %1572 = vmatpush.msra.mxu0 0.0
    %1573 = vmatpush.msra.mxu0 0.0
    %1574 = vmatpush.msra.mxu0 0.0
    %1575 = vmatpush.msra.mxu0 0.0
    %1576 = vmatpush.msra.mxu0 %v1533
    %1577 = vmatmul.f32.gmra.mxu0 %v1539
    %v1578 = vpop.f32.mrf.mxu0
    %v1579 = vadd.f32 0.0, %v1578
    %1580 = vdwg.mxu0
    %1581 = vmatpush.msra.mxu0 0.0
    %1582 = vmatpush.msra.mxu0 0.0
    %1583 = vmatpush.msra.mxu0 0.0
    %1584 = vmatpush.msra.mxu0 0.0
    %1585 = vmatpush.msra.mxu0 0.0
    %1586 = vmatpush.msra.mxu0 0.0
    %1587 = vmatpush.msra.mxu0 0.0
    %1588 = vmatpush.msra.mxu0 0.0
    %1589 = vmatpush.msra.mxu0 0.0
    %1590 = vmatpush.msra.mxu0 0.0
    %1591 = vmatpush.msra.mxu0 0.0
    %1592 = vmatpush.msra.mxu0 0.0
    %1593 = vmatpush.msra.mxu0 0.0
    %1594 = vmatpush.msra.mxu0 0.0
    %1595 = vmatpush.msra.mxu0 0.0
    %1596 = vmatpush.msra.mxu0 %v1534
    %1597 = vmatmul.f32.gmra.mxu0 %v1539
    %v1598 = vpop.f32.mrf.mxu0
    %v1599 = vadd.f32 0.0, %v1598
    %1600 = vdwg.mxu0
    %1601 = vmatpush.msra.mxu0 0.0
    %1602 = vmatpush.msra.mxu0 0.0
    %1603 = vmatpush.msra.mxu0 0.0
    %1604 = vmatpush.msra.mxu0 0.0
    %1605 = vmatpush.msra.mxu0 0.0
    %1606 = vmatpush.msra.mxu0 0.0
    %1607 = vmatpush.msra.mxu0 0.0
    %1608 = vmatpush.msra.mxu0 0.0
    %1609 = vmatpush.msra.mxu0 0.0
    %1610 = vmatpush.msra.mxu0 0.0
    %1611 = vmatpush.msra.mxu0 0.0
    %1612 = vmatpush.msra.mxu0 0.0
    %1613 = vmatpush.msra.mxu0 0.0
    %1614 = vmatpush.msra.mxu0 0.0
    %1615 = vmatpush.msra.mxu0 0.0
    %1616 = vmatpush.msra.mxu0 %v1535
    %1617 = vmatmul.f32.gmra.mxu0 %v1539
    %v1618 = vpop.f32.mrf.mxu0
    %v1619 = vadd.f32 0.0, %v1618
    %1620 = vdwg.mxu0
    %v1621 = vadd.f32 %v1516, %v1559
    %v1622 = vadd.f32 %v1517, %v1579
    %v1623 = vadd.f32 %v1518, %v1599
    %v1624 = vadd.f32 %v1519, %v1619
    %v1625 = vmul.f32 %v1208, %v578
    %v1626 = vmul.f32 %v1209, %v579
    %v1627 = vmul.f32 %v1210, %v580
    %v1628 = vmul.f32 %v1211, %v581
    %s1629 = scalar_lea.vmem %s4, 32
    %v1630 = vld [vmem:[%s1629] sm:$0xff]
    %v1632 = vsel %vm1248, %v1630, 0
    %1634 = vmatpush.msra.mxu0 0.0
    %1635 = vmatpush.msra.mxu0 0.0
    %1636 = vmatpush.msra.mxu0 0.0
    %1637 = vmatpush.msra.mxu0 0.0
    %1638 = vmatpush.msra.mxu0 0.0
    %1639 = vmatpush.msra.mxu0 0.0
    %1640 = vmatpush.msra.mxu0 0.0
    %1641 = vmatpush.msra.mxu0 0.0
    %1642 = vmatpush.msra.mxu0 0.0
    %1643 = vmatpush.msra.mxu0 0.0
    %1644 = vmatpush.msra.mxu0 0.0
    %1645 = vmatpush.msra.mxu0 0.0
    %1646 = vmatpush.msra.mxu0 0.0
    %1647 = vmatpush.msra.mxu0 0.0
    %1648 = vmatpush.msra.mxu0 0.0
    %1649 = vmatpush.msra.mxu0 %v1625
    %1650 = vmatmul.f32.gmra.mxu0 %v1632
    %v1651 = vpop.f32.mrf.mxu0
    %v1652 = vadd.f32 0.0, %v1651
    %1653 = vdwg.mxu0
    %1654 = vmatpush.msra.mxu0 0.0
    %1655 = vmatpush.msra.mxu0 0.0
    %1656 = vmatpush.msra.mxu0 0.0
    %1657 = vmatpush.msra.mxu0 0.0
    %1658 = vmatpush.msra.mxu0 0.0
    %1659 = vmatpush.msra.mxu0 0.0
    %1660 = vmatpush.msra.mxu0 0.0
    %1661 = vmatpush.msra.mxu0 0.0
    %1662 = vmatpush.msra.mxu0 0.0
    %1663 = vmatpush.msra.mxu0 0.0
    %1664 = vmatpush.msra.mxu0 0.0
    %1665 = vmatpush.msra.mxu0 0.0
    %1666 = vmatpush.msra.mxu0 0.0
    %1667 = vmatpush.msra.mxu0 0.0
    %1668 = vmatpush.msra.mxu0 0.0
    %1669 = vmatpush.msra.mxu0 %v1626
    %1670 = vmatmul.f32.gmra.mxu0 %v1632
    %v1671 = vpop.f32.mrf.mxu0
    %v1672 = vadd.f32 0.0, %v1671
    %1673 = vdwg.mxu0
    %1674 = vmatpush.msra.mxu0 0.0
    %1675 = vmatpush.msra.mxu0 0.0
    %1676 = vmatpush.msra.mxu0 0.0
    %1677 = vmatpush.msra.mxu0 0.0
    %1678 = vmatpush.msra.mxu0 0.0
    %1679 = vmatpush.msra.mxu0 0.0
    %1680 = vmatpush.msra.mxu0 0.0
    %1681 = vmatpush.msra.mxu0 0.0
    %1682 = vmatpush.msra.mxu0 0.0
    %1683 = vmatpush.msra.mxu0 0.0
    %1684 = vmatpush.msra.mxu0 0.0
    %1685 = vmatpush.msra.mxu0 0.0
    %1686 = vmatpush.msra.mxu0 0.0
    %1687 = vmatpush.msra.mxu0 0.0
    %1688 = vmatpush.msra.mxu0 0.0
    %1689 = vmatpush.msra.mxu0 %v1627
    %1690 = vmatmul.f32.gmra.mxu0 %v1632
    %v1691 = vpop.f32.mrf.mxu0
    %v1692 = vadd.f32 0.0, %v1691
    %1693 = vdwg.mxu0
    %1694 = vmatpush.msra.mxu0 0.0
    %1695 = vmatpush.msra.mxu0 0.0
    %1696 = vmatpush.msra.mxu0 0.0
    %1697 = vmatpush.msra.mxu0 0.0
    %1698 = vmatpush.msra.mxu0 0.0
    %1699 = vmatpush.msra.mxu0 0.0
    %1700 = vmatpush.msra.mxu0 0.0
    %1701 = vmatpush.msra.mxu0 0.0
    %1702 = vmatpush.msra.mxu0 0.0
    %1703 = vmatpush.msra.mxu0 0.0
    %1704 = vmatpush.msra.mxu0 0.0
    %1705 = vmatpush.msra.mxu0 0.0
    %1706 = vmatpush.msra.mxu0 0.0
    %1707 = vmatpush.msra.mxu0 0.0
    %1708 = vmatpush.msra.mxu0 0.0
    %1709 = vmatpush.msra.mxu0 %v1628
    %1710 = vmatmul.f32.gmra.mxu0 %v1632
    %v1711 = vpop.f32.mrf.mxu0
    %v1712 = vadd.f32 0.0, %v1711
    %1713 = vdwg.mxu0
    %v1714 = vadd.f32 %v1621, %v1652
    %v1715 = vadd.f32 %v1622, %v1672
    %v1716 = vadd.f32 %v1623, %v1692
    %v1717 = vadd.f32 %v1624, %v1712
    %1718 = vrot.lane.b32.xlu0 %v1208, 127
    %v1719 = vpop.permute.xlu0 %1718
    %1720 = vrot.lane.b32.xlu0 %v1209, 127
    %v1721 = vpop.permute.xlu0 %1720
    %1722 = vrot.lane.b32.xlu0 %v1210, 127
    %v1723 = vpop.permute.xlu0 %1722
    %1724 = vrot.lane.b32.xlu0 %v1211, 127
    %v1725 = vpop.permute.xlu0 %1724
    %v1726 = vsel %vm699, %v1723, %v1725
    %v1727 = vsel %vm699, %v1721, %v1723
    %v1728 = vsel %vm699, %v1719, %v1721
    %v1729 = vsel %vm699, %v1725, %v1719
    %v1730 = vmul.f32 %v1728, %v705
    %v1731 = vmul.f32 %v1727, %v706
    %v1732 = vmul.f32 %v1726, %v707
    %v1733 = vmul.f32 %v1729, %v708
    %s1734 = scalar_lea.vmem %s4, 40
    %v1735 = vld [vmem:[%s1734] sm:$0xff]
    %v1737 = vsel %vm1248, %v1735, 0
    %1739 = vmatpush.msra.mxu0 0.0
    %1740 = vmatpush.msra.mxu0 0.0
    %1741 = vmatpush.msra.mxu0 0.0
    %1742 = vmatpush.msra.mxu0 0.0
    %1743 = vmatpush.msra.mxu0 0.0
    %1744 = vmatpush.msra.mxu0 0.0
    %1745 = vmatpush.msra.mxu0 0.0
    %1746 = vmatpush.msra.mxu0 0.0
    %1747 = vmatpush.msra.mxu0 0.0
    %1748 = vmatpush.msra.mxu0 0.0
    %1749 = vmatpush.msra.mxu0 0.0
    %1750 = vmatpush.msra.mxu0 0.0
    %1751 = vmatpush.msra.mxu0 0.0
    %1752 = vmatpush.msra.mxu0 0.0
    %1753 = vmatpush.msra.mxu0 0.0
    %1754 = vmatpush.msra.mxu0 %v1730
    %1755 = vmatmul.f32.gmra.mxu0 %v1737
    %v1756 = vpop.f32.mrf.mxu0
    %v1757 = vadd.f32 0.0, %v1756
    %1758 = vdwg.mxu0
    %1759 = vmatpush.msra.mxu0 0.0
    %1760 = vmatpush.msra.mxu0 0.0
    %1761 = vmatpush.msra.mxu0 0.0
    %1762 = vmatpush.msra.mxu0 0.0
    %1763 = vmatpush.msra.mxu0 0.0
    %1764 = vmatpush.msra.mxu0 0.0
    %1765 = vmatpush.msra.mxu0 0.0
    %1766 = vmatpush.msra.mxu0 0.0
    %1767 = vmatpush.msra.mxu0 0.0
    %1768 = vmatpush.msra.mxu0 0.0
    %1769 = vmatpush.msra.mxu0 0.0
    %1770 = vmatpush.msra.mxu0 0.0
    %1771 = vmatpush.msra.mxu0 0.0
    %1772 = vmatpush.msra.mxu0 0.0
    %1773 = vmatpush.msra.mxu0 0.0
    %1774 = vmatpush.msra.mxu0 %v1731
    %1775 = vmatmul.f32.gmra.mxu0 %v1737
    %v1776 = vpop.f32.mrf.mxu0
    %v1777 = vadd.f32 0.0, %v1776
    %1778 = vdwg.mxu0
    %1779 = vmatpush.msra.mxu0 0.0
    %1780 = vmatpush.msra.mxu0 0.0
    %1781 = vmatpush.msra.mxu0 0.0
    %1782 = vmatpush.msra.mxu0 0.0
    %1783 = vmatpush.msra.mxu0 0.0
    %1784 = vmatpush.msra.mxu0 0.0
    %1785 = vmatpush.msra.mxu0 0.0
    %1786 = vmatpush.msra.mxu0 0.0
    %1787 = vmatpush.msra.mxu0 0.0
    %1788 = vmatpush.msra.mxu0 0.0
    %1789 = vmatpush.msra.mxu0 0.0
    %1790 = vmatpush.msra.mxu0 0.0
    %1791 = vmatpush.msra.mxu0 0.0
    %1792 = vmatpush.msra.mxu0 0.0
    %1793 = vmatpush.msra.mxu0 0.0
    %1794 = vmatpush.msra.mxu0 %v1732
    %1795 = vmatmul.f32.gmra.mxu0 %v1737
    %v1796 = vpop.f32.mrf.mxu0
    %v1797 = vadd.f32 0.0, %v1796
    %1798 = vdwg.mxu0
    %1799 = vmatpush.msra.mxu0 0.0
    %1800 = vmatpush.msra.mxu0 0.0
    %1801 = vmatpush.msra.mxu0 0.0
    %1802 = vmatpush.msra.mxu0 0.0
    %1803 = vmatpush.msra.mxu0 0.0
    %1804 = vmatpush.msra.mxu0 0.0
    %1805 = vmatpush.msra.mxu0 0.0
    %1806 = vmatpush.msra.mxu0 0.0
    %1807 = vmatpush.msra.mxu0 0.0
    %1808 = vmatpush.msra.mxu0 0.0
    %1809 = vmatpush.msra.mxu0 0.0
    %1810 = vmatpush.msra.mxu0 0.0
    %1811 = vmatpush.msra.mxu0 0.0
    %1812 = vmatpush.msra.mxu0 0.0
    %1813 = vmatpush.msra.mxu0 0.0
    %1814 = vmatpush.msra.mxu0 %v1733
    %1815 = vmatmul.f32.gmra.mxu0 %v1737
    %v1816 = vpop.f32.mrf.mxu0
    %v1817 = vadd.f32 0.0, %v1816
    %1818 = vdwg.mxu0
    %v1819 = vadd.f32 %v1714, %v1757
    %v1820 = vadd.f32 %v1715, %v1777
    %v1821 = vadd.f32 %v1716, %v1797
    %v1822 = vadd.f32 %v1717, %v1817
    %1823 = vrot.lane.b32.xlu0 %v1208, 113
    %v1824 = vpop.permute.xlu0 %1823
    %1825 = vrot.lane.b32.xlu0 %v1209, 113
    %v1826 = vpop.permute.xlu0 %1825
    %1827 = vrot.lane.b32.xlu0 %v1210, 113
    %v1828 = vpop.permute.xlu0 %1827
    %1829 = vrot.lane.b32.xlu0 %v1211, 113
    %v1830 = vpop.permute.xlu0 %1829
    %v1831 = vsel %vm826, %v1828, %v1830
    %v1832 = vsel %vm826, %v1826, %v1828
    %v1833 = vsel %vm826, %v1824, %v1826
    %v1834 = vsel %vm826, %v1830, %v1824
    %v1835 = vmul.f32 %v1833, %v832
    %v1836 = vmul.f32 %v1832, %v833
    %v1837 = vmul.f32 %v1831, %v834
    %v1838 = vmul.f32 %v1834, %v835
    %s1839 = scalar_lea.vmem %s4, 48
    %v1840 = vld [vmem:[%s1839] sm:$0xff]
    %v1842 = vsel %vm1248, %v1840, 0
    %1844 = vmatpush.msra.mxu0 0.0
    %1845 = vmatpush.msra.mxu0 0.0
    %1846 = vmatpush.msra.mxu0 0.0
    %1847 = vmatpush.msra.mxu0 0.0
    %1848 = vmatpush.msra.mxu0 0.0
    %1849 = vmatpush.msra.mxu0 0.0
    %1850 = vmatpush.msra.mxu0 0.0
    %1851 = vmatpush.msra.mxu0 0.0
    %1852 = vmatpush.msra.mxu0 0.0
    %1853 = vmatpush.msra.mxu0 0.0
    %1854 = vmatpush.msra.mxu0 0.0
    %1855 = vmatpush.msra.mxu0 0.0
    %1856 = vmatpush.msra.mxu0 0.0
    %1857 = vmatpush.msra.mxu0 0.0
    %1858 = vmatpush.msra.mxu0 0.0
    %1859 = vmatpush.msra.mxu0 %v1835
    %1860 = vmatmul.f32.gmra.mxu0 %v1842
    %v1861 = vpop.f32.mrf.mxu0
    %v1862 = vadd.f32 0.0, %v1861
    %1863 = vdwg.mxu0
    %1864 = vmatpush.msra.mxu0 0.0
    %1865 = vmatpush.msra.mxu0 0.0
    %1866 = vmatpush.msra.mxu0 0.0
    %1867 = vmatpush.msra.mxu0 0.0
    %1868 = vmatpush.msra.mxu0 0.0
    %1869 = vmatpush.msra.mxu0 0.0
    %1870 = vmatpush.msra.mxu0 0.0
    %1871 = vmatpush.msra.mxu0 0.0
    %1872 = vmatpush.msra.mxu0 0.0
    %1873 = vmatpush.msra.mxu0 0.0
    %1874 = vmatpush.msra.mxu0 0.0
    %1875 = vmatpush.msra.mxu0 0.0
    %1876 = vmatpush.msra.mxu0 0.0
    %1877 = vmatpush.msra.mxu0 0.0
    %1878 = vmatpush.msra.mxu0 0.0
    %1879 = vmatpush.msra.mxu0 %v1836
    %1880 = vmatmul.f32.gmra.mxu0 %v1842
    %v1881 = vpop.f32.mrf.mxu0
    %v1882 = vadd.f32 0.0, %v1881
    %1883 = vdwg.mxu0
    %1884 = vmatpush.msra.mxu0 0.0
    %1885 = vmatpush.msra.mxu0 0.0
    %1886 = vmatpush.msra.mxu0 0.0
    %1887 = vmatpush.msra.mxu0 0.0
    %1888 = vmatpush.msra.mxu0 0.0
    %1889 = vmatpush.msra.mxu0 0.0
    %1890 = vmatpush.msra.mxu0 0.0
    %1891 = vmatpush.msra.mxu0 0.0
    %1892 = vmatpush.msra.mxu0 0.0
    %1893 = vmatpush.msra.mxu0 0.0
    %1894 = vmatpush.msra.mxu0 0.0
    %1895 = vmatpush.msra.mxu0 0.0
    %1896 = vmatpush.msra.mxu0 0.0
    %1897 = vmatpush.msra.mxu0 0.0
    %1898 = vmatpush.msra.mxu0 0.0
    %1899 = vmatpush.msra.mxu0 %v1837
    %1900 = vmatmul.f32.gmra.mxu0 %v1842
    %v1901 = vpop.f32.mrf.mxu0
    %v1902 = vadd.f32 0.0, %v1901
    %1903 = vdwg.mxu0
    %1904 = vmatpush.msra.mxu0 0.0
    %1905 = vmatpush.msra.mxu0 0.0
    %1906 = vmatpush.msra.mxu0 0.0
    %1907 = vmatpush.msra.mxu0 0.0
    %1908 = vmatpush.msra.mxu0 0.0
    %1909 = vmatpush.msra.mxu0 0.0
    %1910 = vmatpush.msra.mxu0 0.0
    %1911 = vmatpush.msra.mxu0 0.0
    %1912 = vmatpush.msra.mxu0 0.0
    %1913 = vmatpush.msra.mxu0 0.0
    %1914 = vmatpush.msra.mxu0 0.0
    %1915 = vmatpush.msra.mxu0 0.0
    %1916 = vmatpush.msra.mxu0 0.0
    %1917 = vmatpush.msra.mxu0 0.0
    %1918 = vmatpush.msra.mxu0 0.0
    %1919 = vmatpush.msra.mxu0 %v1838
    %1920 = vmatmul.f32.gmra.mxu0 %v1842
    %v1921 = vpop.f32.mrf.mxu0
    %v1922 = vadd.f32 0.0, %v1921
    %1923 = vdwg.mxu0
    %v1924 = vadd.f32 %v1819, %v1862
    %v1925 = vadd.f32 %v1820, %v1882
    %v1926 = vadd.f32 %v1821, %v1902
    %v1927 = vadd.f32 %v1822, %v1922
    %1928 = vrot.lane.b32.xlu0 %v1208, 112
    %v1929 = vpop.permute.xlu0 %1928
    %1930 = vrot.lane.b32.xlu0 %v1209, 112
    %v1931 = vpop.permute.xlu0 %1930
    %1932 = vrot.lane.b32.xlu0 %v1210, 112
    %v1933 = vpop.permute.xlu0 %1932
    %1934 = vrot.lane.b32.xlu0 %v1211, 112
    %v1935 = vpop.permute.xlu0 %1934
    %v1936 = vsel %vm953, %v1933, %v1935
    %v1937 = vsel %vm953, %v1931, %v1933
    %v1938 = vsel %vm953, %v1929, %v1931
    %v1939 = vsel %vm953, %v1935, %v1929
    %v1940 = vmul.f32 %v1938, %v959
    %v1941 = vmul.f32 %v1937, %v960
    %v1942 = vmul.f32 %v1936, %v961
    %v1943 = vmul.f32 %v1939, %v962
    %s1944 = scalar_lea.vmem %s4, 56
    %v1945 = vld [vmem:[%s1944] sm:$0xff]
    %v1947 = vsel %vm1248, %v1945, 0
    %1949 = vmatpush.msra.mxu0 0.0
    %1950 = vmatpush.msra.mxu0 0.0
    %1951 = vmatpush.msra.mxu0 0.0
    %1952 = vmatpush.msra.mxu0 0.0
    %1953 = vmatpush.msra.mxu0 0.0
    %1954 = vmatpush.msra.mxu0 0.0
    %1955 = vmatpush.msra.mxu0 0.0
    %1956 = vmatpush.msra.mxu0 0.0
    %1957 = vmatpush.msra.mxu0 0.0
    %1958 = vmatpush.msra.mxu0 0.0
    %1959 = vmatpush.msra.mxu0 0.0
    %1960 = vmatpush.msra.mxu0 0.0
    %1961 = vmatpush.msra.mxu0 0.0
    %1962 = vmatpush.msra.mxu0 0.0
    %1963 = vmatpush.msra.mxu0 0.0
    %1964 = vmatpush.msra.mxu0 %v1940
    %1965 = vmatmul.f32.gmra.mxu0 %v1947
    %v1966 = vpop.f32.mrf.mxu0
    %v1967 = vadd.f32 0.0, %v1966
    %1968 = vdwg.mxu0
    %1969 = vmatpush.msra.mxu0 0.0
    %1970 = vmatpush.msra.mxu0 0.0
    %1971 = vmatpush.msra.mxu0 0.0
    %1972 = vmatpush.msra.mxu0 0.0
    %1973 = vmatpush.msra.mxu0 0.0
    %1974 = vmatpush.msra.mxu0 0.0
    %1975 = vmatpush.msra.mxu0 0.0
    %1976 = vmatpush.msra.mxu0 0.0
    %1977 = vmatpush.msra.mxu0 0.0
    %1978 = vmatpush.msra.mxu0 0.0
    %1979 = vmatpush.msra.mxu0 0.0
    %1980 = vmatpush.msra.mxu0 0.0
    %1981 = vmatpush.msra.mxu0 0.0
    %1982 = vmatpush.msra.mxu0 0.0
    %1983 = vmatpush.msra.mxu0 0.0
    %1984 = vmatpush.msra.mxu0 %v1941
    %1985 = vmatmul.f32.gmra.mxu0 %v1947
    %v1986 = vpop.f32.mrf.mxu0
    %v1987 = vadd.f32 0.0, %v1986
    %1988 = vdwg.mxu0
    %1989 = vmatpush.msra.mxu0 0.0
    %1990 = vmatpush.msra.mxu0 0.0
    %1991 = vmatpush.msra.mxu0 0.0
    %1992 = vmatpush.msra.mxu0 0.0
    %1993 = vmatpush.msra.mxu0 0.0
    %1994 = vmatpush.msra.mxu0 0.0
    %1995 = vmatpush.msra.mxu0 0.0
    %1996 = vmatpush.msra.mxu0 0.0
    %1997 = vmatpush.msra.mxu0 0.0
    %1998 = vmatpush.msra.mxu0 0.0
    %1999 = vmatpush.msra.mxu0 0.0
    %2000 = vmatpush.msra.mxu0 0.0
    %2001 = vmatpush.msra.mxu0 0.0
    %2002 = vmatpush.msra.mxu0 0.0
    %2003 = vmatpush.msra.mxu0 0.0
    %2004 = vmatpush.msra.mxu0 %v1942
    %2005 = vmatmul.f32.gmra.mxu0 %v1947
    %v2006 = vpop.f32.mrf.mxu0
    %v2007 = vadd.f32 0.0, %v2006
    %2008 = vdwg.mxu0
    %2009 = vmatpush.msra.mxu0 0.0
    %2010 = vmatpush.msra.mxu0 0.0
    %2011 = vmatpush.msra.mxu0 0.0
    %2012 = vmatpush.msra.mxu0 0.0
    %2013 = vmatpush.msra.mxu0 0.0
    %2014 = vmatpush.msra.mxu0 0.0
    %2015 = vmatpush.msra.mxu0 0.0
    %2016 = vmatpush.msra.mxu0 0.0
    %2017 = vmatpush.msra.mxu0 0.0
    %2018 = vmatpush.msra.mxu0 0.0
    %2019 = vmatpush.msra.mxu0 0.0
    %2020 = vmatpush.msra.mxu0 0.0
    %2021 = vmatpush.msra.mxu0 0.0
    %2022 = vmatpush.msra.mxu0 0.0
    %2023 = vmatpush.msra.mxu0 0.0
    %2024 = vmatpush.msra.mxu0 %v1943
    %2025 = vmatmul.f32.gmra.mxu0 %v1947
    %v2026 = vpop.f32.mrf.mxu0
    %v2027 = vadd.f32 0.0, %v2026
    %2028 = vdwg.mxu0
    %v2029 = vadd.f32 %v1924, %v1967
    %v2030 = vadd.f32 %v1925, %v1987
    %v2031 = vadd.f32 %v1926, %v2007
    %v2032 = vadd.f32 %v1927, %v2027
    %2033 = vrot.lane.b32.xlu0 %v1208, 111
    %v2034 = vpop.permute.xlu0 %2033
    %2035 = vrot.lane.b32.xlu0 %v1209, 111
    %v2036 = vpop.permute.xlu0 %2035
    %2037 = vrot.lane.b32.xlu0 %v1210, 111
    %v2038 = vpop.permute.xlu0 %2037
    %2039 = vrot.lane.b32.xlu0 %v1211, 111
    %v2040 = vpop.permute.xlu0 %2039
    %v2041 = vsel %vm1080, %v2038, %v2040
    %v2042 = vsel %vm1080, %v2036, %v2038
    %v2043 = vsel %vm1080, %v2034, %v2036
    %v2044 = vsel %vm1080, %v2040, %v2034
    %v2045 = vmul.f32 %v2043, %v1086
    %v2046 = vmul.f32 %v2042, %v1087
    %v2047 = vmul.f32 %v2041, %v1088
    %v2048 = vmul.f32 %v2044, %v1089
    %s2049 = scalar_lea.vmem %s4, 64
    %v2050 = vld [vmem:[%s2049] sm:$0xff]
    %v2052 = vsel %vm1248, %v2050, 0
    %2054 = vmatpush.msra.mxu0 0.0
    %2055 = vmatpush.msra.mxu0 0.0
    %2056 = vmatpush.msra.mxu0 0.0
    %2057 = vmatpush.msra.mxu0 0.0
    %2058 = vmatpush.msra.mxu0 0.0
    %2059 = vmatpush.msra.mxu0 0.0
    %2060 = vmatpush.msra.mxu0 0.0
    %2061 = vmatpush.msra.mxu0 0.0
    %2062 = vmatpush.msra.mxu0 0.0
    %2063 = vmatpush.msra.mxu0 0.0
    %2064 = vmatpush.msra.mxu0 0.0
    %2065 = vmatpush.msra.mxu0 0.0
    %2066 = vmatpush.msra.mxu0 0.0
    %2067 = vmatpush.msra.mxu0 0.0
    %2068 = vmatpush.msra.mxu0 0.0
    %2069 = vmatpush.msra.mxu0 %v2045
    %2070 = vmatmul.f32.gmra.mxu0 %v2052
    %v2071 = vpop.f32.mrf.mxu0
    %v2072 = vadd.f32 0.0, %v2071
    %2073 = vdwg.mxu0
    %2074 = vmatpush.msra.mxu0 0.0
    %2075 = vmatpush.msra.mxu0 0.0
    %2076 = vmatpush.msra.mxu0 0.0
    %2077 = vmatpush.msra.mxu0 0.0
    %2078 = vmatpush.msra.mxu0 0.0
    %2079 = vmatpush.msra.mxu0 0.0
    %2080 = vmatpush.msra.mxu0 0.0
    %2081 = vmatpush.msra.mxu0 0.0
    %2082 = vmatpush.msra.mxu0 0.0
    %2083 = vmatpush.msra.mxu0 0.0
    %2084 = vmatpush.msra.mxu0 0.0
    %2085 = vmatpush.msra.mxu0 0.0
    %2086 = vmatpush.msra.mxu0 0.0
    %2087 = vmatpush.msra.mxu0 0.0
    %2088 = vmatpush.msra.mxu0 0.0
    %2089 = vmatpush.msra.mxu0 %v2046
    %2090 = vmatmul.f32.gmra.mxu0 %v2052
    %v2091 = vpop.f32.mrf.mxu0
    %v2092 = vadd.f32 0.0, %v2091
    %2093 = vdwg.mxu0
    %2094 = vmatpush.msra.mxu0 0.0
    %2095 = vmatpush.msra.mxu0 0.0
    %2096 = vmatpush.msra.mxu0 0.0
    %2097 = vmatpush.msra.mxu0 0.0
    %2098 = vmatpush.msra.mxu0 0.0
    %2099 = vmatpush.msra.mxu0 0.0
    %2100 = vmatpush.msra.mxu0 0.0
    %2101 = vmatpush.msra.mxu0 0.0
    %2102 = vmatpush.msra.mxu0 0.0
    %2103 = vmatpush.msra.mxu0 0.0
    %2104 = vmatpush.msra.mxu0 0.0
    %2105 = vmatpush.msra.mxu0 0.0
    %2106 = vmatpush.msra.mxu0 0.0
    %2107 = vmatpush.msra.mxu0 0.0
    %2108 = vmatpush.msra.mxu0 0.0
    %2109 = vmatpush.msra.mxu0 %v2047
    %2110 = vmatmul.f32.gmra.mxu0 %v2052
    %v2111 = vpop.f32.mrf.mxu0
    %v2112 = vadd.f32 0.0, %v2111
    %2113 = vdwg.mxu0
    %2114 = vmatpush.msra.mxu0 0.0
    %2115 = vmatpush.msra.mxu0 0.0
    %2116 = vmatpush.msra.mxu0 0.0
    %2117 = vmatpush.msra.mxu0 0.0
    %2118 = vmatpush.msra.mxu0 0.0
    %2119 = vmatpush.msra.mxu0 0.0
    %2120 = vmatpush.msra.mxu0 0.0
    %2121 = vmatpush.msra.mxu0 0.0
    %2122 = vmatpush.msra.mxu0 0.0
    %2123 = vmatpush.msra.mxu0 0.0
    %2124 = vmatpush.msra.mxu0 0.0
    %2125 = vmatpush.msra.mxu0 0.0
    %2126 = vmatpush.msra.mxu0 0.0
    %2127 = vmatpush.msra.mxu0 0.0
    %2128 = vmatpush.msra.mxu0 0.0
    %2129 = vmatpush.msra.mxu0 %v2048
    %2130 = vmatmul.f32.gmra.mxu0 %v2052
    %v2131 = vpop.f32.mrf.mxu0
    %v2132 = vadd.f32 0.0, %v2131
    %2133 = vdwg.mxu0
    %v2134 = vadd.f32 %v2029, %v2072
    %v2135 = vadd.f32 %v2030, %v2092
    %v2136 = vadd.f32 %v2031, %v2112
    %v2137 = vadd.f32 %v2032, %v2132
    %2139 = vset.pattern.permute.xlu0 0
    %2140 = vperm.xlu0 %2139, %v1212
    %v2141 = vpop.permute.xlu0 %2140
    %v2143 = vadd.f32 %v2134, %v2141
    %v2144 = vadd.f32 %v2135, %v2141
    %v2145 = vadd.f32 %v2136, %v2141
    %v2146 = vadd.f32 %v2137, %v2141
    %v2147 = vmax.f32 %v2143, 0.0
    %v2148 = vmax.f32 %v2144, 0.0
    %v2149 = vmax.f32 %v2145, 0.0
    %v2150 = vmax.f32 %v2146, 0.0
    %v2151 = vld [vmem:[#allocation2] sm:$0xff]
    %v2152 = vld [vmem:[#allocation2 + $0x8] sm:$0xff]
    %v2153 = vld [vmem:[#allocation2 + $0x10] sm:$0xff]
    %v2154 = vld [vmem:[#allocation2 + $0x18] sm:$0xff]
    %v2155 = vld [vmem:[#allocation2 + $0x20] sm:$0xff]
    %v2156 = vld [vmem:[#allocation2 + $0x28] sm:$0xff]
    %v2157 = vld [vmem:[#allocation2 + $0x30] sm:$0xff]
    %v2158 = vld [vmem:[#allocation2 + $0x38] sm:$0xff]
    %v2159 = vld [vmem:[#allocation2 + $0x40] sm:$0xff]
    %v2160 = vld [vmem:[#allocation2 + $0x48] sm:$0xff]
    %v2161 = vld [vmem:[#allocation2 + $0x50] sm:$0xff]
    %v2162 = vld [vmem:[#allocation2 + $0x58] sm:$0xff]
    %v2163 = vld [vmem:[#allocation2 + $0x60] sm:$0xff]
    %v2164 = vld [vmem:[#allocation2 + $0x68] sm:$0xff]
    %v2165 = vld [vmem:[#allocation2 + $0x70] sm:$0xff]
    %v2166 = vld [vmem:[#allocation2 + $0x78] sm:$0xff]
    %v2167 = vld [vmem:[#allocation2 + $0x80] sm:$0xff]
    %v2168 = vld [vmem:[#allocation2 + $0x88] sm:$0xff]
    %v2169 = vld [vmem:[#allocation2 + $0x90] sm:$0xff]
    %v2170 = vld [vmem:[#allocation2 + $0x98] sm:$0xff]
    %v2171 = vld [vmem:[#allocation2 + $0xa0] sm:$0xff]
    %v2172 = vld [vmem:[#allocation2 + $0xa8] sm:$0xff]
    %v2173 = vld [vmem:[#allocation2 + $0xb0] sm:$0xff]
    %v2174 = vld [vmem:[#allocation2 + $0xb8] sm:$0xff]
    %v2175 = vld [vmem:[#allocation2 + $0xc0] sm:$0xff]
    %v2176 = vld [vmem:[#allocation2 + $0xc8] sm:$0xff]
    %v2177 = vld [vmem:[#allocation2 + $0xd0] sm:$0xff]
    %v2178 = vld [vmem:[#allocation2 + $0xd8] sm:$0xff]
    %v2179 = vld [vmem:[#allocation2 + $0xe0] sm:$0xff]
    %v2180 = vld [vmem:[#allocation2 + $0xe8] sm:$0xff]
    %v2181 = vld [vmem:[#allocation2 + $0xf0] sm:$0xff]
    %v2182 = vld [vmem:[#allocation2 + $0xf8] sm:$0xff]
    %v2183 = vld [vmem:[#allocation2 + $0x100] sm:$0xff]
    %v2184 = vld [vmem:[#allocation2 + $0x108] sm:$0xff]
    %v2185 = vld [vmem:[#allocation2 + $0x110] sm:$0xff]
    %v2186 = vld [vmem:[#allocation2 + $0x118] sm:$0xff]
    %v2187 = vld [vmem:[#allocation2 + $0x120] sm:$0xff]
    %v2188 = vld [vmem:[#allocation2 + $0x128] sm:$0xff]
    %v2189 = vld [vmem:[#allocation2 + $0x130] sm:$0xff]
    %v2190 = vld [vmem:[#allocation2 + $0x138] sm:$0xff]
    %v2191 = vld [vmem:[#allocation2 + $0x140] sm:$0xff]
    %v2192 = vld [vmem:[#allocation2 + $0x148] sm:$0xff]
    %v2193 = vld [vmem:[#allocation2 + $0x150] sm:$0xff]
    %v2194 = vld [vmem:[#allocation2 + $0x158] sm:$0xff]
    %v2195 = vld [vmem:[#allocation2 + $0x160] sm:$0xff]
    %v2196 = vld [vmem:[#allocation2 + $0x168] sm:$0xff]
    %v2197 = vld [vmem:[#allocation2 + $0x170] sm:$0xff]
    %v2198 = vld [vmem:[#allocation2 + $0x178] sm:$0xff]
    %v2199 = vld [vmem:[#allocation2 + $0x180] sm:$0xff]
    %v2200 = vld [vmem:[#allocation2 + $0x188] sm:$0xff]
    %v2201 = vld [vmem:[#allocation2 + $0x190] sm:$0xff]
    %v2202 = vld [vmem:[#allocation2 + $0x198] sm:$0xff]
    %v2203 = vld [vmem:[#allocation2 + $0x1a0] sm:$0xff]
    %v2204 = vld [vmem:[#allocation2 + $0x1a8] sm:$0xff]
    %v2205 = vld [vmem:[#allocation2 + $0x1b0] sm:$0xff]
    %v2206 = vld [vmem:[#allocation2 + $0x1b8] sm:$0xff]
    %v2207 = vld [vmem:[#allocation2 + $0x1c0] sm:$0xff]
    %v2208 = vld [vmem:[#allocation2 + $0x1c8] sm:$0xff]
    %v2209 = vld [vmem:[#allocation2 + $0x1d0] sm:$0xff]
    %v2210 = vld [vmem:[#allocation2 + $0x1d8] sm:$0xff]
    %v2211 = vld [vmem:[#allocation2 + $0x1e0] sm:$0xff]
    %v2212 = vld [vmem:[#allocation2 + $0x1e8] sm:$0xff]
    %v2213 = vld [vmem:[#allocation2 + $0x1f0] sm:$0xff]
    %v2214 = vld [vmem:[#allocation2 + $0x1f8] sm:$0xff]
    %v2215 = vld [vmem:[#allocation2 + $0x200] sm:$0xff]
    %v2216 = vld [vmem:[#allocation2 + $0x208] sm:$0xff]
    %v2217 = vld [vmem:[#allocation2 + $0x210] sm:$0xff]
    %v2218 = vld [vmem:[#allocation2 + $0x218] sm:$0xff]
    %v2219 = vld [vmem:[#allocation2 + $0x220] sm:$0xff]
    %v2220 = vld [vmem:[#allocation2 + $0x228] sm:$0xff]
    %v2221 = vld [vmem:[#allocation2 + $0x230] sm:$0xff]
    %v2222 = vld [vmem:[#allocation2 + $0x238] sm:$0xff]
    %v2223 = vld [vmem:[#allocation2 + $0x240] sm:$0xff]
    %v2224 = vld [vmem:[#allocation2 + $0x248] sm:$0xff]
    %v2225 = vld [vmem:[#allocation2 + $0x250] sm:$0xff]
    %v2226 = vld [vmem:[#allocation2 + $0x258] sm:$0xff]
    %v2227 = vld [vmem:[#allocation2 + $0x260] sm:$0xff]
    %v2228 = vld [vmem:[#allocation2 + $0x268] sm:$0xff]
    %v2229 = vld [vmem:[#allocation2 + $0x270] sm:$0xff]
    %v2230 = vld [vmem:[#allocation2 + $0x278] sm:$0xff]
    %v2231 = vld [vmem:[#allocation2 + $0x280] sm:$0xff]
    %v2232 = vld [vmem:[#allocation2 + $0x288] sm:$0xff]
    %v2233 = vld [vmem:[#allocation2 + $0x290] sm:$0xff]
    %v2234 = vld [vmem:[#allocation2 + $0x298] sm:$0xff]
    %v2235 = vld [vmem:[#allocation2 + $0x2a0] sm:$0xff]
    %v2236 = vld [vmem:[#allocation2 + $0x2a8] sm:$0xff]
    %v2237 = vld [vmem:[#allocation2 + $0x2b0] sm:$0xff]
    %v2238 = vld [vmem:[#allocation2 + $0x2b8] sm:$0xff]
    %v2239 = vld [vmem:[#allocation2 + $0x2c0] sm:$0xff]
    %v2240 = vld [vmem:[#allocation2 + $0x2c8] sm:$0xff]
    %v2241 = vld [vmem:[#allocation2 + $0x2d0] sm:$0xff]
    %v2242 = vld [vmem:[#allocation2 + $0x2d8] sm:$0xff]
    %v2243 = vld [vmem:[#allocation2 + $0x2e0] sm:$0xff]
    %v2244 = vld [vmem:[#allocation2 + $0x2e8] sm:$0xff]
    %v2245 = vld [vmem:[#allocation2 + $0x2f0] sm:$0xff]
    %v2246 = vld [vmem:[#allocation2 + $0x2f8] sm:$0xff]
    %v2247 = vld [vmem:[#allocation2 + $0x300] sm:$0xff]
    %v2248 = vld [vmem:[#allocation2 + $0x308] sm:$0xff]
    %v2249 = vld [vmem:[#allocation2 + $0x310] sm:$0xff]
    %v2250 = vld [vmem:[#allocation2 + $0x318] sm:$0xff]
    %v2251 = vld [vmem:[#allocation2 + $0x320] sm:$0xff]
    %v2252 = vld [vmem:[#allocation2 + $0x328] sm:$0xff]
    %v2253 = vld [vmem:[#allocation2 + $0x330] sm:$0xff]
    %v2254 = vld [vmem:[#allocation2 + $0x338] sm:$0xff]
    %v2255 = vld [vmem:[#allocation2 + $0x340] sm:$0xff]
    %v2256 = vld [vmem:[#allocation2 + $0x348] sm:$0xff]
    %v2257 = vld [vmem:[#allocation2 + $0x350] sm:$0xff]
    %v2258 = vld [vmem:[#allocation2 + $0x358] sm:$0xff]
    %v2259 = vld [vmem:[#allocation2 + $0x360] sm:$0xff]
    %v2260 = vld [vmem:[#allocation2 + $0x368] sm:$0xff]
    %v2261 = vld [vmem:[#allocation2 + $0x370] sm:$0xff]
    %v2262 = vld [vmem:[#allocation2 + $0x378] sm:$0xff]
    %v2263 = vld [vmem:[#allocation2 + $0x380] sm:$0xff]
    %v2264 = vld [vmem:[#allocation2 + $0x388] sm:$0xff]
    %v2265 = vld [vmem:[#allocation2 + $0x390] sm:$0xff]
    %v2266 = vld [vmem:[#allocation2 + $0x398] sm:$0xff]
    %v2267 = vld [vmem:[#allocation2 + $0x3a0] sm:$0xff]
    %v2268 = vld [vmem:[#allocation2 + $0x3a8] sm:$0xff]
    %v2269 = vld [vmem:[#allocation2 + $0x3b0] sm:$0xff]
    %v2270 = vld [vmem:[#allocation2 + $0x3b8] sm:$0xff]
    %v2271 = vld [vmem:[#allocation2 + $0x3c0] sm:$0xff]
    %v2272 = vld [vmem:[#allocation2 + $0x3c8] sm:$0xff]
    %v2273 = vld [vmem:[#allocation2 + $0x3d0] sm:$0xff]
    %v2274 = vld [vmem:[#allocation2 + $0x3d8] sm:$0xff]
    %v2275 = vld [vmem:[#allocation2 + $0x3e0] sm:$0xff]
    %v2276 = vld [vmem:[#allocation2 + $0x3e8] sm:$0xff]
    %v2277 = vld [vmem:[#allocation2 + $0x3f0] sm:$0xff]
    %v2278 = vld [vmem:[#allocation2 + $0x3f8] sm:$0xff]
    %v2279 = vld [vmem:[#allocation2 + $0x400] sm:$0xff]
    %v2280 = vld [vmem:[#allocation2 + $0x408] sm:$0xff]
    %v2281 = vld [vmem:[#allocation2 + $0x410] sm:$0xff]
    %v2282 = vld [vmem:[#allocation2 + $0x418] sm:$0xff]
    %v2283 = vld [vmem:[#allocation2 + $0x420] sm:$0xff]
    %v2284 = vld [vmem:[#allocation2 + $0x428] sm:$0xff]
    %v2285 = vld [vmem:[#allocation2 + $0x430] sm:$0xff]
    %v2286 = vld [vmem:[#allocation2 + $0x438] sm:$0xff]
    %v2287 = vld [vmem:[#allocation2 + $0x440] sm:$0xff]
    %v2288 = vld [vmem:[#allocation2 + $0x448] sm:$0xff]
    %v2289 = vld [vmem:[#allocation2 + $0x450] sm:$0xff]
    %v2290 = vld [vmem:[#allocation2 + $0x458] sm:$0xff]
    %v2291 = vld [vmem:[#allocation2 + $0x460] sm:$0xff]
    %v2292 = vld [vmem:[#allocation2 + $0x468] sm:$0xff]
    %v2293 = vld [vmem:[#allocation2 + $0x470] sm:$0xff]
    %v2294 = vld [vmem:[#allocation2 + $0x478] sm:$0xff]
    %v2295 = vld [vmem:[#allocation2 + $0x480] sm:$0xff]
    %v2296 = vld [vmem:[#allocation2 + $0x488] sm:$0xff]
    %v2297 = vld [vmem:[#allocation2 + $0x490] sm:$0xff]
    %v2298 = vld [vmem:[#allocation2 + $0x498] sm:$0xff]
    %v2299 = vld [vmem:[#allocation2 + $0x4a0] sm:$0xff]
    %v2300 = vld [vmem:[#allocation2 + $0x4a8] sm:$0xff]
    %v2301 = vld [vmem:[#allocation2 + $0x4b0] sm:$0xff]
    %v2302 = vld [vmem:[#allocation2 + $0x4b8] sm:$0xff]
    %v2303 = vld [vmem:[#allocation2 + $0x4c0] sm:$0xff]
    %v2304 = vld [vmem:[#allocation2 + $0x4c8] sm:$0xff]
    %v2305 = vld [vmem:[#allocation2 + $0x4d0] sm:$0xff]
    %v2306 = vld [vmem:[#allocation2 + $0x4d8] sm:$0xff]
    %v2307 = vld [vmem:[#allocation2 + $0x4e0] sm:$0xff]
    %v2308 = vld [vmem:[#allocation2 + $0x4e8] sm:$0xff]
    %v2309 = vld [vmem:[#allocation2 + $0x4f0] sm:$0xff]
    %v2310 = vld [vmem:[#allocation2 + $0x4f8] sm:$0xff]
    %2311 = vmatpush.msra.mxu0 %v2226
    %2312 = vmatpush.msra.mxu0 %v2221
    %2313 = vmatpush.msra.mxu0 %v2216
    %2314 = vmatpush.msra.mxu0 %v2211
    %2315 = vmatpush.msra.mxu0 %v2206
    %2316 = vmatpush.msra.mxu0 %v2201
    %2317 = vmatpush.msra.mxu0 %v2196
    %2318 = vmatpush.msra.mxu0 %v2191
    %2319 = vmatpush.msra.mxu0 %v2186
    %2320 = vmatpush.msra.mxu0 %v2181
    %2321 = vmatpush.msra.mxu0 %v2176
    %2322 = vmatpush.msra.mxu0 %v2171
    %2323 = vmatpush.msra.mxu0 %v2166
    %2324 = vmatpush.msra.mxu0 %v2161
    %2325 = vmatpush.msra.mxu0 %v2156
    %2326 = vmatpush.msra.mxu0 %v2151
    %2327 = vmatmul.f32.gmra.mxu0 %v2147
    %v2328 = vpop.f32.mrf.mxu0
    %v2329 = vadd.f32 0.0, %v2328
    %2330 = vdwg.mxu0
    %2331 = vmatpush.msra.mxu0 %v2306
    %2332 = vmatpush.msra.mxu0 %v2301
    %2333 = vmatpush.msra.mxu0 %v2296
    %2334 = vmatpush.msra.mxu0 %v2291
    %2335 = vmatpush.msra.mxu0 %v2286
    %2336 = vmatpush.msra.mxu0 %v2281
    %2337 = vmatpush.msra.mxu0 %v2276
    %2338 = vmatpush.msra.mxu0 %v2271
    %2339 = vmatpush.msra.mxu0 %v2266
    %2340 = vmatpush.msra.mxu0 %v2261
    %2341 = vmatpush.msra.mxu0 %v2256
    %2342 = vmatpush.msra.mxu0 %v2251
    %2343 = vmatpush.msra.mxu0 %v2246
    %2344 = vmatpush.msra.mxu0 %v2241
    %2345 = vmatpush.msra.mxu0 %v2236
    %2346 = vmatpush.msra.mxu0 %v2231
    %2347 = vmatmul.f32.gmra.mxu0 %v2148
    %v2348 = vpop.f32.mrf.mxu0
    %v2349 = vadd.f32 %v2329, %v2348
    %2350 = vdwg.mxu0
    %2351 = vmatpush.msra.mxu0 %v2227
    %2352 = vmatpush.msra.mxu0 %v2222
    %2353 = vmatpush.msra.mxu0 %v2217
    %2354 = vmatpush.msra.mxu0 %v2212
    %2355 = vmatpush.msra.mxu0 %v2207
    %2356 = vmatpush.msra.mxu0 %v2202
    %2357 = vmatpush.msra.mxu0 %v2197
    %2358 = vmatpush.msra.mxu0 %v2192
    %2359 = vmatpush.msra.mxu0 %v2187
    %2360 = vmatpush.msra.mxu0 %v2182
    %2361 = vmatpush.msra.mxu0 %v2177
    %2362 = vmatpush.msra.mxu0 %v2172
    %2363 = vmatpush.msra.mxu0 %v2167
    %2364 = vmatpush.msra.mxu0 %v2162
    %2365 = vmatpush.msra.mxu0 %v2157
    %2366 = vmatpush.msra.mxu0 %v2152
    %2367 = vmatmul.f32.gmra.mxu0 %v2147
    %v2368 = vpop.f32.mrf.mxu0
    %v2369 = vadd.f32 0.0, %v2368
    %2370 = vdwg.mxu0
    %2371 = vmatpush.msra.mxu0 %v2307
    %2372 = vmatpush.msra.mxu0 %v2302
    %2373 = vmatpush.msra.mxu0 %v2297
    %2374 = vmatpush.msra.mxu0 %v2292
    %2375 = vmatpush.msra.mxu0 %v2287
    %2376 = vmatpush.msra.mxu0 %v2282
    %2377 = vmatpush.msra.mxu0 %v2277
    %2378 = vmatpush.msra.mxu0 %v2272
    %2379 = vmatpush.msra.mxu0 %v2267
    %2380 = vmatpush.msra.mxu0 %v2262
    %2381 = vmatpush.msra.mxu0 %v2257
    %2382 = vmatpush.msra.mxu0 %v2252
    %2383 = vmatpush.msra.mxu0 %v2247
    %2384 = vmatpush.msra.mxu0 %v2242
    %2385 = vmatpush.msra.mxu0 %v2237
    %2386 = vmatpush.msra.mxu0 %v2232
    %2387 = vmatmul.f32.gmra.mxu0 %v2148
    %v2388 = vpop.f32.mrf.mxu0
    %v2389 = vadd.f32 %v2369, %v2388
    %2390 = vdwg.mxu0
    %2391 = vmatpush.msra.mxu0 %v2228
    %2392 = vmatpush.msra.mxu0 %v2223
    %2393 = vmatpush.msra.mxu0 %v2218
    %2394 = vmatpush.msra.mxu0 %v2213
    %2395 = vmatpush.msra.mxu0 %v2208
    %2396 = vmatpush.msra.mxu0 %v2203
    %2397 = vmatpush.msra.mxu0 %v2198
    %2398 = vmatpush.msra.mxu0 %v2193
    %2399 = vmatpush.msra.mxu0 %v2188
    %2400 = vmatpush.msra.mxu0 %v2183
    %2401 = vmatpush.msra.mxu0 %v2178
    %2402 = vmatpush.msra.mxu0 %v2173
    %2403 = vmatpush.msra.mxu0 %v2168
    %2404 = vmatpush.msra.mxu0 %v2163
    %2405 = vmatpush.msra.mxu0 %v2158
    %2406 = vmatpush.msra.mxu0 %v2153
    %2407 = vmatmul.f32.gmra.mxu0 %v2147
    %v2408 = vpop.f32.mrf.mxu0
    %v2409 = vadd.f32 0.0, %v2408
    %2410 = vdwg.mxu0
    %2411 = vmatpush.msra.mxu0 %v2308
    %2412 = vmatpush.msra.mxu0 %v2303
    %2413 = vmatpush.msra.mxu0 %v2298
    %2414 = vmatpush.msra.mxu0 %v2293
    %2415 = vmatpush.msra.mxu0 %v2288
    %2416 = vmatpush.msra.mxu0 %v2283
    %2417 = vmatpush.msra.mxu0 %v2278
    %2418 = vmatpush.msra.mxu0 %v2273
    %2419 = vmatpush.msra.mxu0 %v2268
    %2420 = vmatpush.msra.mxu0 %v2263
    %2421 = vmatpush.msra.mxu0 %v2258
    %2422 = vmatpush.msra.mxu0 %v2253
    %2423 = vmatpush.msra.mxu0 %v2248
    %2424 = vmatpush.msra.mxu0 %v2243
    %2425 = vmatpush.msra.mxu0 %v2238
    %2426 = vmatpush.msra.mxu0 %v2233
    %2427 = vmatmul.f32.gmra.mxu0 %v2148
    %v2428 = vpop.f32.mrf.mxu0
    %v2429 = vadd.f32 %v2409, %v2428
    %2430 = vdwg.mxu0
    %2431 = vmatpush.msra.mxu0 %v2229
    %2432 = vmatpush.msra.mxu0 %v2224
    %2433 = vmatpush.msra.mxu0 %v2219
    %2434 = vmatpush.msra.mxu0 %v2214
    %2435 = vmatpush.msra.mxu0 %v2209
    %2436 = vmatpush.msra.mxu0 %v2204
    %2437 = vmatpush.msra.mxu0 %v2199
    %2438 = vmatpush.msra.mxu0 %v2194
    %2439 = vmatpush.msra.mxu0 %v2189
    %2440 = vmatpush.msra.mxu0 %v2184
    %2441 = vmatpush.msra.mxu0 %v2179
    %2442 = vmatpush.msra.mxu0 %v2174
    %2443 = vmatpush.msra.mxu0 %v2169
    %2444 = vmatpush.msra.mxu0 %v2164
    %2445 = vmatpush.msra.mxu0 %v2159
    %2446 = vmatpush.msra.mxu0 %v2154
    %2447 = vmatmul.f32.gmra.mxu0 %v2147
    %v2448 = vpop.f32.mrf.mxu0
    %v2449 = vadd.f32 0.0, %v2448
    %2450 = vdwg.mxu0
    %2451 = vmatpush.msra.mxu0 %v2309
    %2452 = vmatpush.msra.mxu0 %v2304
    %2453 = vmatpush.msra.mxu0 %v2299
    %2454 = vmatpush.msra.mxu0 %v2294
    %2455 = vmatpush.msra.mxu0 %v2289
    %2456 = vmatpush.msra.mxu0 %v2284
    %2457 = vmatpush.msra.mxu0 %v2279
    %2458 = vmatpush.msra.mxu0 %v2274
    %2459 = vmatpush.msra.mxu0 %v2269
    %2460 = vmatpush.msra.mxu0 %v2264
    %2461 = vmatpush.msra.mxu0 %v2259
    %2462 = vmatpush.msra.mxu0 %v2254
    %2463 = vmatpush.msra.mxu0 %v2249
    %2464 = vmatpush.msra.mxu0 %v2244
    %2465 = vmatpush.msra.mxu0 %v2239
    %2466 = vmatpush.msra.mxu0 %v2234
    %2467 = vmatmul.f32.gmra.mxu0 %v2148
    %v2468 = vpop.f32.mrf.mxu0
    %v2469 = vadd.f32 %v2449, %v2468
    %2470 = vdwg.mxu0
    %2471 = vmatpush.msra.mxu0 %v2230
    %2472 = vmatpush.msra.mxu0 %v2225
    %2473 = vmatpush.msra.mxu0 %v2220
    %2474 = vmatpush.msra.mxu0 %v2215
    %2475 = vmatpush.msra.mxu0 %v2210
    %2476 = vmatpush.msra.mxu0 %v2205
    %2477 = vmatpush.msra.mxu0 %v2200
    %2478 = vmatpush.msra.mxu0 %v2195
    %2479 = vmatpush.msra.mxu0 %v2190
    %2480 = vmatpush.msra.mxu0 %v2185
    %2481 = vmatpush.msra.mxu0 %v2180
    %2482 = vmatpush.msra.mxu0 %v2175
    %2483 = vmatpush.msra.mxu0 %v2170
    %2484 = vmatpush.msra.mxu0 %v2165
    %2485 = vmatpush.msra.mxu0 %v2160
    %2486 = vmatpush.msra.mxu0 %v2155
    %2487 = vmatmul.f32.gmra.mxu0 %v2147
    %v2488 = vpop.f32.mrf.mxu0
    %v2489 = vadd.f32 0.0, %v2488
    %2490 = vdwg.mxu0
    %2491 = vmatpush.msra.mxu0 %v2310
    %2492 = vmatpush.msra.mxu0 %v2305
    %2493 = vmatpush.msra.mxu0 %v2300
    %2494 = vmatpush.msra.mxu0 %v2295
    %2495 = vmatpush.msra.mxu0 %v2290
    %2496 = vmatpush.msra.mxu0 %v2285
    %2497 = vmatpush.msra.mxu0 %v2280
    %2498 = vmatpush.msra.mxu0 %v2275
    %2499 = vmatpush.msra.mxu0 %v2270
    %2500 = vmatpush.msra.mxu0 %v2265
    %2501 = vmatpush.msra.mxu0 %v2260
    %2502 = vmatpush.msra.mxu0 %v2255
    %2503 = vmatpush.msra.mxu0 %v2250
    %2504 = vmatpush.msra.mxu0 %v2245
    %2505 = vmatpush.msra.mxu0 %v2240
    %2506 = vmatpush.msra.mxu0 %v2235
    %2507 = vmatmul.f32.gmra.mxu0 %v2148
    %v2508 = vpop.f32.mrf.mxu0
    %v2509 = vadd.f32 %v2489, %v2508
    %2510 = vdwg.mxu0
    %2511 = vst [vmem:[%s7] sm:$0xff] %v2349
    %2512 = vst [vmem:[%s7 + $0x8] sm:$0xff] %v2389
    %2513 = vst [vmem:[%s7 + $0x10] sm:$0xff] %v2429
    %2514 = vst [vmem:[%s7 + $0x18] sm:$0xff] %v2469
    %vm2515 = vcmask 523264
    %2516 = vst.msk [vmem:[%s7 + $0x20] sm:$0xff] %vm2515, %v2509
    %v2517 = vld [vmem:[#allocation2] sm:$0xff]
    %v2518 = vld [vmem:[#allocation2 + $0x8] sm:$0xff]
    %v2519 = vld [vmem:[#allocation2 + $0x10] sm:$0xff]
    %v2520 = vld [vmem:[#allocation2 + $0x18] sm:$0xff]
    %v2521 = vld [vmem:[#allocation2 + $0x20] sm:$0xff]
    %v2522 = vld [vmem:[#allocation2 + $0x28] sm:$0xff]
    %v2523 = vld [vmem:[#allocation2 + $0x30] sm:$0xff]
    %v2524 = vld [vmem:[#allocation2 + $0x38] sm:$0xff]
    %v2525 = vld [vmem:[#allocation2 + $0x40] sm:$0xff]
    %v2526 = vld [vmem:[#allocation2 + $0x48] sm:$0xff]
    %v2527 = vld [vmem:[#allocation2 + $0x50] sm:$0xff]
    %v2528 = vld [vmem:[#allocation2 + $0x58] sm:$0xff]
    %v2529 = vld [vmem:[#allocation2 + $0x60] sm:$0xff]
    %v2530 = vld [vmem:[#allocation2 + $0x68] sm:$0xff]
    %v2531 = vld [vmem:[#allocation2 + $0x70] sm:$0xff]
    %v2532 = vld [vmem:[#allocation2 + $0x78] sm:$0xff]
    %v2533 = vld [vmem:[#allocation2 + $0x80] sm:$0xff]
    %v2534 = vld [vmem:[#allocation2 + $0x88] sm:$0xff]
    %v2535 = vld [vmem:[#allocation2 + $0x90] sm:$0xff]
    %v2536 = vld [vmem:[#allocation2 + $0x98] sm:$0xff]
    %v2537 = vld [vmem:[#allocation2 + $0xa0] sm:$0xff]
    %v2538 = vld [vmem:[#allocation2 + $0xa8] sm:$0xff]
    %v2539 = vld [vmem:[#allocation2 + $0xb0] sm:$0xff]
    %v2540 = vld [vmem:[#allocation2 + $0xb8] sm:$0xff]
    %v2541 = vld [vmem:[#allocation2 + $0xc0] sm:$0xff]
    %v2542 = vld [vmem:[#allocation2 + $0xc8] sm:$0xff]
    %v2543 = vld [vmem:[#allocation2 + $0xd0] sm:$0xff]
    %v2544 = vld [vmem:[#allocation2 + $0xd8] sm:$0xff]
    %v2545 = vld [vmem:[#allocation2 + $0xe0] sm:$0xff]
    %v2546 = vld [vmem:[#allocation2 + $0xe8] sm:$0xff]
    %v2547 = vld [vmem:[#allocation2 + $0xf0] sm:$0xff]
    %v2548 = vld [vmem:[#allocation2 + $0xf8] sm:$0xff]
    %v2549 = vld [vmem:[#allocation2 + $0x100] sm:$0xff]
    %v2550 = vld [vmem:[#allocation2 + $0x108] sm:$0xff]
    %v2551 = vld [vmem:[#allocation2 + $0x110] sm:$0xff]
    %v2552 = vld [vmem:[#allocation2 + $0x118] sm:$0xff]
    %v2553 = vld [vmem:[#allocation2 + $0x120] sm:$0xff]
    %v2554 = vld [vmem:[#allocation2 + $0x128] sm:$0xff]
    %v2555 = vld [vmem:[#allocation2 + $0x130] sm:$0xff]
    %v2556 = vld [vmem:[#allocation2 + $0x138] sm:$0xff]
    %v2557 = vld [vmem:[#allocation2 + $0x140] sm:$0xff]
    %v2558 = vld [vmem:[#allocation2 + $0x148] sm:$0xff]
    %v2559 = vld [vmem:[#allocation2 + $0x150] sm:$0xff]
    %v2560 = vld [vmem:[#allocation2 + $0x158] sm:$0xff]
    %v2561 = vld [vmem:[#allocation2 + $0x160] sm:$0xff]
    %v2562 = vld [vmem:[#allocation2 + $0x168] sm:$0xff]
    %v2563 = vld [vmem:[#allocation2 + $0x170] sm:$0xff]
    %v2564 = vld [vmem:[#allocation2 + $0x178] sm:$0xff]
    %v2565 = vld [vmem:[#allocation2 + $0x180] sm:$0xff]
    %v2566 = vld [vmem:[#allocation2 + $0x188] sm:$0xff]
    %v2567 = vld [vmem:[#allocation2 + $0x190] sm:$0xff]
    %v2568 = vld [vmem:[#allocation2 + $0x198] sm:$0xff]
    %v2569 = vld [vmem:[#allocation2 + $0x1a0] sm:$0xff]
    %v2570 = vld [vmem:[#allocation2 + $0x1a8] sm:$0xff]
    %v2571 = vld [vmem:[#allocation2 + $0x1b0] sm:$0xff]
    %v2572 = vld [vmem:[#allocation2 + $0x1b8] sm:$0xff]
    %v2573 = vld [vmem:[#allocation2 + $0x1c0] sm:$0xff]
    %v2574 = vld [vmem:[#allocation2 + $0x1c8] sm:$0xff]
    %v2575 = vld [vmem:[#allocation2 + $0x1d0] sm:$0xff]
    %v2576 = vld [vmem:[#allocation2 + $0x1d8] sm:$0xff]
    %v2577 = vld [vmem:[#allocation2 + $0x1e0] sm:$0xff]
    %v2578 = vld [vmem:[#allocation2 + $0x1e8] sm:$0xff]
    %v2579 = vld [vmem:[#allocation2 + $0x1f0] sm:$0xff]
    %v2580 = vld [vmem:[#allocation2 + $0x1f8] sm:$0xff]
    %v2581 = vld [vmem:[#allocation2 + $0x200] sm:$0xff]
    %v2582 = vld [vmem:[#allocation2 + $0x208] sm:$0xff]
    %v2583 = vld [vmem:[#allocation2 + $0x210] sm:$0xff]
    %v2584 = vld [vmem:[#allocation2 + $0x218] sm:$0xff]
    %v2585 = vld [vmem:[#allocation2 + $0x220] sm:$0xff]
    %v2586 = vld [vmem:[#allocation2 + $0x228] sm:$0xff]
    %v2587 = vld [vmem:[#allocation2 + $0x230] sm:$0xff]
    %v2588 = vld [vmem:[#allocation2 + $0x238] sm:$0xff]
    %v2589 = vld [vmem:[#allocation2 + $0x240] sm:$0xff]
    %v2590 = vld [vmem:[#allocation2 + $0x248] sm:$0xff]
    %v2591 = vld [vmem:[#allocation2 + $0x250] sm:$0xff]
    %v2592 = vld [vmem:[#allocation2 + $0x258] sm:$0xff]
    %v2593 = vld [vmem:[#allocation2 + $0x260] sm:$0xff]
    %v2594 = vld [vmem:[#allocation2 + $0x268] sm:$0xff]
    %v2595 = vld [vmem:[#allocation2 + $0x270] sm:$0xff]
    %v2596 = vld [vmem:[#allocation2 + $0x278] sm:$0xff]
    %v2597 = vld [vmem:[#allocation2 + $0x280] sm:$0xff]
    %v2598 = vld [vmem:[#allocation2 + $0x288] sm:$0xff]
    %v2599 = vld [vmem:[#allocation2 + $0x290] sm:$0xff]
    %v2600 = vld [vmem:[#allocation2 + $0x298] sm:$0xff]
    %v2601 = vld [vmem:[#allocation2 + $0x2a0] sm:$0xff]
    %v2602 = vld [vmem:[#allocation2 + $0x2a8] sm:$0xff]
    %v2603 = vld [vmem:[#allocation2 + $0x2b0] sm:$0xff]
    %v2604 = vld [vmem:[#allocation2 + $0x2b8] sm:$0xff]
    %v2605 = vld [vmem:[#allocation2 + $0x2c0] sm:$0xff]
    %v2606 = vld [vmem:[#allocation2 + $0x2c8] sm:$0xff]
    %v2607 = vld [vmem:[#allocation2 + $0x2d0] sm:$0xff]
    %v2608 = vld [vmem:[#allocation2 + $0x2d8] sm:$0xff]
    %v2609 = vld [vmem:[#allocation2 + $0x2e0] sm:$0xff]
    %v2610 = vld [vmem:[#allocation2 + $0x2e8] sm:$0xff]
    %v2611 = vld [vmem:[#allocation2 + $0x2f0] sm:$0xff]
    %v2612 = vld [vmem:[#allocation2 + $0x2f8] sm:$0xff]
    %v2613 = vld [vmem:[#allocation2 + $0x300] sm:$0xff]
    %v2614 = vld [vmem:[#allocation2 + $0x308] sm:$0xff]
    %v2615 = vld [vmem:[#allocation2 + $0x310] sm:$0xff]
    %v2616 = vld [vmem:[#allocation2 + $0x318] sm:$0xff]
    %v2617 = vld [vmem:[#allocation2 + $0x320] sm:$0xff]
    %v2618 = vld [vmem:[#allocation2 + $0x328] sm:$0xff]
    %v2619 = vld [vmem:[#allocation2 + $0x330] sm:$0xff]
    %v2620 = vld [vmem:[#allocation2 + $0x338] sm:$0xff]
    %v2621 = vld [vmem:[#allocation2 + $0x340] sm:$0xff]
    %v2622 = vld [vmem:[#allocation2 + $0x348] sm:$0xff]
    %v2623 = vld [vmem:[#allocation2 + $0x350] sm:$0xff]
    %v2624 = vld [vmem:[#allocation2 + $0x358] sm:$0xff]
    %v2625 = vld [vmem:[#allocation2 + $0x360] sm:$0xff]
    %v2626 = vld [vmem:[#allocation2 + $0x368] sm:$0xff]
    %v2627 = vld [vmem:[#allocation2 + $0x370] sm:$0xff]
    %v2628 = vld [vmem:[#allocation2 + $0x378] sm:$0xff]
    %v2629 = vld [vmem:[#allocation2 + $0x380] sm:$0xff]
    %v2630 = vld [vmem:[#allocation2 + $0x388] sm:$0xff]
    %v2631 = vld [vmem:[#allocation2 + $0x390] sm:$0xff]
    %v2632 = vld [vmem:[#allocation2 + $0x398] sm:$0xff]
    %v2633 = vld [vmem:[#allocation2 + $0x3a0] sm:$0xff]
    %v2634 = vld [vmem:[#allocation2 + $0x3a8] sm:$0xff]
    %v2635 = vld [vmem:[#allocation2 + $0x3b0] sm:$0xff]
    %v2636 = vld [vmem:[#allocation2 + $0x3b8] sm:$0xff]
    %v2637 = vld [vmem:[#allocation2 + $0x3c0] sm:$0xff]
    %v2638 = vld [vmem:[#allocation2 + $0x3c8] sm:$0xff]
    %v2639 = vld [vmem:[#allocation2 + $0x3d0] sm:$0xff]
    %v2640 = vld [vmem:[#allocation2 + $0x3d8] sm:$0xff]
    %v2641 = vld [vmem:[#allocation2 + $0x3e0] sm:$0xff]
    %v2642 = vld [vmem:[#allocation2 + $0x3e8] sm:$0xff]
    %v2643 = vld [vmem:[#allocation2 + $0x3f0] sm:$0xff]
    %v2644 = vld [vmem:[#allocation2 + $0x3f8] sm:$0xff]
    %v2645 = vld [vmem:[#allocation2 + $0x400] sm:$0xff]
    %v2646 = vld [vmem:[#allocation2 + $0x408] sm:$0xff]
    %v2647 = vld [vmem:[#allocation2 + $0x410] sm:$0xff]
    %v2648 = vld [vmem:[#allocation2 + $0x418] sm:$0xff]
    %v2649 = vld [vmem:[#allocation2 + $0x420] sm:$0xff]
    %v2650 = vld [vmem:[#allocation2 + $0x428] sm:$0xff]
    %v2651 = vld [vmem:[#allocation2 + $0x430] sm:$0xff]
    %v2652 = vld [vmem:[#allocation2 + $0x438] sm:$0xff]
    %v2653 = vld [vmem:[#allocation2 + $0x440] sm:$0xff]
    %v2654 = vld [vmem:[#allocation2 + $0x448] sm:$0xff]
    %v2655 = vld [vmem:[#allocation2 + $0x450] sm:$0xff]
    %v2656 = vld [vmem:[#allocation2 + $0x458] sm:$0xff]
    %v2657 = vld [vmem:[#allocation2 + $0x460] sm:$0xff]
    %v2658 = vld [vmem:[#allocation2 + $0x468] sm:$0xff]
    %v2659 = vld [vmem:[#allocation2 + $0x470] sm:$0xff]
    %v2660 = vld [vmem:[#allocation2 + $0x478] sm:$0xff]
    %v2661 = vld [vmem:[#allocation2 + $0x480] sm:$0xff]
    %v2662 = vld [vmem:[#allocation2 + $0x488] sm:$0xff]
    %v2663 = vld [vmem:[#allocation2 + $0x490] sm:$0xff]
    %v2664 = vld [vmem:[#allocation2 + $0x498] sm:$0xff]
    %v2665 = vld [vmem:[#allocation2 + $0x4a0] sm:$0xff]
    %v2666 = vld [vmem:[#allocation2 + $0x4a8] sm:$0xff]
    %v2667 = vld [vmem:[#allocation2 + $0x4b0] sm:$0xff]
    %v2668 = vld [vmem:[#allocation2 + $0x4b8] sm:$0xff]
    %v2669 = vld [vmem:[#allocation2 + $0x4c0] sm:$0xff]
    %v2670 = vld [vmem:[#allocation2 + $0x4c8] sm:$0xff]
    %v2671 = vld [vmem:[#allocation2 + $0x4d0] sm:$0xff]
    %v2672 = vld [vmem:[#allocation2 + $0x4d8] sm:$0xff]
    %v2673 = vld [vmem:[#allocation2 + $0x4e0] sm:$0xff]
    %v2674 = vld [vmem:[#allocation2 + $0x4e8] sm:$0xff]
    %v2675 = vld [vmem:[#allocation2 + $0x4f0] sm:$0xff]
    %v2676 = vld [vmem:[#allocation2 + $0x4f8] sm:$0xff]
    %2677 = vmatpush.msra.mxu0 %v2592
    %2678 = vmatpush.msra.mxu0 %v2587
    %2679 = vmatpush.msra.mxu0 %v2582
    %2680 = vmatpush.msra.mxu0 %v2577
    %2681 = vmatpush.msra.mxu0 %v2572
    %2682 = vmatpush.msra.mxu0 %v2567
    %2683 = vmatpush.msra.mxu0 %v2562
    %2684 = vmatpush.msra.mxu0 %v2557
    %2685 = vmatpush.msra.mxu0 %v2552
    %2686 = vmatpush.msra.mxu0 %v2547
    %2687 = vmatpush.msra.mxu0 %v2542
    %2688 = vmatpush.msra.mxu0 %v2537
    %2689 = vmatpush.msra.mxu0 %v2532
    %2690 = vmatpush.msra.mxu0 %v2527
    %2691 = vmatpush.msra.mxu0 %v2522
    %2692 = vmatpush.msra.mxu0 %v2517
    %2693 = vmatmul.f32.gmra.mxu0 %v2149
    %v2694 = vpop.f32.mrf.mxu0
    %v2695 = vadd.f32 0.0, %v2694
    %2696 = vdwg.mxu0
    %2697 = vmatpush.msra.mxu0 %v2672
    %2698 = vmatpush.msra.mxu0 %v2667
    %2699 = vmatpush.msra.mxu0 %v2662
    %2700 = vmatpush.msra.mxu0 %v2657
    %2701 = vmatpush.msra.mxu0 %v2652
    %2702 = vmatpush.msra.mxu0 %v2647
    %2703 = vmatpush.msra.mxu0 %v2642
    %2704 = vmatpush.msra.mxu0 %v2637
    %2705 = vmatpush.msra.mxu0 %v2632
    %2706 = vmatpush.msra.mxu0 %v2627
    %2707 = vmatpush.msra.mxu0 %v2622
    %2708 = vmatpush.msra.mxu0 %v2617
    %2709 = vmatpush.msra.mxu0 %v2612
    %2710 = vmatpush.msra.mxu0 %v2607
    %2711 = vmatpush.msra.mxu0 %v2602
    %2712 = vmatpush.msra.mxu0 %v2597
    %2713 = vmatmul.f32.gmra.mxu0 %v2150
    %v2714 = vpop.f32.mrf.mxu0
    %v2715 = vadd.f32 %v2695, %v2714
    %2716 = vdwg.mxu0
    %2717 = vmatpush.msra.mxu0 %v2593
    %2718 = vmatpush.msra.mxu0 %v2588
    %2719 = vmatpush.msra.mxu0 %v2583
    %2720 = vmatpush.msra.mxu0 %v2578
    %2721 = vmatpush.msra.mxu0 %v2573
    %2722 = vmatpush.msra.mxu0 %v2568
    %2723 = vmatpush.msra.mxu0 %v2563
    %2724 = vmatpush.msra.mxu0 %v2558
    %2725 = vmatpush.msra.mxu0 %v2553
    %2726 = vmatpush.msra.mxu0 %v2548
    %2727 = vmatpush.msra.mxu0 %v2543
    %2728 = vmatpush.msra.mxu0 %v2538
    %2729 = vmatpush.msra.mxu0 %v2533
    %2730 = vmatpush.msra.mxu0 %v2528
    %2731 = vmatpush.msra.mxu0 %v2523
    %2732 = vmatpush.msra.mxu0 %v2518
    %2733 = vmatmul.f32.gmra.mxu0 %v2149
    %v2734 = vpop.f32.mrf.mxu0
    %v2735 = vadd.f32 0.0, %v2734
    %2736 = vdwg.mxu0
    %2737 = vmatpush.msra.mxu0 %v2673
    %2738 = vmatpush.msra.mxu0 %v2668
    %2739 = vmatpush.msra.mxu0 %v2663
    %2740 = vmatpush.msra.mxu0 %v2658
    %2741 = vmatpush.msra.mxu0 %v2653
    %2742 = vmatpush.msra.mxu0 %v2648
    %2743 = vmatpush.msra.mxu0 %v2643
    %2744 = vmatpush.msra.mxu0 %v2638
    %2745 = vmatpush.msra.mxu0 %v2633
    %2746 = vmatpush.msra.mxu0 %v2628
    %2747 = vmatpush.msra.mxu0 %v2623
    %2748 = vmatpush.msra.mxu0 %v2618
    %2749 = vmatpush.msra.mxu0 %v2613
    %2750 = vmatpush.msra.mxu0 %v2608
    %2751 = vmatpush.msra.mxu0 %v2603
    %2752 = vmatpush.msra.mxu0 %v2598
    %2753 = vmatmul.f32.gmra.mxu0 %v2150
    %v2754 = vpop.f32.mrf.mxu0
    %v2755 = vadd.f32 %v2735, %v2754
    %2756 = vdwg.mxu0
    %2757 = vmatpush.msra.mxu0 %v2594
    %2758 = vmatpush.msra.mxu0 %v2589
    %2759 = vmatpush.msra.mxu0 %v2584
    %2760 = vmatpush.msra.mxu0 %v2579
    %2761 = vmatpush.msra.mxu0 %v2574
    %2762 = vmatpush.msra.mxu0 %v2569
    %2763 = vmatpush.msra.mxu0 %v2564
    %2764 = vmatpush.msra.mxu0 %v2559
    %2765 = vmatpush.msra.mxu0 %v2554
    %2766 = vmatpush.msra.mxu0 %v2549
    %2767 = vmatpush.msra.mxu0 %v2544
    %2768 = vmatpush.msra.mxu0 %v2539
    %2769 = vmatpush.msra.mxu0 %v2534
    %2770 = vmatpush.msra.mxu0 %v2529
    %2771 = vmatpush.msra.mxu0 %v2524
    %2772 = vmatpush.msra.mxu0 %v2519
    %2773 = vmatmul.f32.gmra.mxu0 %v2149
    %v2774 = vpop.f32.mrf.mxu0
    %v2775 = vadd.f32 0.0, %v2774
    %2776 = vdwg.mxu0
    %2777 = vmatpush.msra.mxu0 %v2674
    %2778 = vmatpush.msra.mxu0 %v2669
    %2779 = vmatpush.msra.mxu0 %v2664
    %2780 = vmatpush.msra.mxu0 %v2659
    %2781 = vmatpush.msra.mxu0 %v2654
    %2782 = vmatpush.msra.mxu0 %v2649
    %2783 = vmatpush.msra.mxu0 %v2644
    %2784 = vmatpush.msra.mxu0 %v2639
    %2785 = vmatpush.msra.mxu0 %v2634
    %2786 = vmatpush.msra.mxu0 %v2629
    %2787 = vmatpush.msra.mxu0 %v2624
    %2788 = vmatpush.msra.mxu0 %v2619
    %2789 = vmatpush.msra.mxu0 %v2614
    %2790 = vmatpush.msra.mxu0 %v2609
    %2791 = vmatpush.msra.mxu0 %v2604
    %2792 = vmatpush.msra.mxu0 %v2599
    %2793 = vmatmul.f32.gmra.mxu0 %v2150
    %v2794 = vpop.f32.mrf.mxu0
    %v2795 = vadd.f32 %v2775, %v2794
    %2796 = vdwg.mxu0
    %2797 = vmatpush.msra.mxu0 %v2595
    %2798 = vmatpush.msra.mxu0 %v2590
    %2799 = vmatpush.msra.mxu0 %v2585
    %2800 = vmatpush.msra.mxu0 %v2580
    %2801 = vmatpush.msra.mxu0 %v2575
    %2802 = vmatpush.msra.mxu0 %v2570
    %2803 = vmatpush.msra.mxu0 %v2565
    %2804 = vmatpush.msra.mxu0 %v2560
    %2805 = vmatpush.msra.mxu0 %v2555
    %2806 = vmatpush.msra.mxu0 %v2550
    %2807 = vmatpush.msra.mxu0 %v2545
    %2808 = vmatpush.msra.mxu0 %v2540
    %2809 = vmatpush.msra.mxu0 %v2535
    %2810 = vmatpush.msra.mxu0 %v2530
    %2811 = vmatpush.msra.mxu0 %v2525
    %2812 = vmatpush.msra.mxu0 %v2520
    %2813 = vmatmul.f32.gmra.mxu0 %v2149
    %v2814 = vpop.f32.mrf.mxu0
    %v2815 = vadd.f32 0.0, %v2814
    %2816 = vdwg.mxu0
    %2817 = vmatpush.msra.mxu0 %v2675
    %2818 = vmatpush.msra.mxu0 %v2670
    %2819 = vmatpush.msra.mxu0 %v2665
    %2820 = vmatpush.msra.mxu0 %v2660
    %2821 = vmatpush.msra.mxu0 %v2655
    %2822 = vmatpush.msra.mxu0 %v2650
    %2823 = vmatpush.msra.mxu0 %v2645
    %2824 = vmatpush.msra.mxu0 %v2640
    %2825 = vmatpush.msra.mxu0 %v2635
    %2826 = vmatpush.msra.mxu0 %v2630
    %2827 = vmatpush.msra.mxu0 %v2625
    %2828 = vmatpush.msra.mxu0 %v2620
    %2829 = vmatpush.msra.mxu0 %v2615
    %2830 = vmatpush.msra.mxu0 %v2610
    %2831 = vmatpush.msra.mxu0 %v2605
    %2832 = vmatpush.msra.mxu0 %v2600
    %2833 = vmatmul.f32.gmra.mxu0 %v2150
    %v2834 = vpop.f32.mrf.mxu0
    %v2835 = vadd.f32 %v2815, %v2834
    %2836 = vdwg.mxu0
    %2837 = vmatpush.msra.mxu0 %v2596
    %2838 = vmatpush.msra.mxu0 %v2591
    %2839 = vmatpush.msra.mxu0 %v2586
    %2840 = vmatpush.msra.mxu0 %v2581
    %2841 = vmatpush.msra.mxu0 %v2576
    %2842 = vmatpush.msra.mxu0 %v2571
    %2843 = vmatpush.msra.mxu0 %v2566
    %2844 = vmatpush.msra.mxu0 %v2561
    %2845 = vmatpush.msra.mxu0 %v2556
    %2846 = vmatpush.msra.mxu0 %v2551
    %2847 = vmatpush.msra.mxu0 %v2546
    %2848 = vmatpush.msra.mxu0 %v2541
    %2849 = vmatpush.msra.mxu0 %v2536
    %2850 = vmatpush.msra.mxu0 %v2531
    %2851 = vmatpush.msra.mxu0 %v2526
    %2852 = vmatpush.msra.mxu0 %v2521
    %2853 = vmatmul.f32.gmra.mxu0 %v2149
    %v2854 = vpop.f32.mrf.mxu0
    %v2855 = vadd.f32 0.0, %v2854
    %2856 = vdwg.mxu0
    %2857 = vmatpush.msra.mxu0 %v2676
    %2858 = vmatpush.msra.mxu0 %v2671
    %2859 = vmatpush.msra.mxu0 %v2666
    %2860 = vmatpush.msra.mxu0 %v2661
    %2861 = vmatpush.msra.mxu0 %v2656
    %2862 = vmatpush.msra.mxu0 %v2651
    %2863 = vmatpush.msra.mxu0 %v2646
    %2864 = vmatpush.msra.mxu0 %v2641
    %2865 = vmatpush.msra.mxu0 %v2636
    %2866 = vmatpush.msra.mxu0 %v2631
    %2867 = vmatpush.msra.mxu0 %v2626
    %2868 = vmatpush.msra.mxu0 %v2621
    %2869 = vmatpush.msra.mxu0 %v2616
    %2870 = vmatpush.msra.mxu0 %v2611
    %2871 = vmatpush.msra.mxu0 %v2606
    %2872 = vmatpush.msra.mxu0 %v2601
    %2873 = vmatmul.f32.gmra.mxu0 %v2150
    %v2874 = vpop.f32.mrf.mxu0
    %v2875 = vadd.f32 %v2855, %v2874
    %2876 = vdwg.mxu0
    %s2877 = scalar_lea.vmem %s7, 40
    %2878 = vst [vmem:[%s2877] sm:$0xff] %v2715
    %2879 = vst [vmem:[%s2877 + $0x8] sm:$0xff] %v2755
    %2880 = vst [vmem:[%s2877 + $0x10] sm:$0xff] %v2795
    %2881 = vst [vmem:[%s2877 + $0x18] sm:$0xff] %v2835
    %2882 = vst.msk [vmem:[%s2877 + $0x20] sm:$0xff] %vm2515, %v2875
    // Predicated region
    $region34: #{conv_block_msnnet_forward.1} parent=1 // pred_check
      _
    $region35: #{conv_block_msnnet_forward.1} parent=1 // pred_check_branch
      %2884 = sbr.rel (0) target = $region37
    $region36: #{conv_block_msnnet_forward.1} parent=1 // pred_region
      _
    $region37: #{conv_block_msnnet_forward.1} parent=1 // pred_fallthru
      _
    // Predicated region
    $region38: #{conv_block_msnnet_forward.1} parent=1 // pred_check
      _
    $region39: #{conv_block_msnnet_forward.1} parent=1 // pred_check_branch
      %2886 = sbr.rel (0) target = $region41
    $region40: #{conv_block_msnnet_forward.1} parent=1 // pred_region
      _
    $region41: #{conv_block_msnnet_forward.1} parent=1 // pred_fallthru
      _
    %2887 = vsyncpa [#allocation3], 1

</llo_original>
